<compile_context>
chip_gen: v6e
topology: v6e:2x2x1
jax: 0.10.0
libtpu: 0.0.40
codegen_flags: <defaults>
</compile_context>

<pallas_src>
import jax
import jax.numpy as jnp
from jax.experimental import pallas as pl
from jax.experimental.pallas import tpu as pltpu


# ---------------------------------------------------------------------------
# Kernel
# ---------------------------------------------------------------------------
def _codem2_kernel(
    x1_ref, x2_ref,                  # (1, H, W, C) bf16 inputs
    w3s_ref, b3_ref,                 # Conv3 (BN1 folded): (3, 6C, 2C) dx-stacked taps, (1, 2C)
    w1_ref, b1_ref,                  # Conv1 (BN2 folded): (2C, C), (1, C)
    caw1_ref, cab1_ref,              # CoordAtt conv1 (its BN folded)
    cawh_ref, cabh_ref,              # CoordAtt conv_h
    caww_ref, cabw_ref,              # CoordAtt conv_w
    out_ref,                         # (1, H, W*C) f32 lane-dense output
    acc_ref,                         # VMEM scratch: (H, W, 2C) f32 conv3 accumulator
):
  x1b = x1_ref[0]                    # (H, W, C) bf16
  x2b = x2_ref[0]
  H, W, C = x1b.shape
  C2 = 2 * C
  HW = H * W

  # ---- Conv3: 3x3, pad=1, 2C -> 2C (BN1 folded into w3s/b3) ---------------
  # The three dx taps are stacked along the contraction dim: one
  # (HW, 6C) x (6C, 2C) matmul per dy group (3 matmuls total).  The pad=1
  # column border is handled by shifting the bf16 *inputs* once (reused by
  # all dy); the row border is handled by two row-windowed accumulations, so
  # the accumulator sees 1 full init + only 2 partial read-modify-writes.
  xc = jnp.concatenate([x1b, x2b], axis=-1)                 # (H, W, 2C) bf16
  zcol = jnp.zeros((H, 1, C2), jnp.bfloat16)
  xc_m = jnp.concatenate([zcol, xc[:, :W - 1, :]], axis=1)  # reads col x-1 (kx=0)
  xc_p = jnp.concatenate([xc[:, 1:, :], zcol], axis=1)      # reads col x+1 (kx=2)
  stacked = jnp.concatenate([xc_m, xc, xc_p], axis=-1).reshape(HW, 3 * C2)

  # dy = 0 group (w3s index 1): full-slab accumulator init (no zeros+bias pass).
  r0 = jnp.dot(stacked, w3s_ref[1], preferred_element_type=jnp.float32)
  acc_ref[...] = r0.reshape(H, W, C2)
  # dy = -1 group (index 0): output row y reads input row y-1.
  rm = jnp.dot(stacked, w3s_ref[0],
               preferred_element_type=jnp.float32).reshape(H, W, C2)
  acc_ref[pl.ds(1, H - 1), :, :] += rm[:H - 1]
  # dy = +1 group (index 2): output row y reads input row y+1.
  rp = jnp.dot(stacked, w3s_ref[2],
               preferred_element_type=jnp.float32).reshape(H, W, C2)
  acc_ref[pl.ds(0, H - 1), :, :] += rp[1:]

  # ---- ReLU -> Conv1 (1x1, 2C -> C, BN2 folded) -> ReLU -------------------
  y = jnp.maximum(acc_ref[...].reshape(HW, C2) + b3_ref[...], 0.0)
  z = jnp.dot(y.astype(jnp.bfloat16), w1_ref[...],
              preferred_element_type=jnp.float32) + b1_ref[...]
  z_c = jnp.maximum(z, 0.0).reshape(H, W, C)

  # ---- CoordAtt on f_d = |x1 - x2| (f32 path, tiny matmuls) ---------------
  f_d = jnp.abs(x1b.astype(jnp.float32) - x2b.astype(jnp.float32))  # (H, W, C)
  x_h = jnp.mean(f_d, axis=1)                      # (H, C)  pool over W
  x_w = jnp.mean(f_d, axis=0)                      # (W, C)  pool over H
  yc = jnp.concatenate([x_h, x_w], axis=0)         # (H+W, C)
  yc = jnp.dot(yc, caw1_ref[...], preferred_element_type=jnp.float32)
  yc = yc + cab1_ref[...]                          # CoordAtt BN folded in
  yc = yc * (jnp.clip(yc + 3.0, 0.0, 6.0) * (1.0 / 6.0))   # h_swish

  a_h = jax.nn.sigmoid(
      jnp.dot(yc[:H], cawh_ref[...], preferred_element_type=jnp.float32)
      + cabh_ref[...])                             # (H, C)
  a_w = jax.nn.sigmoid(
      jnp.dot(yc[H:], caww_ref[...], preferred_element_type=jnp.float32)
      + cabw_ref[...])                             # (W, C)

  z_d = f_d * a_w[None, :, :] * a_h[:, None, :]
  # Lane-dense store: last dim W*C instead of C.
  out_ref[0] = (z_d + z_c).reshape(H, W * C).astype(out_ref.dtype)


# ---------------------------------------------------------------------------
# Parameters (synthetic, PyTorch-module-equivalent) + BN folding
# ---------------------------------------------------------------------------
def make_codem2_params(channel_dim, key):
  """Synthetic CoDEM2 parameters.

  Conv weights are stored as (tap, Cin, Cout) / (Cin, Cout).  To load a real
  PyTorch checkpoint map conv.weight[o, i, ky, kx] -> w[ky*3 + kx, i, o]
  (3x3) and conv.weight[o, i, 0, 0] -> w[i, o] (1x1).
  """
  C = channel_dim
  C2 = 2 * C
  mip = max(8, C // 16)              # CoordAtt(reduction=16)
  ks = jax.random.split(key, 16)
  n = lambda k, shape, s=0.1: (s * jax.random.normal(k, shape)).astype(jnp.float32)

  def bn(kg, kb, c):
    return dict(gamma=1.0 + n(kg, (c,)), beta=n(kb, (c,)),
                mean=jnp.zeros((c,), jnp.float32),
                var=jnp.ones((c,), jnp.float32))

  return dict(
      w3=n(ks[0], (9, C2, C2)), b3=n(ks[1], (C2,)), bn1=bn(ks[2], ks[3], C2),
      w1=n(ks[4], (C2, C)), b1=n(ks[5], (C,)), bn2=bn(ks[6], ks[7], C),
      ca_w1=n(ks[8], (C, mip)), ca_b1=n(ks[9], (mip,)),
      ca_bn=bn(ks[10], ks[11], mip),
      ca_wh=n(ks[12], (mip, C)), ca_bh=n(ks[13], (C,)),
      ca_ww=n(ks[14], (mip, C)), ca_bw=n(ks[15], (C,)),
  )


def fold_codem2_params(p, eps=1e-5):
  """Fold inference-mode BatchNorms into the convs, stack the 3x3 taps for
  the dx-merged contraction layout, and cast MXU weights to bf16.  Exact only
  for running-stats (eval-mode) BN."""
  def scale_shift(bn):
    s = bn["gamma"] / jnp.sqrt(bn["var"] + eps)
    return s, bn["beta"] - s * bn["mean"]

  s1, t1 = scale_shift(p["bn1"])
  s2, t2 = scale_shift(p["bn2"])
  sc, tc = scale_shift(p["ca_bn"])

  C2 = p["w3"].shape[1]
  C = C2 // 2

  # Conv3: scale output channels by BN1, view as (ky, kx, in, out) and merge
  # the three kx taps into the contraction dim -> (3 dy, 6C, 2C).  The
  # contraction index is kx*2C + in, matching the kernel's concat order
  # [shift(dx=-1) | shift(dx=0) | shift(dx=+1)] of cat(x1, x2).
  w3 = (p["w3"] * s1[None, None, :]).reshape(3, 3, C2, C2)
  w3s = w3.reshape(3, 3 * C2, C2).astype(jnp.bfloat16)
  b3 = p["b3"] * s1 + t1

  return dict(
      w3s=w3s,
      b3=b3.reshape(1, C2),
      w1=(p["w1"] * s2[None, :]).astype(jnp.bfloat16),
      b1=(p["b1"] * s2 + t2).reshape(1, C),
      ca_w1=p["ca_w1"] * sc[None, :],
      ca_b1=(p["ca_b1"] * sc + tc).reshape(1, -1),
      ca_wh=p["ca_wh"], ca_bh=p["ca_bh"].reshape(1, C),
      ca_ww=p["ca_ww"], ca_bw=p["ca_bw"].reshape(1, C),
  )


# ---------------------------------------------------------------------------
# Wrappers
# ---------------------------------------------------------------------------
_WEIGHT_ORDER = ("w3s", "b3", "w1", "b1",
                 "ca_w1", "ca_b1", "ca_wh", "ca_bh", "ca_ww", "ca_bw")


def _weight_spec(arr):
  # Constant index_map => the weight is never re-fetched across the batch
  # grid; Buffered(1) drops the useless second pipeline buffer (VMEM relief,
  # most valuable on v7x's 64 MiB VMEM).
  zeros = (0,) * arr.ndim
  return pl.BlockSpec(arr.shape, lambda b, _z=zeros: _z,
                      pipeline_mode=pl.Buffered(1))


def _vmem_limit_bytes(H, W, C, weight_bytes):
  try:
    cap = int(getattr(pltpu.get_tpu_info(), "vmem_capacity_bytes", 0))
  except Exception:
    cap = 0
  if cap <= 0:
    cap = 128 * 1024 * 1024            # conservative fallback (v5e/v6e)
  img = H * W * C * 4                  # one f32 image slab
  est = (2 * 2 * (img // 2)            # bf16 x1/x2, double-buffered
         + 2 * img                     # f32 output, double-buffered
         + 2 * img                     # (H, W, 2C) f32 accumulator scratch
         + weight_bytes                # single-buffered weights
         + 12 * img)                   # in-kernel temporaries (stacked slab,
                                       # tap results, f_d, z_c, z_d, relayout)
  # Keep headroom below physical VMEM for Mosaic internal scratch.
  return int(min(max(2 * est, 32 * 1024 * 1024), int(0.85 * cap)))


@jax.jit
def codem2_forward_nhwc(x1, x2, folded):
  """x1, x2: (B, H, W, C) NHWC float.  Returns (B, H, W, C) float32."""
  B, H, W, C = x1.shape
  weights = [folded[k] for k in _WEIGHT_ORDER]
  wbytes = sum(int(w.size) * w.dtype.itemsize for w in weights)

  # Stream inputs into the kernel as bf16: halves input DMA bytes and the
  # double-buffered input VMEM.  Elementwise/CoordAtt math stays f32 inside.
  x1b = x1.astype(jnp.bfloat16)
  x2b = x2.astype(jnp.bfloat16)

  in_specs = ([pl.BlockSpec((1, H, W, C), lambda b: (b, 0, 0, 0))] * 2
              + [_weight_spec(w) for w in weights])

  out_flat = pl.pallas_call(
      _codem2_kernel,
      out_shape=jax.ShapeDtypeStruct((B, H, W * C), jnp.float32),
      grid=(B,),
      in_specs=in_specs,
      out_specs=pl.BlockSpec((1, H, W * C), lambda b: (b, 0, 0)),
      scratch_shapes=[pltpu.VMEM((H, W, 2 * C), jnp.float32)],
      compiler_params=pltpu.CompilerParams(
          dimension_semantics=("parallel",),
          vmem_limit_bytes=_vmem_limit_bytes(H, W, C, wbytes)),
  )(x1b, x2b, *weights)
  return out_flat.reshape(B, H, W, C)


@jax.jit
def codem2_forward(x1_nchw, x2_nchw, folded):
  """PyTorch-layout entry point: (B, C, H, W) -> (B, C, H, W)."""
  x1 = jnp.transpose(x1_nchw, (0, 2, 3, 1))
  x2 = jnp.transpose(x2_nchw, (0, 2, 3, 1))
  out = codem2_forward_nhwc(x1, x2, folded)
  return jnp.transpose(out, (0, 3, 1, 2))


# ---------------------------------------------------------------------------
# Pure-JAX reference (f32, explicit eval-mode BN) for a correctness check
# ---------------------------------------------------------------------------
def codem2_reference(x1_nchw, x2_nchw, p, eps=1e-5):
  x1 = jnp.transpose(x1_nchw, (0, 2, 3, 1))
  x2 = jnp.transpose(x2_nchw, (0, 2, 3, 1))
  B, H, W, C = x1.shape
  C2 = 2 * C

  def bn(x, b):
    return (x - b["mean"]) / jnp.sqrt(b["var"] + eps) * b["gamma"] + b["beta"]

  f_d = jnp.abs(x1 - x2)
  f_c = jnp.concatenate([x1, x2], axis=-1)

  w3 = p["w3"].reshape(3, 3, C2, C2)               # (ky, kx, in, out)
  y = jax.lax.conv_general_dilated(
      f_c, w3, window_strides=(1, 1), padding="SAME",
      dimension_numbers=("NHWC", "HWIO", "NHWC")) + p["b3"]
  y = jax.nn.relu(bn(y, p["bn1"]))
  z = jnp.einsum("bhwc,cd->bhwd", y, p["w1"]) + p["b1"]
  z_c = jax.nn.relu(bn(z, p["bn2"]))

  x_h = f_d.mean(axis=2)                           # (B, H, C)
  x_w = f_d.mean(axis=1)                           # (B, W, C)
  yc = jnp.concatenate([x_h, x_w], axis=1)         # (B, H+W, C)
  yc = jnp.einsum("bnc,cm->bnm", yc, p["ca_w1"]) + p["ca_b1"]
  yc = bn(yc, p["ca_bn"])
  yc = yc * jnp.clip(yc + 3.0, 0.0, 6.0) / 6.0
  a_h = jax.nn.sigmoid(
      jnp.einsum("bhm,mc->bhc", yc[:, :H], p["ca_wh"]) + p["ca_bh"])
  a_w = jax.nn.sigmoid(
      jnp.einsum("bwm,mc->bwc", yc[:, H:], p["ca_ww"]) + p["ca_bw"])

  out = f_d * a_w[:, None, :, :] * a_h[:, :, None, :] + z_c
  return jnp.transpose(out, (0, 3, 1, 2))


if __name__ == "__main__":
  B, C, H, W = 2, 4, 16, 16
  key = jax.random.PRNGKey(0)
  k1, k2, kp = jax.random.split(key, 3)
  x1 = jax.random.normal(k1, (B, C, H, W), dtype=jnp.float32)
  x2 = jax.random.normal(k2, (B, C, H, W), dtype=jnp.float32)

  params = make_codem2_params(C, kp)
  folded = fold_codem2_params(params)

  out = codem2_forward(x1, x2, folded)
  jax.block_until_ready(out)
  assert out.shape == (B, C, H, W), out.shape

  ref = codem2_reference(x1, x2, params)
  max_err = float(jnp.max(jnp.abs(out - ref)))
  assert jnp.allclose(out, ref, atol=5e-2, rtol=5e-2), max_err

  print("KERNEL_OK")
</pallas_src>

<mosaic_0001>
module attributes {stable_mosaic.version = 11 : i64} {
  func.func @_codem2_kernel(%arg0: i32, %arg1: memref<1x16x16x4xbf16, #tpu.memory_space<vmem>>, %arg2: memref<1x16x16x4xbf16, #tpu.memory_space<vmem>>, %arg3: memref<3x24x8xbf16, #tpu.memory_space<vmem>>, %arg4: memref<1x8xf32, #tpu.memory_space<vmem>>, %arg5: memref<8x4xbf16, #tpu.memory_space<vmem>>, %arg6: memref<1x4xf32, #tpu.memory_space<vmem>>, %arg7: memref<4x8xf32, #tpu.memory_space<vmem>>, %arg8: memref<1x8xf32, #tpu.memory_space<vmem>>, %arg9: memref<8x4xf32, #tpu.memory_space<vmem>>, %arg10: memref<1x4xf32, #tpu.memory_space<vmem>>, %arg11: memref<8x4xf32, #tpu.memory_space<vmem>>, %arg12: memref<1x4xf32, #tpu.memory_space<vmem>>, %arg13: memref<1x16x64xf32, #tpu.memory_space<vmem>>, %arg14: memref<16x16x8xf32, #tpu.memory_space<vmem>>) attributes {dimension_semantics = [#tpu.dimension_semantics<parallel>], iteration_bounds = array<i64: 2>, scalar_prefetch = 0 : i64, scratch_operands = 1 : i64, tpu.core_type = #tpu.core_type<tc>, window_params = [{transform_indices = @transform_0, window_bounds = array<i64: 1, 16, 16, 4>}, {transform_indices = @transform_1, window_bounds = array<i64: 1, 16, 16, 4>}, {pipeline_mode = #tpu.pipeline_mode<synchronous>, transform_indices = @transform_2, window_bounds = array<i64: 3, 24, 8>}, {pipeline_mode = #tpu.pipeline_mode<synchronous>, transform_indices = @transform_3, window_bounds = array<i64: 1, 8>}, {pipeline_mode = #tpu.pipeline_mode<synchronous>, transform_indices = @transform_4, window_bounds = array<i64: 8, 4>}, {pipeline_mode = #tpu.pipeline_mode<synchronous>, transform_indices = @transform_5, window_bounds = array<i64: 1, 4>}, {pipeline_mode = #tpu.pipeline_mode<synchronous>, transform_indices = @transform_6, window_bounds = array<i64: 4, 8>}, {pipeline_mode = #tpu.pipeline_mode<synchronous>, transform_indices = @transform_7, window_bounds = array<i64: 1, 8>}, {pipeline_mode = #tpu.pipeline_mode<synchronous>, transform_indices = @transform_8, window_bounds = array<i64: 8, 4>}, {pipeline_mode = #tpu.pipeline_mode<synchronous>, transform_indices = @transform_9, window_bounds = array<i64: 1, 4>}, {pipeline_mode = #tpu.pipeline_mode<synchronous>, transform_indices = @transform_10, window_bounds = array<i64: 8, 4>}, {pipeline_mode = #tpu.pipeline_mode<synchronous>, transform_indices = @transform_11, window_bounds = array<i64: 1, 4>}, {transform_indices = @transform_12, window_bounds = array<i64: 1, 16, 64>}]} {
    %c0 = arith.constant 0 : index
    %c0_0 = arith.constant 0 : index
    %c0_1 = arith.constant 0 : index
    %c0_2 = arith.constant 0 : index
    %0 = vector.load %arg1[%c0, %c0_0, %c0_1, %c0_2] : memref<1x16x16x4xbf16, #tpu.memory_space<vmem>>, vector<1x16x16x4xbf16>
    %1 = vector.shape_cast %0 : vector<1x16x16x4xbf16> to vector<16x16x4xbf16>
    %c0_3 = arith.constant 0 : index
    %c0_4 = arith.constant 0 : index
    %c0_5 = arith.constant 0 : index
    %c0_6 = arith.constant 0 : index
    %2 = vector.load %arg2[%c0_3, %c0_4, %c0_5, %c0_6] : memref<1x16x16x4xbf16, #tpu.memory_space<vmem>>, vector<1x16x16x4xbf16>
    %3 = vector.shape_cast %2 : vector<1x16x16x4xbf16> to vector<16x16x4xbf16>
    %4 = tpu.concatenate %1, %3 in 2 : vector<16x16x4xbf16>, vector<16x16x4xbf16> -> vector<16x16x8xbf16>
    %cst = arith.constant 0.000000e+00 : bf16
    %5 = vector.broadcast %cst : bf16 to vector<16x1x8xbf16>
    %6 = vector.extract_strided_slice %4 {offsets = [0, 0, 0], sizes = [16, 15, 8], strides = [1, 1, 1]} : vector<16x16x8xbf16> to vector<16x15x8xbf16>
    %7 = tpu.concatenate %5, %6 in 1 : vector<16x1x8xbf16>, vector<16x15x8xbf16> -> vector<16x16x8xbf16>
    %8 = vector.extract_strided_slice %4 {offsets = [0, 1, 0], sizes = [16, 15, 8], strides = [1, 1, 1]} : vector<16x16x8xbf16> to vector<16x15x8xbf16>
    %9 = tpu.concatenate %8, %5 in 1 : vector<16x15x8xbf16>, vector<16x1x8xbf16> -> vector<16x16x8xbf16>
    %10 = tpu.concatenate %7, %4, %9 in 2 : vector<16x16x8xbf16>, vector<16x16x8xbf16>, vector<16x16x8xbf16> -> vector<16x16x24xbf16>
    %11 = vector.shape_cast %10 : vector<16x16x24xbf16> to vector<256x24xbf16>
    %c1 = arith.constant 1 : index
    %c0_7 = arith.constant 0 : index
    %c0_8 = arith.constant 0 : index
    %12 = vector.load %arg3[%c1, %c0_7, %c0_8] : memref<3x24x8xbf16, #tpu.memory_space<vmem>>, vector<1x24x8xbf16>
    %13 = vector.shape_cast %12 : vector<1x24x8xbf16> to vector<24x8xbf16>
    %cst_9 = arith.constant dense<0.000000e+00> : vector<256x8xf32>
    %14 = tpu.matmul %11, %13, %cst_9 {dimension_numbers = #tpu.dot_dimension_numbers<[1], [0], [0], [1], [0, 0, 1, 1], [], []>} : vector<256x24xbf16>, vector<24x8xbf16>, vector<256x8xf32> -> vector<256x8xf32>
    %15 = vector.shape_cast %14 : vector<256x8xf32> to vector<16x16x8xf32>
    %c0_10 = arith.constant 0 : index
    %c0_11 = arith.constant 0 : index
    %c0_12 = arith.constant 0 : index
    %16 = vector.load %arg14[%c0_10, %c0_11, %c0_12] : memref<16x16x8xf32, #tpu.memory_space<vmem>>, vector<16x16x8xf32>
    tpu.vector_store %arg14[%c0_10, %c0_11, %c0_12], %15 {strides = array<i32>} : memref<16x16x8xf32, #tpu.memory_space<vmem>>, vector<16x16x8xf32>,
    %c0_13 = arith.constant 0 : index
    %c0_14 = arith.constant 0 : index
    %c0_15 = arith.constant 0 : index
    %17 = vector.load %arg3[%c0_13, %c0_14, %c0_15] : memref<3x24x8xbf16, #tpu.memory_space<vmem>>, vector<1x24x8xbf16>
    %18 = vector.shape_cast %17 : vector<1x24x8xbf16> to vector<24x8xbf16>
    %cst_16 = arith.constant dense<0.000000e+00> : vector<256x8xf32>
    %19 = tpu.matmul %11, %18, %cst_16 {dimension_numbers = #tpu.dot_dimension_numbers<[1], [0], [0], [1], [0, 0, 1, 1], [], []>} : vector<256x24xbf16>, vector<24x8xbf16>, vector<256x8xf32> -> vector<256x8xf32>
    %20 = vector.shape_cast %19 : vector<256x8xf32> to vector<16x16x8xf32>
    %c1_17 = arith.constant 1 : index
    %c0_18 = arith.constant 0 : index
    %c0_19 = arith.constant 0 : index
    %21 = vector.load %arg14[%c1_17, %c0_18, %c0_19] : memref<16x16x8xf32, #tpu.memory_space<vmem>>, vector<15x16x8xf32>
    %22 = vector.extract_strided_slice %20 {offsets = [0, 0, 0], sizes = [15, 16, 8], strides = [1, 1, 1]} : vector<16x16x8xf32> to vector<15x16x8xf32>
    %23 = arith.addf %21, %22 : vector<15x16x8xf32>
    %c1_20 = arith.constant 1 : index
    %c0_21 = arith.constant 0 : index
    %c0_22 = arith.constant 0 : index
    %24 = vector.load %arg14[%c1_20, %c0_21, %c0_22] : memref<16x16x8xf32, #tpu.memory_space<vmem>>, vector<15x16x8xf32>
    tpu.vector_store %arg14[%c1_20, %c0_21, %c0_22], %23 {strides = array<i32>} : memref<16x16x8xf32, #tpu.memory_space<vmem>>, vector<15x16x8xf32>,
    %c2 = arith.constant 2 : index
    %c0_23 = arith.constant 0 : index
    %c0_24 = arith.constant 0 : index
    %25 = vector.load %arg3[%c2, %c0_23, %c0_24] : memref<3x24x8xbf16, #tpu.memory_space<vmem>>, vector<1x24x8xbf16>
    %26 = vector.shape_cast %25 : vector<1x24x8xbf16> to vector<24x8xbf16>
    %cst_25 = arith.constant dense<0.000000e+00> : vector<256x8xf32>
    %27 = tpu.matmul %11, %26, %cst_25 {dimension_numbers = #tpu.dot_dimension_numbers<[1], [0], [0], [1], [0, 0, 1, 1], [], []>} : vector<256x24xbf16>, vector<24x8xbf16>, vector<256x8xf32> -> vector<256x8xf32>
    %28 = vector.shape_cast %27 : vector<256x8xf32> to vector<16x16x8xf32>
    %c0_26 = arith.constant 0 : index
    %c0_27 = arith.constant 0 : index
    %c0_28 = arith.constant 0 : index
    %29 = vector.load %arg14[%c0_26, %c0_27, %c0_28] : memref<16x16x8xf32, #tpu.memory_space<vmem>>, vector<15x16x8xf32>
    %30 = vector.extract_strided_slice %28 {offsets = [1, 0, 0], sizes = [15, 16, 8], strides = [1, 1, 1]} : vector<16x16x8xf32> to vector<15x16x8xf32>
    %31 = arith.addf %29, %30 : vector<15x16x8xf32>
    %c0_29 = arith.constant 0 : index
    %c0_30 = arith.constant 0 : index
    %c0_31 = arith.constant 0 : index
    %32 = vector.load %arg14[%c0_29, %c0_30, %c0_31] : memref<16x16x8xf32, #tpu.memory_space<vmem>>, vector<15x16x8xf32>
    tpu.vector_store %arg14[%c0_29, %c0_30, %c0_31], %31 {strides = array<i32>} : memref<16x16x8xf32, #tpu.memory_space<vmem>>, vector<15x16x8xf32>,
    %c0_32 = arith.constant 0 : index
    %c0_33 = arith.constant 0 : index
    %c0_34 = arith.constant 0 : index
    %33 = vector.load %arg14[%c0_32, %c0_33, %c0_34] : memref<16x16x8xf32, #tpu.memory_space<vmem>>, vector<16x16x8xf32>
    %34 = vector.shape_cast %33 : vector<16x16x8xf32> to vector<256x8xf32>
    %c0_35 = arith.constant 0 : index
    %c0_36 = arith.constant 0 : index
    %35 = vector.load %arg4[%c0_35, %c0_36] : memref<1x8xf32, #tpu.memory_space<vmem>>, vector<1x8xf32>
    %36 = vector.broadcast %35 : vector<1x8xf32> to vector<256x8xf32>
    %37 = arith.addf %34, %36 : vector<256x8xf32>
    %cst_37 = arith.constant 0.000000e+00 : f32
    %38 = vector.broadcast %cst_37 : f32 to vector<256x8xf32>
    %39 = arith.maximumf %37, %38 : vector<256x8xf32>
    %40 = arith.truncf %39 : vector<256x8xf32> to vector<256x8xbf16>
    %c0_38 = arith.constant 0 : index
    %c0_39 = arith.constant 0 : index
    %41 = vector.load %arg5[%c0_38, %c0_39] : memref<8x4xbf16, #tpu.memory_space<vmem>>, vector<8x4xbf16>
    %cst_40 = arith.constant dense<0.000000e+00> : vector<256x4xf32>
    %42 = tpu.matmul %40, %41, %cst_40 {dimension_numbers = #tpu.dot_dimension_numbers<[1], [0], [0], [1], [0, 0, 1, 1], [], []>} : vector<256x8xbf16>, vector<8x4xbf16>, vector<256x4xf32> -> vector<256x4xf32>
    %c0_41 = arith.constant 0 : index
    %c0_42 = arith.constant 0 : index
    %43 = vector.load %arg6[%c0_41, %c0_42] : memref<1x4xf32, #tpu.memory_space<vmem>>, vector<1x4xf32>
    %44 = vector.broadcast %43 : vector<1x4xf32> to vector<256x4xf32>
    %45 = arith.addf %42, %44 : vector<256x4xf32>
    %cst_43 = arith.constant 0.000000e+00 : f32
    %46 = vector.broadcast %cst_43 : f32 to vector<256x4xf32>
    %47 = arith.maximumf %45, %46 : vector<256x4xf32>
    %48 = vector.shape_cast %47 : vector<256x4xf32> to vector<16x16x4xf32>
    %49 = arith.extf %1 : vector<16x16x4xbf16> to vector<16x16x4xf32>
    %50 = arith.extf %3 : vector<16x16x4xbf16> to vector<16x16x4xf32>
    %51 = arith.subf %49, %50 : vector<16x16x4xf32>
    %52 = math.absf %51 : vector<16x16x4xf32>
    %cst_44 = arith.constant dense<0.000000e+00> : vector<16x4xf32>
    %53 = vector.multi_reduction <add>, %52, %cst_44 [1] : vector<16x16x4xf32> to vector<16x4xf32>
    %cst_45 = arith.constant 1.600000e+01 : f32
    %54 = vector.broadcast %cst_45 : f32 to vector<16x4xf32>
    %55 = arith.divf %53, %54 : vector<16x4xf32>
    %cst_46 = arith.constant dense<0.000000e+00> : vector<16x4xf32>
    %56 = vector.multi_reduction <add>, %52, %cst_46 [0] : vector<16x16x4xf32> to vector<16x4xf32>
    %cst_47 = arith.constant 1.600000e+01 : f32
    %57 = vector.broadcast %cst_47 : f32 to vector<16x4xf32>
    %58 = arith.divf %56, %57 : vector<16x4xf32>
    %59 = tpu.concatenate %55, %58 in 0 : vector<16x4xf32>, vector<16x4xf32> -> vector<32x4xf32>
    %c0_48 = arith.constant 0 : index
    %c0_49 = arith.constant 0 : index
    %60 = vector.load %arg7[%c0_48, %c0_49] : memref<4x8xf32, #tpu.memory_space<vmem>>, vector<4x8xf32>
    %cst_50 = arith.constant dense<0.000000e+00> : vector<32x8xf32>
    %61 = tpu.matmul %59, %60, %cst_50 {dimension_numbers = #tpu.dot_dimension_numbers<[1], [0], [0], [1], [0, 0, 1, 1], [], []>} : vector<32x4xf32>, vector<4x8xf32>, vector<32x8xf32> -> vector<32x8xf32>
    %c0_51 = arith.constant 0 : index
    %c0_52 = arith.constant 0 : index
    %62 = vector.load %arg8[%c0_51, %c0_52] : memref<1x8xf32, #tpu.memory_space<vmem>>, vector<1x8xf32>
    %63 = vector.broadcast %62 : vector<1x8xf32> to vector<32x8xf32>
    %64 = arith.addf %61, %63 : vector<32x8xf32>
    %cst_53 = arith.constant 3.000000e+00 : f32
    %65 = vector.broadcast %cst_53 : f32 to vector<32x8xf32>
    %66 = arith.addf %64, %65 : vector<32x8xf32>
    %cst_54 = arith.constant 0.000000e+00 : f32
    %cst_55 = arith.constant 6.000000e+00 : f32
    %67 = vector.broadcast %cst_54 : f32 to vector<32x8xf32>
    %68 = arith.maximumf %67, %66 : vector<32x8xf32>
    %69 = vector.broadcast %cst_55 : f32 to vector<32x8xf32>
    %70 = arith.minimumf %69, %68 : vector<32x8xf32>
    %cst_56 = arith.constant 0.166666672 : f32
    %71 = vector.broadcast %cst_56 : f32 to vector<32x8xf32>
    %72 = arith.mulf %70, %71 : vector<32x8xf32>
    %73 = arith.mulf %64, %72 : vector<32x8xf32>
    %74 = vector.extract_strided_slice %73 {offsets = [0, 0], sizes = [16, 8], strides = [1, 1]} : vector<32x8xf32> to vector<16x8xf32>
    %c0_57 = arith.constant 0 : index
    %c0_58 = arith.constant 0 : index
    %75 = vector.load %arg9[%c0_57, %c0_58] : memref<8x4xf32, #tpu.memory_space<vmem>>, vector<8x4xf32>
    %cst_59 = arith.constant dense<0.000000e+00> : vector<16x4xf32>
    %76 = tpu.matmul %74, %75, %cst_59 {dimension_numbers = #tpu.dot_dimension_numbers<[1], [0], [0], [1], [0, 0, 1, 1], [], []>} : vector<16x8xf32>, vector<8x4xf32>, vector<16x4xf32> -> vector<16x4xf32>
    %c0_60 = arith.constant 0 : index
    %c0_61 = arith.constant 0 : index
    %77 = vector.load %arg10[%c0_60, %c0_61] : memref<1x4xf32, #tpu.memory_space<vmem>>, vector<1x4xf32>
    %78 = vector.broadcast %77 : vector<1x4xf32> to vector<16x4xf32>
    %79 = arith.addf %76, %78 : vector<16x4xf32>
    %80 = arith.negf %79 : vector<16x4xf32>
    %81 = math.exp %80 : vector<16x4xf32>
    %cst_62 = arith.constant 1.000000e+00 : f32
    %82 = vector.broadcast %cst_62 : f32 to vector<16x4xf32>
    %83 = arith.addf %82, %81 : vector<16x4xf32>
    %84 = arith.divf %82, %83 : vector<16x4xf32>
    %85 = vector.extract_strided_slice %73 {offsets = [16, 0], sizes = [16, 8], strides = [1, 1]} : vector<32x8xf32> to vector<16x8xf32>
    %c0_63 = arith.constant 0 : index
    %c0_64 = arith.constant 0 : index
    %86 = vector.load %arg11[%c0_63, %c0_64] : memref<8x4xf32, #tpu.memory_space<vmem>>, vector<8x4xf32>
    %cst_65 = arith.constant dense<0.000000e+00> : vector<16x4xf32>
    %87 = tpu.matmul %85, %86, %cst_65 {dimension_numbers = #tpu.dot_dimension_numbers<[1], [0], [0], [1], [0, 0, 1, 1], [], []>} : vector<16x8xf32>, vector<8x4xf32>, vector<16x4xf32> -> vector<16x4xf32>
    %c0_66 = arith.constant 0 : index
    %c0_67 = arith.constant 0 : index
    %88 = vector.load %arg12[%c0_66, %c0_67] : memref<1x4xf32, #tpu.memory_space<vmem>>, vector<1x4xf32>
    %89 = vector.broadcast %88 : vector<1x4xf32> to vector<16x4xf32>
    %90 = arith.addf %87, %89 : vector<16x4xf32>
    %91 = arith.negf %90 : vector<16x4xf32>
    %92 = math.exp %91 : vector<16x4xf32>
    %cst_68 = arith.constant 1.000000e+00 : f32
    %93 = vector.broadcast %cst_68 : f32 to vector<16x4xf32>
    %94 = arith.addf %93, %92 : vector<16x4xf32>
    %95 = arith.divf %93, %94 : vector<16x4xf32>
    %96 = vector.shape_cast %95 : vector<16x4xf32> to vector<1x16x4xf32>
    %97 = vector.broadcast %96 : vector<1x16x4xf32> to vector<16x16x4xf32>
    %98 = arith.mulf %52, %97 : vector<16x16x4xf32>
    %99 = vector.shape_cast %84 : vector<16x4xf32> to vector<16x1x4xf32>
    %100 = vector.broadcast %99 : vector<16x1x4xf32> to vector<16x16x4xf32>
    %101 = arith.mulf %98, %100 : vector<16x16x4xf32>
    %102 = arith.addf %101, %48 : vector<16x16x4xf32>
    %103 = vector.shape_cast %102 : vector<16x16x4xf32> to vector<16x64xf32>
    %c0_69 = arith.constant 0 : index
    %c0_70 = arith.constant 0 : index
    %c0_71 = arith.constant 0 : index
    %104 = vector.load %arg13[%c0_69, %c0_70, %c0_71] : memref<1x16x64xf32, #tpu.memory_space<vmem>>, vector<1x16x64xf32>
    %105 = vector.shape_cast %104 : vector<1x16x64xf32> to vector<16x64xf32>
    %106 = vector.shape_cast %103 : vector<16x64xf32> to vector<1x16x64xf32>
    tpu.vector_store %arg13[%c0_69, %c0_70, %c0_71], %106 {strides = array<i32>} : memref<1x16x64xf32, #tpu.memory_space<vmem>>, vector<1x16x64xf32>,
    return
  }
  func.func @transform_0(%arg0: i32) -> (i32, i32, i32, i32) {
    %c0_i32 = arith.constant 0 : i32
    %c0_i32_0 = arith.constant 0 : i32
    %c0_i32_1 = arith.constant 0 : i32
    %c0_i32_2 = arith.constant 0 : i32
    return %arg0, %c0_i32, %c0_i32_0, %c0_i32_1 : i32, i32, i32, i32
  }
  func.func @transform_1(%arg0: i32) -> (i32, i32, i32, i32) {
    %c0_i32 = arith.constant 0 : i32
    %c0_i32_0 = arith.constant 0 : i32
    %c0_i32_1 = arith.constant 0 : i32
    %c0_i32_2 = arith.constant 0 : i32
    return %arg0, %c0_i32, %c0_i32_0, %c0_i32_1 : i32, i32, i32, i32
  }
  func.func @transform_2(%arg0: i32) -> (i32, i32, i32) {
    %c0_i32 = arith.constant 0 : i32
    %c0_i32_0 = arith.constant 0 : i32
    %c0_i32_1 = arith.constant 0 : i32
    %c0_i32_2 = arith.constant 0 : i32
    return %c0_i32, %c0_i32_0, %c0_i32_1 : i32, i32, i32
  }
  func.func @transform_3(%arg0: i32) -> (i32, i32) {
    %c0_i32 = arith.constant 0 : i32
    %c0_i32_0 = arith.constant 0 : i32
    %c0_i32_1 = arith.constant 0 : i32
    return %c0_i32, %c0_i32_0 : i32, i32
  }
  func.func @transform_4(%arg0: i32) -> (i32, i32) {
    %c0_i32 = arith.constant 0 : i32
    %c0_i32_0 = arith.constant 0 : i32
    %c0_i32_1 = arith.constant 0 : i32
    return %c0_i32, %c0_i32_0 : i32, i32
  }
  func.func @transform_5(%arg0: i32) -> (i32, i32) {
    %c0_i32 = arith.constant 0 : i32
    %c0_i32_0 = arith.constant 0 : i32
    %c0_i32_1 = arith.constant 0 : i32
    return %c0_i32, %c0_i32_0 : i32, i32
  }
  func.func @transform_6(%arg0: i32) -> (i32, i32) {
    %c0_i32 = arith.constant 0 : i32
    %c0_i32_0 = arith.constant 0 : i32
    %c0_i32_1 = arith.constant 0 : i32
    return %c0_i32, %c0_i32_0 : i32, i32
  }
  func.func @transform_7(%arg0: i32) -> (i32, i32) {
    %c0_i32 = arith.constant 0 : i32
    %c0_i32_0 = arith.constant 0 : i32
    %c0_i32_1 = arith.constant 0 : i32
    return %c0_i32, %c0_i32_0 : i32, i32
  }
  func.func @transform_8(%arg0: i32) -> (i32, i32) {
    %c0_i32 = arith.constant 0 : i32
    %c0_i32_0 = arith.constant 0 : i32
    %c0_i32_1 = arith.constant 0 : i32
    return %c0_i32, %c0_i32_0 : i32, i32
  }
  func.func @transform_9(%arg0: i32) -> (i32, i32) {
    %c0_i32 = arith.constant 0 : i32
    %c0_i32_0 = arith.constant 0 : i32
    %c0_i32_1 = arith.constant 0 : i32
    return %c0_i32, %c0_i32_0 : i32, i32
  }
  func.func @transform_10(%arg0: i32) -> (i32, i32) {
    %c0_i32 = arith.constant 0 : i32
    %c0_i32_0 = arith.constant 0 : i32
    %c0_i32_1 = arith.constant 0 : i32
    return %c0_i32, %c0_i32_0 : i32, i32
  }
  func.func @transform_11(%arg0: i32) -> (i32, i32) {
    %c0_i32 = arith.constant 0 : i32
    %c0_i32_0 = arith.constant 0 : i32
    %c0_i32_1 = arith.constant 0 : i32
    return %c0_i32, %c0_i32_0 : i32, i32
  }
  func.func @transform_12(%arg0: i32) -> (i32, i32, i32) {
    %c0_i32 = arith.constant 0 : i32
    %c0_i32_0 = arith.constant 0 : i32
    %c0_i32_1 = arith.constant 0 : i32
    return %arg0, %c0_i32, %c0_i32_0 : i32, i32, i32
  }
}

</mosaic_0001>

<llo_original>
// kernel: codem2_forward_nhwc.1
$region0: #{codem2_forward_nhwc.1}
  #allocation0 [shape = 'u32[]', space=smem, size = 0x4, offset = 0x4, fixed_abs, tag = 'smem constant byte address 0x4 - core index']
  #allocation1 [shape = 'u32[144,128]{1,0:T(1,128)}', space=vmem, size = 0x12000, scoped, tag = 'internal scratch']
  #allocation2 [shape = 'f32[16,16,8]{2,1,0:T(8,128)}', space=vmem, size = 0x20000, scoped, tag = 'scratch operand']
  %s0 = inlined_call_operand.vmem [shape: bf16[2,16,16,4], index: 0, kind: input, shape index: {}]
  %s1 = inlined_call_operand.vmem [shape: bf16[2,16,16,4], index: 1, kind: input, shape index: {}]
  %s2 = inlined_call_operand.vmem [shape: bf16[3,24,8], index: 2, kind: input, shape index: {}]
  %s3 = inlined_call_operand.vmem [shape: f32[1,8], index: 3, kind: input, shape index: {}]
  %s4 = inlined_call_operand.vmem [shape: bf16[8,4], index: 4, kind: input, shape index: {}]
  %s5 = inlined_call_operand.vmem [shape: f32[1,4], index: 5, kind: input, shape index: {}]
  %s6 = inlined_call_operand.vmem [shape: f32[4,8], index: 6, kind: input, shape index: {}]
  %s7 = inlined_call_operand.vmem [shape: f32[1,8], index: 7, kind: input, shape index: {}]
  %s8 = inlined_call_operand.vmem [shape: f32[8,4], index: 8, kind: input, shape index: {}]
  %s9 = inlined_call_operand.vmem [shape: f32[1,4], index: 9, kind: input, shape index: {}]
  %s10 = inlined_call_operand.vmem [shape: f32[8,4], index: 10, kind: input, shape index: {}]
  %s11 = inlined_call_operand.vmem [shape: f32[1,4], index: 11, kind: input, shape index: {}]
  %s12 = inlined_call_operand.vmem [shape: f32[2,16,64], index: 12, kind: output, shape index: {}]
  %s13 = sld [smem:[#allocation0]]
  $region81: #{codem2_forward_nhwc.1} parent=0
    _
  %s15 = ssub.s32 1, %s13
  %s16 = scalar_select 0, %s15, %s13
  loop: start=0, step=1, limit=4
  $region2: #{codem2_forward_nhwc.1} parent=0 // loop_pre_header
    _
  $region3: #{codem2_forward_nhwc.1} parent=0 // loop_header
    %s18 = sphi 0, %s22
    %p19 = scmp.ge.s32.totalorder %s18, 4
    %s28 = sphi 0, %s30
    %s31 = sphi 0, %s28
    %s32 = sphi 0, %s31
    %s48 = sphi 0, %s32
    %s54 = sphi 0, %s56
    %s57 = sphi 0, %s54
    %s58 = sphi 0, %s57
    %s74 = sphi 0, %s58
    %s78 = sphi 0, %s78
    %s80 = sphi 0, %s78
    %s81 = sphi 0, %s80
    %s95 = sphi 0, %s81
    %s99 = sphi 0, %s99
    %s101 = sphi 0, %s99
    %s102 = sphi 0, %s101
    %s116 = sphi 0, %s102
    %s120 = sphi 0, %s120
    %s122 = sphi 0, %s120
    %s123 = sphi 0, %s122
    %s137 = sphi 0, %s123
    %s141 = sphi 0, %s141
    %s143 = sphi 0, %s141
    %s144 = sphi 0, %s143
    %s158 = sphi 0, %s144
    %s162 = sphi 0, %s162
    %s164 = sphi 0, %s162
    %s165 = sphi 0, %s164
    %s179 = sphi 0, %s165
    %s183 = sphi 0, %s183
    %s185 = sphi 0, %s183
    %s186 = sphi 0, %s185
    %s200 = sphi 0, %s186
    %s204 = sphi 0, %s204
    %s206 = sphi 0, %s204
    %s207 = sphi 0, %s206
    %s221 = sphi 0, %s207
    %s225 = sphi 0, %s225
    %s227 = sphi 0, %s225
    %s228 = sphi 0, %s227
    %s242 = sphi 0, %s228
    %s246 = sphi 0, %s246
    %s248 = sphi 0, %s246
    %s249 = sphi 0, %s248
    %s263 = sphi 0, %s249
    %s267 = sphi 0, %s267
    %s269 = sphi 0, %s267
    %s270 = sphi 0, %s269
    %s284 = sphi 0, %s270
    %s290 = sphi 0, %s292
    %s293 = sphi 0, %s290
    %s294 = sphi 0, %s293
    %s310 = sphi 0, %s294
  $region4: #{codem2_forward_nhwc.1} parent=0 // loop_header_branch
    %21 = sbr.rel (%p19) target = $region8
  $region5: #{codem2_forward_nhwc.1} parent=0 // loop_body
    %s23 = ssub.s32 %s18, 1
    %s24 = ssub.s32 %s18, 2
    %s25 = sadd.s32 %s18, 1
    %s26 = ssub.s32 %s18, %s25
    %p27 = scmp.eq.s32.totalorder %s26, 0
    %s29 = sadd.s32 %s28, 1
    %s30 = scalar_select %p27, %s28, %s29
    %p33 = pneg %p27
    %p34 = scmp.eq.s32.totalorder %s18, 1
    %p35 = por %p33, %p34
    %p36 = scmp.ne.s32.totalorder %s28, %s31
    %p37 = scmp.eq.s32.totalorder %s18, 0
    %p38 = por %p36, %p37
    %p39 = scmp.ne.s32.totalorder %s28, %s31
    %p40 = scmp.eq.s32.totalorder %s23, 1
    %p41 = por %p39, %p40
    %p42 = scmp.ne.s32.totalorder %s31, %s32
    %p43 = scmp.eq.s32.totalorder %s23, 0
    %p44 = por %p42, %p43
    %p45 = scmp.ne.s32.totalorder %s31, %s32
    %p46 = scmp.eq.s32.totalorder %s24, 1
    %p47 = por %p45, %p46
    %p49 = scmp.ne.s32.totalorder %s32, %s48
    %p50 = scmp.eq.s32.totalorder %s24, 0
    %p51 = por %p49, %p50
    %s52 = ssub.s32 %s18, %s25
    %p53 = scmp.eq.s32.totalorder %s52, 0
    %s55 = sadd.s32 %s54, 1
    %s56 = scalar_select %p53, %s54, %s55
    %p59 = pneg %p53
    %p60 = scmp.eq.s32.totalorder %s18, 1
    %p61 = por %p59, %p60
    %p62 = scmp.ne.s32.totalorder %s54, %s57
    %p63 = scmp.eq.s32.totalorder %s18, 0
    %p64 = por %p62, %p63
    %p65 = scmp.ne.s32.totalorder %s54, %s57
    %p66 = scmp.eq.s32.totalorder %s23, 1
    %p67 = por %p65, %p66
    %p68 = scmp.ne.s32.totalorder %s57, %s58
    %p69 = scmp.eq.s32.totalorder %s23, 0
    %p70 = por %p68, %p69
    %p71 = scmp.ne.s32.totalorder %s57, %s58
    %p72 = scmp.eq.s32.totalorder %s24, 1
    %p73 = por %p71, %p72
    %p75 = scmp.ne.s32.totalorder %s58, %s74
    %p76 = scmp.eq.s32.totalorder %s24, 0
    %p77 = por %p75, %p76
    %s79 = sadd.s32 %s78, 1
    %p82 = scmp.eq.s32.totalorder %s18, 1
    %p83 = scmp.ne.s32.totalorder %s78, %s80
    %p84 = scmp.eq.s32.totalorder %s18, 0
    %p85 = por %p83, %p84
    %p86 = scmp.ne.s32.totalorder %s78, %s80
    %p87 = scmp.eq.s32.totalorder %s23, 1
    %p88 = por %p86, %p87
    %p89 = scmp.ne.s32.totalorder %s80, %s81
    %p90 = scmp.eq.s32.totalorder %s23, 0
    %p91 = por %p89, %p90
    %p92 = scmp.ne.s32.totalorder %s80, %s81
    %p93 = scmp.eq.s32.totalorder %s24, 1
    %p94 = por %p92, %p93
    %p96 = scmp.ne.s32.totalorder %s81, %s95
    %p97 = scmp.eq.s32.totalorder %s24, 0
    %p98 = por %p96, %p97
    %s100 = sadd.s32 %s99, 1
    %p103 = scmp.eq.s32.totalorder %s18, 1
    %p104 = scmp.ne.s32.totalorder %s99, %s101
    %p105 = scmp.eq.s32.totalorder %s18, 0
    %p106 = por %p104, %p105
    %p107 = scmp.ne.s32.totalorder %s99, %s101
    %p108 = scmp.eq.s32.totalorder %s23, 1
    %p109 = por %p107, %p108
    %p110 = scmp.ne.s32.totalorder %s101, %s102
    %p111 = scmp.eq.s32.totalorder %s23, 0
    %p112 = por %p110, %p111
    %p113 = scmp.ne.s32.totalorder %s101, %s102
    %p114 = scmp.eq.s32.totalorder %s24, 1
    %p115 = por %p113, %p114
    %p117 = scmp.ne.s32.totalorder %s102, %s116
    %p118 = scmp.eq.s32.totalorder %s24, 0
    %p119 = por %p117, %p118
    %s121 = sadd.s32 %s120, 1
    %p124 = scmp.eq.s32.totalorder %s18, 1
    %p125 = scmp.ne.s32.totalorder %s120, %s122
    %p126 = scmp.eq.s32.totalorder %s18, 0
    %p127 = por %p125, %p126
    %p128 = scmp.ne.s32.totalorder %s120, %s122
    %p129 = scmp.eq.s32.totalorder %s23, 1
    %p130 = por %p128, %p129
    %p131 = scmp.ne.s32.totalorder %s122, %s123
    %p132 = scmp.eq.s32.totalorder %s23, 0
    %p133 = por %p131, %p132
    %p134 = scmp.ne.s32.totalorder %s122, %s123
    %p135 = scmp.eq.s32.totalorder %s24, 1
    %p136 = por %p134, %p135
    %p138 = scmp.ne.s32.totalorder %s123, %s137
    %p139 = scmp.eq.s32.totalorder %s24, 0
    %p140 = por %p138, %p139
    %s142 = sadd.s32 %s141, 1
    %p145 = scmp.eq.s32.totalorder %s18, 1
    %p146 = scmp.ne.s32.totalorder %s141, %s143
    %p147 = scmp.eq.s32.totalorder %s18, 0
    %p148 = por %p146, %p147
    %p149 = scmp.ne.s32.totalorder %s141, %s143
    %p150 = scmp.eq.s32.totalorder %s23, 1
    %p151 = por %p149, %p150
    %p152 = scmp.ne.s32.totalorder %s143, %s144
    %p153 = scmp.eq.s32.totalorder %s23, 0
    %p154 = por %p152, %p153
    %p155 = scmp.ne.s32.totalorder %s143, %s144
    %p156 = scmp.eq.s32.totalorder %s24, 1
    %p157 = por %p155, %p156
    %p159 = scmp.ne.s32.totalorder %s144, %s158
    %p160 = scmp.eq.s32.totalorder %s24, 0
    %p161 = por %p159, %p160
    %s163 = sadd.s32 %s162, 1
    %p166 = scmp.eq.s32.totalorder %s18, 1
    %p167 = scmp.ne.s32.totalorder %s162, %s164
    %p168 = scmp.eq.s32.totalorder %s18, 0
    %p169 = por %p167, %p168
    %p170 = scmp.ne.s32.totalorder %s162, %s164
    %p171 = scmp.eq.s32.totalorder %s23, 1
    %p172 = por %p170, %p171
    %p173 = scmp.ne.s32.totalorder %s164, %s165
    %p174 = scmp.eq.s32.totalorder %s23, 0
    %p175 = por %p173, %p174
    %p176 = scmp.ne.s32.totalorder %s164, %s165
    %p177 = scmp.eq.s32.totalorder %s24, 1
    %p178 = por %p176, %p177
    %p180 = scmp.ne.s32.totalorder %s165, %s179
    %p181 = scmp.eq.s32.totalorder %s24, 0
    %p182 = por %p180, %p181
    %s184 = sadd.s32 %s183, 1
    %p187 = scmp.eq.s32.totalorder %s18, 1
    %p188 = scmp.ne.s32.totalorder %s183, %s185
    %p189 = scmp.eq.s32.totalorder %s18, 0
    %p190 = por %p188, %p189
    %p191 = scmp.ne.s32.totalorder %s183, %s185
    %p192 = scmp.eq.s32.totalorder %s23, 1
    %p193 = por %p191, %p192
    %p194 = scmp.ne.s32.totalorder %s185, %s186
    %p195 = scmp.eq.s32.totalorder %s23, 0
    %p196 = por %p194, %p195
    %p197 = scmp.ne.s32.totalorder %s185, %s186
    %p198 = scmp.eq.s32.totalorder %s24, 1
    %p199 = por %p197, %p198
    %p201 = scmp.ne.s32.totalorder %s186, %s200
    %p202 = scmp.eq.s32.totalorder %s24, 0
    %p203 = por %p201, %p202
    %s205 = sadd.s32 %s204, 1
    %p208 = scmp.eq.s32.totalorder %s18, 1
    %p209 = scmp.ne.s32.totalorder %s204, %s206
    %p210 = scmp.eq.s32.totalorder %s18, 0
    %p211 = por %p209, %p210
    %p212 = scmp.ne.s32.totalorder %s204, %s206
    %p213 = scmp.eq.s32.totalorder %s23, 1
    %p214 = por %p212, %p213
    %p215 = scmp.ne.s32.totalorder %s206, %s207
    %p216 = scmp.eq.s32.totalorder %s23, 0
    %p217 = por %p215, %p216
    %p218 = scmp.ne.s32.totalorder %s206, %s207
    %p219 = scmp.eq.s32.totalorder %s24, 1
    %p220 = por %p218, %p219
    %p222 = scmp.ne.s32.totalorder %s207, %s221
    %p223 = scmp.eq.s32.totalorder %s24, 0
    %p224 = por %p222, %p223
    %s226 = sadd.s32 %s225, 1
    %p229 = scmp.eq.s32.totalorder %s18, 1
    %p230 = scmp.ne.s32.totalorder %s225, %s227
    %p231 = scmp.eq.s32.totalorder %s18, 0
    %p232 = por %p230, %p231
    %p233 = scmp.ne.s32.totalorder %s225, %s227
    %p234 = scmp.eq.s32.totalorder %s23, 1
    %p235 = por %p233, %p234
    %p236 = scmp.ne.s32.totalorder %s227, %s228
    %p237 = scmp.eq.s32.totalorder %s23, 0
    %p238 = por %p236, %p237
    %p239 = scmp.ne.s32.totalorder %s227, %s228
    %p240 = scmp.eq.s32.totalorder %s24, 1
    %p241 = por %p239, %p240
    %p243 = scmp.ne.s32.totalorder %s228, %s242
    %p244 = scmp.eq.s32.totalorder %s24, 0
    %p245 = por %p243, %p244
    %s247 = sadd.s32 %s246, 1
    %p250 = scmp.eq.s32.totalorder %s18, 1
    %p251 = scmp.ne.s32.totalorder %s246, %s248
    %p252 = scmp.eq.s32.totalorder %s18, 0
    %p253 = por %p251, %p252
    %p254 = scmp.ne.s32.totalorder %s246, %s248
    %p255 = scmp.eq.s32.totalorder %s23, 1
    %p256 = por %p254, %p255
    %p257 = scmp.ne.s32.totalorder %s248, %s249
    %p258 = scmp.eq.s32.totalorder %s23, 0
    %p259 = por %p257, %p258
    %p260 = scmp.ne.s32.totalorder %s248, %s249
    %p261 = scmp.eq.s32.totalorder %s24, 1
    %p262 = por %p260, %p261
    %p264 = scmp.ne.s32.totalorder %s249, %s263
    %p265 = scmp.eq.s32.totalorder %s24, 0
    %p266 = por %p264, %p265
    %s268 = sadd.s32 %s267, 1
    %p271 = scmp.eq.s32.totalorder %s18, 1
    %p272 = scmp.ne.s32.totalorder %s267, %s269
    %p273 = scmp.eq.s32.totalorder %s18, 0
    %p274 = por %p272, %p273
    %p275 = scmp.ne.s32.totalorder %s267, %s269
    %p276 = scmp.eq.s32.totalorder %s23, 1
    %p277 = por %p275, %p276
    %p278 = scmp.ne.s32.totalorder %s269, %s270
    %p279 = scmp.eq.s32.totalorder %s23, 0
    %p280 = por %p278, %p279
    %p281 = scmp.ne.s32.totalorder %s269, %s270
    %p282 = scmp.eq.s32.totalorder %s24, 1
    %p283 = por %p281, %p282
    %p285 = scmp.ne.s32.totalorder %s270, %s284
    %p286 = scmp.eq.s32.totalorder %s24, 0
    %p287 = por %p285, %p286
    %s288 = ssub.s32 %s18, %s25
    %p289 = scmp.eq.s32.totalorder %s288, 0
    %s291 = sadd.s32 %s290, 1
    %s292 = scalar_select %p289, %s290, %s291
    %p295 = pneg %p289
    %p296 = scmp.eq.s32.totalorder %s18, 1
    %p297 = por %p295, %p296
    %p298 = scmp.ne.s32.totalorder %s290, %s293
    %p299 = scmp.eq.s32.totalorder %s18, 0
    %p300 = por %p298, %p299
    %p301 = scmp.ne.s32.totalorder %s290, %s293
    %p302 = scmp.eq.s32.totalorder %s23, 1
    %p303 = por %p301, %p302
    %p304 = scmp.ne.s32.totalorder %s293, %s294
    %p305 = scmp.eq.s32.totalorder %s23, 0
    %p306 = por %p304, %p305
    %p307 = scmp.ne.s32.totalorder %s293, %s294
    %p308 = scmp.eq.s32.totalorder %s24, 1
    %p309 = por %p307, %p308
    %p311 = scmp.ne.s32.totalorder %s294, %s310
    %p312 = scmp.eq.s32.totalorder %s24, 0
    %p313 = por %p311, %p312
    %p314 = scmp.le.s32.totalorder 1, %s18
    %p315 = scmp.lt.s32.totalorder %s18, 3
    %p316 = pnand %p314, %p315
    %p317 = pneg %p316
    // Predicated region
    $region9: #{codem2_forward_nhwc.1} parent=5 // pred_check
      _
    $region10: #{codem2_forward_nhwc.1} parent=5 // pred_check_branch
      %319 = sbr.rel (%p316) target = $region12
    $region11: #{codem2_forward_nhwc.1} parent=5 // pred_region
      %s320 = ssub.s32 %s18, 1
      // Predicated region
      $region13: #{codem2_forward_nhwc.1} parent=11 // pred_check
        %p321 = pneg %p91
      $region14: #{codem2_forward_nhwc.1} parent=11 // pred_check_branch
        %323 = sbr.rel (%p321) target = $region16
      $region15: #{codem2_forward_nhwc.1} parent=11 // pred_region
        _
      $region16: #{codem2_forward_nhwc.1} parent=11 // pred_fallthru
        _
      // Predicated region
      $region17: #{codem2_forward_nhwc.1} parent=11 // pred_check
        %p324 = pneg %p112
      $region18: #{codem2_forward_nhwc.1} parent=11 // pred_check_branch
        %326 = sbr.rel (%p324) target = $region20
      $region19: #{codem2_forward_nhwc.1} parent=11 // pred_region
        _
      $region20: #{codem2_forward_nhwc.1} parent=11 // pred_fallthru
        _
      // Predicated region
      $region21: #{codem2_forward_nhwc.1} parent=11 // pred_check
        %p327 = pneg %p133
      $region22: #{codem2_forward_nhwc.1} parent=11 // pred_check_branch
        %329 = sbr.rel (%p327) target = $region24
      $region23: #{codem2_forward_nhwc.1} parent=11 // pred_region
        _
      $region24: #{codem2_forward_nhwc.1} parent=11 // pred_fallthru
        _
      // Predicated region
      $region25: #{codem2_forward_nhwc.1} parent=11 // pred_check
        %p330 = pneg %p154
      $region26: #{codem2_forward_nhwc.1} parent=11 // pred_check_branch
        %332 = sbr.rel (%p330) target = $region28
      $region27: #{codem2_forward_nhwc.1} parent=11 // pred_region
        _
      $region28: #{codem2_forward_nhwc.1} parent=11 // pred_fallthru
        _
      // Predicated region
      $region29: #{codem2_forward_nhwc.1} parent=11 // pred_check
        %p333 = pneg %p175
      $region30: #{codem2_forward_nhwc.1} parent=11 // pred_check_branch
        %335 = sbr.rel (%p333) target = $region32
      $region31: #{codem2_forward_nhwc.1} parent=11 // pred_region
        _
      $region32: #{codem2_forward_nhwc.1} parent=11 // pred_fallthru
        _
      // Predicated region
      $region33: #{codem2_forward_nhwc.1} parent=11 // pred_check
        %p336 = pneg %p196
      $region34: #{codem2_forward_nhwc.1} parent=11 // pred_check_branch
        %338 = sbr.rel (%p336) target = $region36
      $region35: #{codem2_forward_nhwc.1} parent=11 // pred_region
        _
      $region36: #{codem2_forward_nhwc.1} parent=11 // pred_fallthru
        _
      // Predicated region
      $region37: #{codem2_forward_nhwc.1} parent=11 // pred_check
        %p339 = pneg %p217
      $region38: #{codem2_forward_nhwc.1} parent=11 // pred_check_branch
        %341 = sbr.rel (%p339) target = $region40
      $region39: #{codem2_forward_nhwc.1} parent=11 // pred_region
        _
      $region40: #{codem2_forward_nhwc.1} parent=11 // pred_fallthru
        _
      // Predicated region
      $region41: #{codem2_forward_nhwc.1} parent=11 // pred_check
        %p342 = pneg %p238
      $region42: #{codem2_forward_nhwc.1} parent=11 // pred_check_branch
        %344 = sbr.rel (%p342) target = $region44
      $region43: #{codem2_forward_nhwc.1} parent=11 // pred_region
        _
      $region44: #{codem2_forward_nhwc.1} parent=11 // pred_fallthru
        _
      // Predicated region
      $region45: #{codem2_forward_nhwc.1} parent=11 // pred_check
        %p345 = pneg %p259
      $region46: #{codem2_forward_nhwc.1} parent=11 // pred_check_branch
        %347 = sbr.rel (%p345) target = $region48
      $region47: #{codem2_forward_nhwc.1} parent=11 // pred_region
        _
      $region48: #{codem2_forward_nhwc.1} parent=11 // pred_fallthru
        _
      // Predicated region
      $region49: #{codem2_forward_nhwc.1} parent=11 // pred_check
        %p348 = pneg %p280
      $region50: #{codem2_forward_nhwc.1} parent=11 // pred_check_branch
        %350 = sbr.rel (%p348) target = $region52
      $region51: #{codem2_forward_nhwc.1} parent=11 // pred_region
        _
      $region52: #{codem2_forward_nhwc.1} parent=11 // pred_fallthru
        _
    $region12: #{codem2_forward_nhwc.1} parent=5 // pred_fallthru
      _
    %p351 = scmp.lt.s32.totalorder %s18, 2
    // Predicated region
    $region53: #{codem2_forward_nhwc.1} parent=5 // pred_check
      %p352 = pneg %p351
    $region54: #{codem2_forward_nhwc.1} parent=5 // pred_check_branch
      %354 = sbr.rel (%p352) target = $region56
    $region55: #{codem2_forward_nhwc.1} parent=5 // pred_region
      // Predicated region
      $region57: #{codem2_forward_nhwc.1} parent=55 // pred_check
        %p355 = pneg %p38
      $region58: #{codem2_forward_nhwc.1} parent=55 // pred_check_branch
        %357 = sbr.rel (%p355) target = $region60
      $region59: #{codem2_forward_nhwc.1} parent=55 // pred_region
        %p358 = scmp.lt.s32.totalorder %s18, 1
        %s359 = scalar_select %p358, %s18, 1
        %s360 = smul.addr %s359, 32
        %s361 = smul.addr %s360, 4
        %s362 = scalar_lea.vmem %s0, %s361
      $region60: #{codem2_forward_nhwc.1} parent=55 // pred_fallthru
        _
      // Predicated region
      $region61: #{codem2_forward_nhwc.1} parent=55 // pred_check
        %p363 = pneg %p64
      $region62: #{codem2_forward_nhwc.1} parent=55 // pred_check_branch
        %365 = sbr.rel (%p363) target = $region64
      $region63: #{codem2_forward_nhwc.1} parent=55 // pred_region
        %p366 = scmp.lt.s32.totalorder %s18, 1
        %s367 = scalar_select %p366, %s18, 1
        %s368 = smul.addr %s367, 32
        %s369 = smul.addr %s368, 4
        %s370 = scalar_lea.vmem %s1, %s369
      $region64: #{codem2_forward_nhwc.1} parent=55 // pred_fallthru
        _
    $region56: #{codem2_forward_nhwc.1} parent=5 // pred_fallthru
      _
    %p371 = scmp.le.s32.totalorder 1, %s18
    %p372 = scmp.lt.s32.totalorder %s18, 3
    %p373 = pnand %p371, %p372
    %p374 = pneg %p373
    // Predicated region
    $region65: #{codem2_forward_nhwc.1} parent=5 // pred_check
      _
    $region66: #{codem2_forward_nhwc.1} parent=5 // pred_check_branch
      %376 = sbr.rel (%p373) target = $region68
    $region67: #{codem2_forward_nhwc.1} parent=5 // pred_region
      %s377 = ssub.s32 %s18, 1
      %p378 = scmp.lt.s32.totalorder %s23, 1
      %s379 = scalar_select %p378, %s23, 1
      %s380 = smul.addr %s379, 32
      %s381 = smul.addr %s380, 4
      %s382 = scalar_lea.vmem %s0, %s381
      %p383 = pneg %p44
      %p384 = pneg %p41
      %p385 = scmp.lt.s32.totalorder %s23, 1
      %s386 = scalar_select %p385, %s23, 1
      %s387 = smul.addr %s386, 32
      %s388 = smul.addr %s387, 4
      %s389 = scalar_lea.vmem %s1, %s388
      %p390 = pneg %p70
      %p391 = pneg %p67
      %p392 = pneg %p91
      %p393 = pneg %p88
      %p394 = pneg %p112
      %p395 = pneg %p109
      %p396 = pneg %p133
      %p397 = pneg %p130
      %p398 = pneg %p154
      %p399 = pneg %p151
      %p400 = pneg %p175
      %p401 = pneg %p172
      %p402 = pneg %p196
      %p403 = pneg %p193
      %p404 = pneg %p217
      %p405 = pneg %p214
      %p406 = pneg %p238
      %p407 = pneg %p235
      %p408 = pneg %p259
      %p409 = pneg %p256
      %p410 = pneg %p280
      %p411 = pneg %p277
      %p412 = pneg %p306
      %p413 = pneg %p303
      %p414 = scmp.lt.s32.totalorder %s23, 1
      %s415 = scalar_select %p414, %s23, 1
      %s416 = smul.addr %s415, 2
      %s417 = smul.addr %s416, 8
      %s418 = scalar_lea.vmem %s12, %s417
      %p419 = scmp.lt.s32.totalorder %s23, 1
      %s420 = scalar_select %p419, %s23, 1
      %s421 = smul.addr %s420, 32
      %s422 = smul.addr %s421, 4
      %s423 = scalar_lea.vmem %s0, %s422
      %p424 = scmp.lt.s32.totalorder %s23, 1
      %s425 = scalar_select %p424, %s23, 1
      %s426 = smul.addr %s425, 32
      %s427 = smul.addr %s426, 4
      %s428 = scalar_lea.vmem %s1, %s427
      %p429 = scmp.lt.s32.totalorder %s23, 1
      %s430 = scalar_select %p429, %s23, 1
      %s431 = smul.addr %s430, 2
      %s432 = smul.addr %s431, 8
      %s433 = scalar_lea.vmem %s12, %s432
      %v435 = vld [vmem:[%s423] sm:$0xf]
      %v436 = vld [vmem:[%s423 + $0x4] sm:$0xf]
      %v437 = vld [vmem:[%s423 + $0x8] sm:$0xf]
      %v438 = vld [vmem:[%s423 + $0xc] sm:$0xf]
      %v439 = vld [vmem:[%s423 + $0x10] sm:$0xf]
      %v440 = vld [vmem:[%s423 + $0x14] sm:$0xf]
      %v441 = vld [vmem:[%s423 + $0x18] sm:$0xf]
      %v442 = vld [vmem:[%s423 + $0x1c] sm:$0xf]
      %v443 = vld [vmem:[%s423 + $0x20] sm:$0xf]
      %v444 = vld [vmem:[%s423 + $0x24] sm:$0xf]
      %v445 = vld [vmem:[%s423 + $0x28] sm:$0xf]
      %v446 = vld [vmem:[%s423 + $0x2c] sm:$0xf]
      %v447 = vld [vmem:[%s423 + $0x30] sm:$0xf]
      %v448 = vld [vmem:[%s423 + $0x34] sm:$0xf]
      %v449 = vld [vmem:[%s423 + $0x38] sm:$0xf]
      %v450 = vld [vmem:[%s423 + $0x3c] sm:$0xf]
      %v451 = vld [vmem:[%s423 + $0x40] sm:$0xf]
      %v452 = vld [vmem:[%s423 + $0x44] sm:$0xf]
      %v453 = vld [vmem:[%s423 + $0x48] sm:$0xf]
      %v454 = vld [vmem:[%s423 + $0x4c] sm:$0xf]
      %v455 = vld [vmem:[%s423 + $0x50] sm:$0xf]
      %v456 = vld [vmem:[%s423 + $0x54] sm:$0xf]
      %v457 = vld [vmem:[%s423 + $0x58] sm:$0xf]
      %v458 = vld [vmem:[%s423 + $0x5c] sm:$0xf]
      %v459 = vld [vmem:[%s423 + $0x60] sm:$0xf]
      %v460 = vld [vmem:[%s423 + $0x64] sm:$0xf]
      %v461 = vld [vmem:[%s423 + $0x68] sm:$0xf]
      %v462 = vld [vmem:[%s423 + $0x6c] sm:$0xf]
      %v463 = vld [vmem:[%s423 + $0x70] sm:$0xf]
      %v464 = vld [vmem:[%s423 + $0x74] sm:$0xf]
      %v465 = vld [vmem:[%s423 + $0x78] sm:$0xf]
      %v466 = vld [vmem:[%s423 + $0x7c] sm:$0xf]
      %v467 = vld [vmem:[%s428] sm:$0xf]
      %v468 = vld [vmem:[%s428 + $0x4] sm:$0xf]
      %v469 = vld [vmem:[%s428 + $0x8] sm:$0xf]
      %v470 = vld [vmem:[%s428 + $0xc] sm:$0xf]
      %v471 = vld [vmem:[%s428 + $0x10] sm:$0xf]
      %v472 = vld [vmem:[%s428 + $0x14] sm:$0xf]
      %v473 = vld [vmem:[%s428 + $0x18] sm:$0xf]
      %v474 = vld [vmem:[%s428 + $0x1c] sm:$0xf]
      %v475 = vld [vmem:[%s428 + $0x20] sm:$0xf]
      %v476 = vld [vmem:[%s428 + $0x24] sm:$0xf]
      %v477 = vld [vmem:[%s428 + $0x28] sm:$0xf]
      %v478 = vld [vmem:[%s428 + $0x2c] sm:$0xf]
      %v479 = vld [vmem:[%s428 + $0x30] sm:$0xf]
      %v480 = vld [vmem:[%s428 + $0x34] sm:$0xf]
      %v481 = vld [vmem:[%s428 + $0x38] sm:$0xf]
      %v482 = vld [vmem:[%s428 + $0x3c] sm:$0xf]
      %v483 = vld [vmem:[%s428 + $0x40] sm:$0xf]
      %v484 = vld [vmem:[%s428 + $0x44] sm:$0xf]
      %v485 = vld [vmem:[%s428 + $0x48] sm:$0xf]
      %v486 = vld [vmem:[%s428 + $0x4c] sm:$0xf]
      %v487 = vld [vmem:[%s428 + $0x50] sm:$0xf]
      %v488 = vld [vmem:[%s428 + $0x54] sm:$0xf]
      %v489 = vld [vmem:[%s428 + $0x58] sm:$0xf]
      %v490 = vld [vmem:[%s428 + $0x5c] sm:$0xf]
      %v491 = vld [vmem:[%s428 + $0x60] sm:$0xf]
      %v492 = vld [vmem:[%s428 + $0x64] sm:$0xf]
      %v493 = vld [vmem:[%s428 + $0x68] sm:$0xf]
      %v494 = vld [vmem:[%s428 + $0x6c] sm:$0xf]
      %v495 = vld [vmem:[%s428 + $0x70] sm:$0xf]
      %v496 = vld [vmem:[%s428 + $0x74] sm:$0xf]
      %v497 = vld [vmem:[%s428 + $0x78] sm:$0xf]
      %v498 = vld [vmem:[%s428 + $0x7c] sm:$0xf]
      %v531 = vunpack.c.l.b16 %v435
      %v532 = vunpack.c.l.b16 %v436
      %v533 = vunpack.c.l.b16 %v437
      %v534 = vunpack.c.l.b16 %v438
      %v535 = vunpack.c.l.b16 %v439
      %v536 = vunpack.c.l.b16 %v440
      %v537 = vunpack.c.l.b16 %v441
      %v538 = vunpack.c.l.b16 %v442
      %v539 = vunpack.c.l.b16 %v443
      %v540 = vunpack.c.l.b16 %v444
      %v541 = vunpack.c.l.b16 %v445
      %v542 = vunpack.c.l.b16 %v446
      %v543 = vunpack.c.l.b16 %v447
      %v544 = vunpack.c.l.b16 %v448
      %v545 = vunpack.c.l.b16 %v449
      %v546 = vunpack.c.l.b16 %v450
      %v547 = vunpack.c.l.b16 %v451
      %v548 = vunpack.c.l.b16 %v452
      %v549 = vunpack.c.l.b16 %v453
      %v550 = vunpack.c.l.b16 %v454
      %v551 = vunpack.c.l.b16 %v455
      %v552 = vunpack.c.l.b16 %v456
      %v553 = vunpack.c.l.b16 %v457
      %v554 = vunpack.c.l.b16 %v458
      %v555 = vunpack.c.l.b16 %v459
      %v556 = vunpack.c.l.b16 %v460
      %v557 = vunpack.c.l.b16 %v461
      %v558 = vunpack.c.l.b16 %v462
      %v559 = vunpack.c.l.b16 %v463
      %v560 = vunpack.c.l.b16 %v464
      %v561 = vunpack.c.l.b16 %v465
      %v562 = vunpack.c.l.b16 %v466
      %v563 = vpack.c.b16 %v532, %v531
      %v564 = vpack.c.b16 %v534, %v533
      %v565 = vpack.c.b16 %v536, %v535
      %v566 = vpack.c.b16 %v538, %v537
      %v567 = vpack.c.b16 %v540, %v539
      %v568 = vpack.c.b16 %v542, %v541
      %v569 = vpack.c.b16 %v544, %v543
      %v570 = vpack.c.b16 %v546, %v545
      %v571 = vpack.c.b16 %v548, %v547
      %v572 = vpack.c.b16 %v550, %v549
      %v573 = vpack.c.b16 %v552, %v551
      %v574 = vpack.c.b16 %v554, %v553
      %v575 = vpack.c.b16 %v556, %v555
      %v576 = vpack.c.b16 %v558, %v557
      %v577 = vpack.c.b16 %v560, %v559
      %v578 = vpack.c.b16 %v562, %v561
      %v611 = vunpack.c.l.b16 %v467
      %v612 = vunpack.c.l.b16 %v468
      %v613 = vunpack.c.l.b16 %v469
      %v614 = vunpack.c.l.b16 %v470
      %v615 = vunpack.c.l.b16 %v471
      %v616 = vunpack.c.l.b16 %v472
      %v617 = vunpack.c.l.b16 %v473
      %v618 = vunpack.c.l.b16 %v474
      %v619 = vunpack.c.l.b16 %v475
      %v620 = vunpack.c.l.b16 %v476
      %v621 = vunpack.c.l.b16 %v477
      %v622 = vunpack.c.l.b16 %v478
      %v623 = vunpack.c.l.b16 %v479
      %v624 = vunpack.c.l.b16 %v480
      %v625 = vunpack.c.l.b16 %v481
      %v626 = vunpack.c.l.b16 %v482
      %v627 = vunpack.c.l.b16 %v483
      %v628 = vunpack.c.l.b16 %v484
      %v629 = vunpack.c.l.b16 %v485
      %v630 = vunpack.c.l.b16 %v486
      %v631 = vunpack.c.l.b16 %v487
      %v632 = vunpack.c.l.b16 %v488
      %v633 = vunpack.c.l.b16 %v489
      %v634 = vunpack.c.l.b16 %v490
      %v635 = vunpack.c.l.b16 %v491
      %v636 = vunpack.c.l.b16 %v492
      %v637 = vunpack.c.l.b16 %v493
      %v638 = vunpack.c.l.b16 %v494
      %v639 = vunpack.c.l.b16 %v495
      %v640 = vunpack.c.l.b16 %v496
      %v641 = vunpack.c.l.b16 %v497
      %v642 = vunpack.c.l.b16 %v498
      %v643 = vpack.c.b16 %v612, %v611
      %v644 = vpack.c.b16 %v614, %v613
      %v645 = vpack.c.b16 %v616, %v615
      %v646 = vpack.c.b16 %v618, %v617
      %v647 = vpack.c.b16 %v620, %v619
      %v648 = vpack.c.b16 %v622, %v621
      %v649 = vpack.c.b16 %v624, %v623
      %v650 = vpack.c.b16 %v626, %v625
      %v651 = vpack.c.b16 %v628, %v627
      %v652 = vpack.c.b16 %v630, %v629
      %v653 = vpack.c.b16 %v632, %v631
      %v654 = vpack.c.b16 %v634, %v633
      %v655 = vpack.c.b16 %v636, %v635
      %v656 = vpack.c.b16 %v638, %v637
      %v657 = vpack.c.b16 %v640, %v639
      %v658 = vpack.c.b16 %v642, %v641
      %659 = vrot.lane.b32.xlu0 %v643, 4
      %v660 = vpop.permute.xlu0 %659
      %661 = vrot.lane.b32.xlu0 %v644, 4
      %v662 = vpop.permute.xlu0 %661
      %663 = vrot.lane.b32.xlu0 %v645, 4
      %v664 = vpop.permute.xlu0 %663
      %665 = vrot.lane.b32.xlu0 %v646, 4
      %v666 = vpop.permute.xlu0 %665
      %667 = vrot.lane.b32.xlu0 %v647, 4
      %v668 = vpop.permute.xlu0 %667
      %669 = vrot.lane.b32.xlu0 %v648, 4
      %v670 = vpop.permute.xlu0 %669
      %671 = vrot.lane.b32.xlu0 %v649, 4
      %v672 = vpop.permute.xlu0 %671
      %673 = vrot.lane.b32.xlu0 %v650, 4
      %v674 = vpop.permute.xlu0 %673
      %675 = vrot.lane.b32.xlu0 %v651, 4
      %v676 = vpop.permute.xlu0 %675
      %677 = vrot.lane.b32.xlu0 %v652, 4
      %v678 = vpop.permute.xlu0 %677
      %679 = vrot.lane.b32.xlu0 %v653, 4
      %v680 = vpop.permute.xlu0 %679
      %681 = vrot.lane.b32.xlu0 %v654, 4
      %v682 = vpop.permute.xlu0 %681
      %683 = vrot.lane.b32.xlu0 %v655, 4
      %v684 = vpop.permute.xlu0 %683
      %685 = vrot.lane.b32.xlu0 %v656, 4
      %v686 = vpop.permute.xlu0 %685
      %687 = vrot.lane.b32.xlu0 %v657, 4
      %v688 = vpop.permute.xlu0 %687
      %689 = vrot.lane.b32.xlu0 %v658, 4
      %v690 = vpop.permute.xlu0 %689
      %vm691 = vcmask 31744
      %v694 = vsel %vm691, %v563, %v660
      %v697 = vsel %vm691, %v564, %v662
      %v700 = vsel %vm691, %v565, %v664
      %v703 = vsel %vm691, %v566, %v666
      %v706 = vsel %vm691, %v567, %v668
      %v709 = vsel %vm691, %v568, %v670
      %v712 = vsel %vm691, %v569, %v672
      %v715 = vsel %vm691, %v570, %v674
      %v718 = vsel %vm691, %v571, %v676
      %v721 = vsel %vm691, %v572, %v678
      %v724 = vsel %vm691, %v573, %v680
      %v727 = vsel %vm691, %v574, %v682
      %v730 = vsel %vm691, %v575, %v684
      %v733 = vsel %vm691, %v576, %v686
      %v736 = vsel %vm691, %v577, %v688
      %v739 = vsel %vm691, %v578, %v690
      %v740 = vshrl.u32 %v694, 16
      %v742 = vrot.slane %v740, 7
      %v743 = vshll.u32 %v694, 16
      %v745 = vor.u32 %v742, %v743
      %v746 = vshrl.u32 %v697, 16
      %v748 = vrot.slane %v746, 7
      %v749 = vshll.u32 %v697, 16
      %v751 = vor.u32 %v748, %v749
      %v752 = vshrl.u32 %v700, 16
      %v754 = vrot.slane %v752, 7
      %v755 = vshll.u32 %v700, 16
      %v757 = vor.u32 %v754, %v755
      %v758 = vshrl.u32 %v703, 16
      %v760 = vrot.slane %v758, 7
      %v761 = vshll.u32 %v703, 16
      %v763 = vor.u32 %v760, %v761
      %v764 = vshrl.u32 %v706, 16
      %v766 = vrot.slane %v764, 7
      %v767 = vshll.u32 %v706, 16
      %v769 = vor.u32 %v766, %v767
      %v770 = vshrl.u32 %v709, 16
      %v772 = vrot.slane %v770, 7
      %v773 = vshll.u32 %v709, 16
      %v775 = vor.u32 %v772, %v773
      %v776 = vshrl.u32 %v712, 16
      %v778 = vrot.slane %v776, 7
      %v779 = vshll.u32 %v712, 16
      %v781 = vor.u32 %v778, %v779
      %v782 = vshrl.u32 %v715, 16
      %v784 = vrot.slane %v782, 7
      %v785 = vshll.u32 %v715, 16
      %v787 = vor.u32 %v784, %v785
      %v788 = vshrl.u32 %v718, 16
      %v790 = vrot.slane %v788, 7
      %v791 = vshll.u32 %v718, 16
      %v793 = vor.u32 %v790, %v791
      %v794 = vshrl.u32 %v721, 16
      %v796 = vrot.slane %v794, 7
      %v797 = vshll.u32 %v721, 16
      %v799 = vor.u32 %v796, %v797
      %v800 = vshrl.u32 %v724, 16
      %v802 = vrot.slane %v800, 7
      %v803 = vshll.u32 %v724, 16
      %v805 = vor.u32 %v802, %v803
      %v806 = vshrl.u32 %v727, 16
      %v808 = vrot.slane %v806, 7
      %v809 = vshll.u32 %v727, 16
      %v811 = vor.u32 %v808, %v809
      %v812 = vshrl.u32 %v730, 16
      %v814 = vrot.slane %v812, 7
      %v815 = vshll.u32 %v730, 16
      %v817 = vor.u32 %v814, %v815
      %v818 = vshrl.u32 %v733, 16
      %v820 = vrot.slane %v818, 7
      %v821 = vshll.u32 %v733, 16
      %v823 = vor.u32 %v820, %v821
      %v824 = vshrl.u32 %v736, 16
      %v826 = vrot.slane %v824, 7
      %v827 = vshll.u32 %v736, 16
      %v829 = vor.u32 %v826, %v827
      %v830 = vshrl.u32 %v739, 16
      %v832 = vrot.slane %v830, 7
      %v833 = vshll.u32 %v739, 16
      %v835 = vor.u32 %v832, %v833
      %vm852 = vcmask 1040384
      %vm853 = vsmask.f32 256
      %vm854 = vmand %vm852, %vm853
      %v855 = vsel %vm854, 0, %v745
      %v856 = vsel %vm854, 0, %v751
      %v857 = vsel %vm854, 0, %v757
      %v858 = vsel %vm854, 0, %v763
      %v859 = vsel %vm854, 0, %v769
      %v860 = vsel %vm854, 0, %v775
      %v861 = vsel %vm854, 0, %v781
      %v862 = vsel %vm854, 0, %v787
      %v863 = vsel %vm854, 0, %v793
      %v864 = vsel %vm854, 0, %v799
      %v865 = vsel %vm854, 0, %v805
      %v866 = vsel %vm854, 0, %v811
      %v867 = vsel %vm854, 0, %v817
      %v868 = vsel %vm854, 0, %v823
      %v869 = vsel %vm854, 0, %v829
      %v870 = vsel %vm854, 0, %v835
      %v871 = vrot.slane %v743, 1
      %v872 = vor.u32 %v740, %v871
      %v873 = vrot.slane %v749, 1
      %v874 = vor.u32 %v746, %v873
      %v875 = vrot.slane %v755, 1
      %v876 = vor.u32 %v752, %v875
      %v877 = vrot.slane %v761, 1
      %v878 = vor.u32 %v758, %v877
      %v879 = vrot.slane %v767, 1
      %v880 = vor.u32 %v764, %v879
      %v881 = vrot.slane %v773, 1
      %v882 = vor.u32 %v770, %v881
      %v883 = vrot.slane %v779, 1
      %v884 = vor.u32 %v776, %v883
      %v885 = vrot.slane %v785, 1
      %v886 = vor.u32 %v782, %v885
      %v887 = vrot.slane %v791, 1
      %v888 = vor.u32 %v788, %v887
      %v889 = vrot.slane %v797, 1
      %v890 = vor.u32 %v794, %v889
      %v891 = vrot.slane %v803, 1
      %v892 = vor.u32 %v800, %v891
      %v893 = vrot.slane %v809, 1
      %v894 = vor.u32 %v806, %v893
      %v895 = vrot.slane %v815, 1
      %v896 = vor.u32 %v812, %v895
      %v897 = vrot.slane %v821, 1
      %v898 = vor.u32 %v818, %v897
      %v899 = vrot.slane %v827, 1
      %v900 = vor.u32 %v824, %v899
      %v901 = vrot.slane %v833, 1
      %v902 = vor.u32 %v830, %v901
      %vm919 = vcmask 1047552
      %vm920 = vsmask.f32 7424
      %vm921 = vmand %vm919, %vm920
      %v922 = vsel %vm921, %v872, 0
      %v923 = vsel %vm921, %v874, 0
      %v924 = vsel %vm921, %v876, 0
      %v925 = vsel %vm921, %v878, 0
      %v926 = vsel %vm921, %v880, 0
      %v927 = vsel %vm921, %v882, 0
      %v928 = vsel %vm921, %v884, 0
      %v929 = vsel %vm921, %v886, 0
      %v930 = vsel %vm921, %v888, 0
      %v931 = vsel %vm921, %v890, 0
      %v932 = vsel %vm921, %v892, 0
      %v933 = vsel %vm921, %v894, 0
      %v934 = vsel %vm921, %v896, 0
      %v935 = vsel %vm921, %v898, 0
      %v936 = vsel %vm921, %v900, 0
      %v937 = vsel %vm921, %v902, 0
      %954 = vrot.lane.b32.xlu0 %v694, 8
      %v955 = vpop.permute.xlu0 %954
      %956 = vrot.lane.b32.xlu0 %v697, 8
      %v957 = vpop.permute.xlu0 %956
      %958 = vrot.lane.b32.xlu0 %v700, 8
      %v959 = vpop.permute.xlu0 %958
      %960 = vrot.lane.b32.xlu0 %v703, 8
      %v961 = vpop.permute.xlu0 %960
      %962 = vrot.lane.b32.xlu0 %v706, 8
      %v963 = vpop.permute.xlu0 %962
      %964 = vrot.lane.b32.xlu0 %v709, 8
      %v965 = vpop.permute.xlu0 %964
      %966 = vrot.lane.b32.xlu0 %v712, 8
      %v967 = vpop.permute.xlu0 %966
      %968 = vrot.lane.b32.xlu0 %v715, 8
      %v969 = vpop.permute.xlu0 %968
      %970 = vrot.lane.b32.xlu0 %v718, 8
      %v971 = vpop.permute.xlu0 %970
      %972 = vrot.lane.b32.xlu0 %v721, 8
      %v973 = vpop.permute.xlu0 %972
      %974 = vrot.lane.b32.xlu0 %v724, 8
      %v975 = vpop.permute.xlu0 %974
      %976 = vrot.lane.b32.xlu0 %v727, 8
      %v977 = vpop.permute.xlu0 %976
      %978 = vrot.lane.b32.xlu0 %v730, 8
      %v979 = vpop.permute.xlu0 %978
      %980 = vrot.lane.b32.xlu0 %v733, 8
      %v981 = vpop.permute.xlu0 %980
      %982 = vrot.lane.b32.xlu0 %v736, 8
      %v983 = vpop.permute.xlu0 %982
      %984 = vrot.lane.b32.xlu0 %v739, 8
      %v985 = vpop.permute.xlu0 %984
      %1002 = vrot.lane.b32.xlu0 %v922, 16
      %v1003 = vpop.permute.xlu0 %1002
      %1004 = vrot.lane.b32.xlu0 %v923, 16
      %v1005 = vpop.permute.xlu0 %1004
      %1006 = vrot.lane.b32.xlu0 %v924, 16
      %v1007 = vpop.permute.xlu0 %1006
      %1008 = vrot.lane.b32.xlu0 %v925, 16
      %v1009 = vpop.permute.xlu0 %1008
      %1010 = vrot.lane.b32.xlu0 %v926, 16
      %v1011 = vpop.permute.xlu0 %1010
      %1012 = vrot.lane.b32.xlu0 %v927, 16
      %v1013 = vpop.permute.xlu0 %1012
      %1014 = vrot.lane.b32.xlu0 %v928, 16
      %v1015 = vpop.permute.xlu0 %1014
      %1016 = vrot.lane.b32.xlu0 %v929, 16
      %v1017 = vpop.permute.xlu0 %1016
      %1018 = vrot.lane.b32.xlu0 %v930, 16
      %v1019 = vpop.permute.xlu0 %1018
      %1020 = vrot.lane.b32.xlu0 %v931, 16
      %v1021 = vpop.permute.xlu0 %1020
      %1022 = vrot.lane.b32.xlu0 %v932, 16
      %v1023 = vpop.permute.xlu0 %1022
      %1024 = vrot.lane.b32.xlu0 %v933, 16
      %v1025 = vpop.permute.xlu0 %1024
      %1026 = vrot.lane.b32.xlu0 %v934, 16
      %v1027 = vpop.permute.xlu0 %1026
      %1028 = vrot.lane.b32.xlu0 %v935, 16
      %v1029 = vpop.permute.xlu0 %1028
      %1030 = vrot.lane.b32.xlu0 %v936, 16
      %v1031 = vpop.permute.xlu0 %1030
      %1032 = vrot.lane.b32.xlu0 %v937, 16
      %v1033 = vpop.permute.xlu0 %1032
      %vm1034 = vcmask 64512
      %v1037 = vsel %vm1034, %v855, %v955
      %v1040 = vsel %vm1034, %v856, %v957
      %v1043 = vsel %vm1034, %v857, %v959
      %v1046 = vsel %vm1034, %v858, %v961
      %v1049 = vsel %vm1034, %v859, %v963
      %v1052 = vsel %vm1034, %v860, %v965
      %v1055 = vsel %vm1034, %v861, %v967
      %v1058 = vsel %vm1034, %v862, %v969
      %v1061 = vsel %vm1034, %v863, %v971
      %v1064 = vsel %vm1034, %v864, %v973
      %v1067 = vsel %vm1034, %v865, %v975
      %v1070 = vsel %vm1034, %v866, %v977
      %v1073 = vsel %vm1034, %v867, %v979
      %v1076 = vsel %vm1034, %v868, %v981
      %v1079 = vsel %vm1034, %v869, %v983
      %v1082 = vsel %vm1034, %v870, %v985
      %vm1083 = vcmask 130048
      %v1085 = vsel %vm1083, %v1037, %v1003
      %v1087 = vsel %vm1083, %v1040, %v1005
      %v1089 = vsel %vm1083, %v1043, %v1007
      %v1091 = vsel %vm1083, %v1046, %v1009
      %v1093 = vsel %vm1083, %v1049, %v1011
      %v1095 = vsel %vm1083, %v1052, %v1013
      %v1097 = vsel %vm1083, %v1055, %v1015
      %v1099 = vsel %vm1083, %v1058, %v1017
      %v1101 = vsel %vm1083, %v1061, %v1019
      %v1103 = vsel %vm1083, %v1064, %v1021
      %v1105 = vsel %vm1083, %v1067, %v1023
      %v1107 = vsel %vm1083, %v1070, %v1025
      %v1109 = vsel %vm1083, %v1073, %v1027
      %v1111 = vsel %vm1083, %v1076, %v1029
      %v1113 = vsel %vm1083, %v1079, %v1031
      %v1115 = vsel %vm1083, %v1082, %v1033
      %s1116 = scalar_lea.vmem %s2, 12
      %v1117 = vld [vmem:[%s1116] sm:$0xf]
      %v1118 = vld [vmem:[%s1116 + $0x4] sm:$0xf]
      %v1119 = vld [vmem:[%s1116 + $0x8] sm:$0xf]
      %v1123 = vunpack.c.l.b16 %v1117
      %v1124 = vunpack.c.l.b16 %v1118
      %v1125 = vunpack.c.l.b16 %v1119
      %v1126 = vpack.c.b16 %v1124, %v1123
      %v1127 = vpack.c.b16 %v1125, %v1125
      %vm1129 = vcmask 195584
      %v1130 = vsel %vm1129, %v1085, 0
      %v1132 = vsel %vm1129, %v1087, 0
      %v1134 = vsel %vm1129, %v1089, 0
      %v1136 = vsel %vm1129, %v1091, 0
      %v1138 = vsel %vm1129, %v1093, 0
      %v1140 = vsel %vm1129, %v1095, 0
      %v1142 = vsel %vm1129, %v1097, 0
      %v1144 = vsel %vm1129, %v1099, 0
      %v1146 = vsel %vm1129, %v1101, 0
      %v1148 = vsel %vm1129, %v1103, 0
      %v1150 = vsel %vm1129, %v1105, 0
      %v1152 = vsel %vm1129, %v1107, 0
      %v1154 = vsel %vm1129, %v1109, 0
      %v1156 = vsel %vm1129, %v1111, 0
      %v1158 = vsel %vm1129, %v1113, 0
      %v1160 = vsel %vm1129, %v1115, 0
      %vm1162 = vcmask 1043456
      %v1164 = vsel %vm1162, %v1127, 0
      %1166 = vmatprep.subr.bf16.mxu0 0
      %1167 = vmatpush1.bf16.msra.mxu0 0
      %1168 = vmatprep.subr.bf16.mxu0 0
      %1169 = vmatpush1.bf16.msra.mxu0 0
      %1170 = vmatprep.subr.bf16.mxu0 0
      %1171 = vmatpush1.bf16.msra.mxu0 0
      %1172 = vmatprep.subr.bf16.mxu0 0
      %1173 = vmatpush1.bf16.msra.mxu0 0
      %1174 = vmatprep.subr.bf16.mxu0 0
      %1175 = vmatpush1.bf16.msra.mxu0 0
      %1176 = vmatprep.subr.bf16.mxu0 0
      %1177 = vmatpush1.bf16.msra.mxu0 0
      %1178 = vmatprep.subr.bf16.mxu0 0
      %1179 = vmatpush1.bf16.msra.mxu0 %v1164
      %1180 = vmatprep.subr.bf16.mxu0 0
      %1181 = vmatpush1.bf16.msra.mxu0 %v1126
      %1182 = vmatprep.subr.bf16.mxu0 0
      %1183 = vmatpush2.bf16.msra.mxu0 0
      %1184 = vmatprep.subr.bf16.mxu0 0
      %1185 = vmatpush2.bf16.msra.mxu0 0
      %1186 = vmatprep.subr.bf16.mxu0 0
      %1187 = vmatpush2.bf16.msra.mxu0 0
      %1188 = vmatprep.subr.bf16.mxu0 0
      %1189 = vmatpush2.bf16.msra.mxu0 0
      %1190 = vmatprep.subr.bf16.mxu0 0
      %1191 = vmatpush2.bf16.msra.mxu0 0
      %1192 = vmatprep.subr.bf16.mxu0 0
      %1193 = vmatpush2.bf16.msra.mxu0 0
      %1194 = vmatprep.subr.bf16.mxu0 0
      %1195 = vmatpush2.bf16.msra.mxu0 0
      %1196 = vmatprep.subr.bf16.mxu0 0
      %1197 = vmatpush2.bf16.msra.mxu0 0
      %1198 = vmatprep.mubr.bf16.mxu0 0
      %1199 = vmatmul.mubr.bf16.gmra.mxu0 %v1130
      %v1200 = vpop.f32.mrf.mxu0
      %v1201 = vadd.f32 0.0, %v1200
      %v1202 = vpop.f32.mrf.mxu0
      %v1203 = vpop.f32.mrf.mxu0
      %v1204 = vadd.f32 0.0, %v1203
      %v1205 = vpop.f32.mrf.mxu0
      %1206 = vmatprep.mubr.bf16.mxu0 0
      %1207 = vmatmul.mubr.bf16.gmra.mxu0 %v1132
      %v1208 = vpop.f32.mrf.mxu0
      %v1209 = vadd.f32 0.0, %v1208
      %v1210 = vpop.f32.mrf.mxu0
      %v1211 = vpop.f32.mrf.mxu0
      %v1212 = vadd.f32 0.0, %v1211
      %v1213 = vpop.f32.mrf.mxu0
      %1214 = vmatprep.mubr.bf16.mxu0 0
      %1215 = vmatmul.mubr.bf16.gmra.mxu0 %v1134
      %v1216 = vpop.f32.mrf.mxu0
      %v1217 = vadd.f32 0.0, %v1216
      %v1218 = vpop.f32.mrf.mxu0
      %v1219 = vpop.f32.mrf.mxu0
      %v1220 = vadd.f32 0.0, %v1219
      %v1221 = vpop.f32.mrf.mxu0
      %1222 = vmatprep.mubr.bf16.mxu0 0
      %1223 = vmatmul.mubr.bf16.gmra.mxu0 %v1136
      %v1224 = vpop.f32.mrf.mxu0
      %v1225 = vadd.f32 0.0, %v1224
      %v1226 = vpop.f32.mrf.mxu0
      %v1227 = vpop.f32.mrf.mxu0
      %v1228 = vadd.f32 0.0, %v1227
      %v1229 = vpop.f32.mrf.mxu0
      %1230 = vmatprep.mubr.bf16.mxu0 0
      %1231 = vmatmul.mubr.bf16.gmra.mxu0 %v1138
      %v1232 = vpop.f32.mrf.mxu0
      %v1233 = vadd.f32 0.0, %v1232
      %v1234 = vpop.f32.mrf.mxu0
      %v1235 = vpop.f32.mrf.mxu0
      %v1236 = vadd.f32 0.0, %v1235
      %v1237 = vpop.f32.mrf.mxu0
      %1238 = vmatprep.mubr.bf16.mxu0 0
      %1239 = vmatmul.mubr.bf16.gmra.mxu0 %v1140
      %v1240 = vpop.f32.mrf.mxu0
      %v1241 = vadd.f32 0.0, %v1240
      %v1242 = vpop.f32.mrf.mxu0
      %v1243 = vpop.f32.mrf.mxu0
      %v1244 = vadd.f32 0.0, %v1243
      %v1245 = vpop.f32.mrf.mxu0
      %1246 = vmatprep.mubr.bf16.mxu0 0
      %1247 = vmatmul.mubr.bf16.gmra.mxu0 %v1142
      %v1248 = vpop.f32.mrf.mxu0
      %v1249 = vadd.f32 0.0, %v1248
      %v1250 = vpop.f32.mrf.mxu0
      %v1251 = vpop.f32.mrf.mxu0
      %v1252 = vadd.f32 0.0, %v1251
      %v1253 = vpop.f32.mrf.mxu0
      %1254 = vmatprep.mubr.bf16.mxu0 0
      %1255 = vmatmul.mubr.bf16.gmra.mxu0 %v1144
      %v1256 = vpop.f32.mrf.mxu0
      %v1257 = vadd.f32 0.0, %v1256
      %v1258 = vpop.f32.mrf.mxu0
      %v1259 = vpop.f32.mrf.mxu0
      %v1260 = vadd.f32 0.0, %v1259
      %v1261 = vpop.f32.mrf.mxu0
      %1262 = vmatprep.mubr.bf16.mxu0 0
      %1263 = vmatmul.mubr.bf16.gmra.mxu0 %v1146
      %v1264 = vpop.f32.mrf.mxu0
      %v1265 = vadd.f32 0.0, %v1264
      %v1266 = vpop.f32.mrf.mxu0
      %v1267 = vpop.f32.mrf.mxu0
      %v1268 = vadd.f32 0.0, %v1267
      %v1269 = vpop.f32.mrf.mxu0
      %1270 = vmatprep.mubr.bf16.mxu0 0
      %1271 = vmatmul.mubr.bf16.gmra.mxu0 %v1148
      %v1272 = vpop.f32.mrf.mxu0
      %v1273 = vadd.f32 0.0, %v1272
      %v1274 = vpop.f32.mrf.mxu0
      %v1275 = vpop.f32.mrf.mxu0
      %v1276 = vadd.f32 0.0, %v1275
      %v1277 = vpop.f32.mrf.mxu0
      %1278 = vmatprep.mubr.bf16.mxu0 0
      %1279 = vmatmul.mubr.bf16.gmra.mxu0 %v1150
      %v1280 = vpop.f32.mrf.mxu0
      %v1281 = vadd.f32 0.0, %v1280
      %v1282 = vpop.f32.mrf.mxu0
      %v1283 = vpop.f32.mrf.mxu0
      %v1284 = vadd.f32 0.0, %v1283
      %v1285 = vpop.f32.mrf.mxu0
      %1286 = vmatprep.mubr.bf16.mxu0 0
      %1287 = vmatmul.mubr.bf16.gmra.mxu0 %v1152
      %v1288 = vpop.f32.mrf.mxu0
      %v1289 = vadd.f32 0.0, %v1288
      %v1290 = vpop.f32.mrf.mxu0
      %v1291 = vpop.f32.mrf.mxu0
      %v1292 = vadd.f32 0.0, %v1291
      %v1293 = vpop.f32.mrf.mxu0
      %1294 = vmatprep.mubr.bf16.mxu0 0
      %1295 = vmatmul.mubr.bf16.gmra.mxu0 %v1154
      %v1296 = vpop.f32.mrf.mxu0
      %v1297 = vadd.f32 0.0, %v1296
      %v1298 = vpop.f32.mrf.mxu0
      %v1299 = vpop.f32.mrf.mxu0
      %v1300 = vadd.f32 0.0, %v1299
      %v1301 = vpop.f32.mrf.mxu0
      %1302 = vmatprep.mubr.bf16.mxu0 0
      %1303 = vmatmul.mubr.bf16.gmra.mxu0 %v1156
      %v1304 = vpop.f32.mrf.mxu0
      %v1305 = vadd.f32 0.0, %v1304
      %v1306 = vpop.f32.mrf.mxu0
      %v1307 = vpop.f32.mrf.mxu0
      %v1308 = vadd.f32 0.0, %v1307
      %v1309 = vpop.f32.mrf.mxu0
      %1310 = vmatprep.mubr.bf16.mxu0 0
      %1311 = vmatmul.mubr.bf16.gmra.mxu0 %v1158
      %v1312 = vpop.f32.mrf.mxu0
      %v1313 = vadd.f32 0.0, %v1312
      %v1314 = vpop.f32.mrf.mxu0
      %v1315 = vpop.f32.mrf.mxu0
      %v1316 = vadd.f32 0.0, %v1315
      %v1317 = vpop.f32.mrf.mxu0
      %1318 = vmatprep.mubr.bf16.mxu0 0
      %1319 = vmatmul.mubr.bf16.gmra.mxu0 %v1160
      %v1320 = vpop.f32.mrf.mxu0
      %v1321 = vadd.f32 0.0, %v1320
      %v1322 = vpop.f32.mrf.mxu0
      %v1323 = vpop.f32.mrf.mxu0
      %v1324 = vadd.f32 0.0, %v1323
      %v1325 = vpop.f32.mrf.mxu0
      %1326 = vdwg.mxu0
      %1327 = vst.msk [vmem:[#allocation2] sm:$0xff] %vm1034, %v1201
      %1328 = vst.msk [vmem:[#allocation2 + $0x8] sm:$0xff] %vm1034, %v1204
      %1329 = vst.msk [vmem:[#allocation2 + $0x10] sm:$0xff] %vm1034, %v1209
      %1330 = vst.msk [vmem:[#allocation2 + $0x18] sm:$0xff] %vm1034, %v1212
      %1331 = vst.msk [vmem:[#allocation2 + $0x20] sm:$0xff] %vm1034, %v1217
      %1332 = vst.msk [vmem:[#allocation2 + $0x28] sm:$0xff] %vm1034, %v1220
      %1333 = vst.msk [vmem:[#allocation2 + $0x30] sm:$0xff] %vm1034, %v1225
      %1334 = vst.msk [vmem:[#allocation2 + $0x38] sm:$0xff] %vm1034, %v1228
      %1335 = vst.msk [vmem:[#allocation2 + $0x40] sm:$0xff] %vm1034, %v1233
      %1336 = vst.msk [vmem:[#allocation2 + $0x48] sm:$0xff] %vm1034, %v1236
      %1337 = vst.msk [vmem:[#allocation2 + $0x50] sm:$0xff] %vm1034, %v1241
      %1338 = vst.msk [vmem:[#allocation2 + $0x58] sm:$0xff] %vm1034, %v1244
      %1339 = vst.msk [vmem:[#allocation2 + $0x60] sm:$0xff] %vm1034, %v1249
      %1340 = vst.msk [vmem:[#allocation2 + $0x68] sm:$0xff] %vm1034, %v1252
      %1341 = vst.msk [vmem:[#allocation2 + $0x70] sm:$0xff] %vm1034, %v1257
      %1342 = vst.msk [vmem:[#allocation2 + $0x78] sm:$0xff] %vm1034, %v1260
      %1343 = vst.msk [vmem:[#allocation2 + $0x80] sm:$0xff] %vm1034, %v1265
      %1344 = vst.msk [vmem:[#allocation2 + $0x88] sm:$0xff] %vm1034, %v1268
      %1345 = vst.msk [vmem:[#allocation2 + $0x90] sm:$0xff] %vm1034, %v1273
      %1346 = vst.msk [vmem:[#allocation2 + $0x98] sm:$0xff] %vm1034, %v1276
      %1347 = vst.msk [vmem:[#allocation2 + $0xa0] sm:$0xff] %vm1034, %v1281
      %1348 = vst.msk [vmem:[#allocation2 + $0xa8] sm:$0xff] %vm1034, %v1284
      %1349 = vst.msk [vmem:[#allocation2 + $0xb0] sm:$0xff] %vm1034, %v1289
      %1350 = vst.msk [vmem:[#allocation2 + $0xb8] sm:$0xff] %vm1034, %v1292
      %1351 = vst.msk [vmem:[#allocation2 + $0xc0] sm:$0xff] %vm1034, %v1297
      %1352 = vst.msk [vmem:[#allocation2 + $0xc8] sm:$0xff] %vm1034, %v1300
      %1353 = vst.msk [vmem:[#allocation2 + $0xd0] sm:$0xff] %vm1034, %v1305
      %1354 = vst.msk [vmem:[#allocation2 + $0xd8] sm:$0xff] %vm1034, %v1308
      %1355 = vst.msk [vmem:[#allocation2 + $0xe0] sm:$0xff] %vm1034, %v1313
      %1356 = vst.msk [vmem:[#allocation2 + $0xe8] sm:$0xff] %vm1034, %v1316
      %1357 = vst.msk [vmem:[#allocation2 + $0xf0] sm:$0xff] %vm1034, %v1321
      %1358 = vst.msk [vmem:[#allocation2 + $0xf8] sm:$0xff] %vm1034, %v1324
      %v1359 = vld [vmem:[%s2] sm:$0xf]
      %v1360 = vld [vmem:[%s2 + $0x4] sm:$0xf]
      %v1361 = vld [vmem:[%s2 + $0x8] sm:$0xf]
      %v1365 = vunpack.c.l.b16 %v1359
      %v1366 = vunpack.c.l.b16 %v1360
      %v1367 = vunpack.c.l.b16 %v1361
      %v1368 = vpack.c.b16 %v1366, %v1365
      %v1369 = vpack.c.b16 %v1367, %v1367
      %v1372 = vsel %vm1162, %v1369, 0
      %1374 = vmatprep.subr.bf16.mxu0 0
      %1375 = vmatpush1.bf16.msra.mxu0 0
      %1376 = vmatprep.subr.bf16.mxu0 0
      %1377 = vmatpush1.bf16.msra.mxu0 0
      %1378 = vmatprep.subr.bf16.mxu0 0
      %1379 = vmatpush1.bf16.msra.mxu0 0
      %1380 = vmatprep.subr.bf16.mxu0 0
      %1381 = vmatpush1.bf16.msra.mxu0 0
      %1382 = vmatprep.subr.bf16.mxu0 0
      %1383 = vmatpush1.bf16.msra.mxu0 0
      %1384 = vmatprep.subr.bf16.mxu0 0
      %1385 = vmatpush1.bf16.msra.mxu0 0
      %1386 = vmatprep.subr.bf16.mxu0 0
      %1387 = vmatpush1.bf16.msra.mxu0 %v1372
      %1388 = vmatprep.subr.bf16.mxu0 0
      %1389 = vmatpush1.bf16.msra.mxu0 %v1368
      %1390 = vmatprep.subr.bf16.mxu0 0
      %1391 = vmatpush2.bf16.msra.mxu0 0
      %1392 = vmatprep.subr.bf16.mxu0 0
      %1393 = vmatpush2.bf16.msra.mxu0 0
      %1394 = vmatprep.subr.bf16.mxu0 0
      %1395 = vmatpush2.bf16.msra.mxu0 0
      %1396 = vmatprep.subr.bf16.mxu0 0
      %1397 = vmatpush2.bf16.msra.mxu0 0
      %1398 = vmatprep.subr.bf16.mxu0 0
      %1399 = vmatpush2.bf16.msra.mxu0 0
      %1400 = vmatprep.subr.bf16.mxu0 0
      %1401 = vmatpush2.bf16.msra.mxu0 0
      %1402 = vmatprep.subr.bf16.mxu0 0
      %1403 = vmatpush2.bf16.msra.mxu0 0
      %1404 = vmatprep.subr.bf16.mxu0 0
      %1405 = vmatpush2.bf16.msra.mxu0 0
      %1406 = vmatprep.mubr.bf16.mxu0 0
      %1407 = vmatmul.mubr.bf16.gmra.mxu0 %v1130
      %v1408 = vpop.f32.mrf.mxu0
      %v1409 = vadd.f32 0.0, %v1408
      %v1410 = vpop.f32.mrf.mxu0
      %v1411 = vpop.f32.mrf.mxu0
      %v1412 = vadd.f32 0.0, %v1411
      %v1413 = vpop.f32.mrf.mxu0
      %1414 = vmatprep.mubr.bf16.mxu0 0
      %1415 = vmatmul.mubr.bf16.gmra.mxu0 %v1132
      %v1416 = vpop.f32.mrf.mxu0
      %v1417 = vadd.f32 0.0, %v1416
      %v1418 = vpop.f32.mrf.mxu0
      %v1419 = vpop.f32.mrf.mxu0
      %v1420 = vadd.f32 0.0, %v1419
      %v1421 = vpop.f32.mrf.mxu0
      %1422 = vmatprep.mubr.bf16.mxu0 0
      %1423 = vmatmul.mubr.bf16.gmra.mxu0 %v1134
      %v1424 = vpop.f32.mrf.mxu0
      %v1425 = vadd.f32 0.0, %v1424
      %v1426 = vpop.f32.mrf.mxu0
      %v1427 = vpop.f32.mrf.mxu0
      %v1428 = vadd.f32 0.0, %v1427
      %v1429 = vpop.f32.mrf.mxu0
      %1430 = vmatprep.mubr.bf16.mxu0 0
      %1431 = vmatmul.mubr.bf16.gmra.mxu0 %v1136
      %v1432 = vpop.f32.mrf.mxu0
      %v1433 = vadd.f32 0.0, %v1432
      %v1434 = vpop.f32.mrf.mxu0
      %v1435 = vpop.f32.mrf.mxu0
      %v1436 = vadd.f32 0.0, %v1435
      %v1437 = vpop.f32.mrf.mxu0
      %1438 = vmatprep.mubr.bf16.mxu0 0
      %1439 = vmatmul.mubr.bf16.gmra.mxu0 %v1138
      %v1440 = vpop.f32.mrf.mxu0
      %v1441 = vadd.f32 0.0, %v1440
      %v1442 = vpop.f32.mrf.mxu0
      %v1443 = vpop.f32.mrf.mxu0
      %v1444 = vadd.f32 0.0, %v1443
      %v1445 = vpop.f32.mrf.mxu0
      %1446 = vmatprep.mubr.bf16.mxu0 0
      %1447 = vmatmul.mubr.bf16.gmra.mxu0 %v1140
      %v1448 = vpop.f32.mrf.mxu0
      %v1449 = vadd.f32 0.0, %v1448
      %v1450 = vpop.f32.mrf.mxu0
      %v1451 = vpop.f32.mrf.mxu0
      %v1452 = vadd.f32 0.0, %v1451
      %v1453 = vpop.f32.mrf.mxu0
      %1454 = vmatprep.mubr.bf16.mxu0 0
      %1455 = vmatmul.mubr.bf16.gmra.mxu0 %v1142
      %v1456 = vpop.f32.mrf.mxu0
      %v1457 = vadd.f32 0.0, %v1456
      %v1458 = vpop.f32.mrf.mxu0
      %v1459 = vpop.f32.mrf.mxu0
      %v1460 = vadd.f32 0.0, %v1459
      %v1461 = vpop.f32.mrf.mxu0
      %1462 = vmatprep.mubr.bf16.mxu0 0
      %1463 = vmatmul.mubr.bf16.gmra.mxu0 %v1144
      %v1464 = vpop.f32.mrf.mxu0
      %v1465 = vadd.f32 0.0, %v1464
      %v1466 = vpop.f32.mrf.mxu0
      %v1467 = vpop.f32.mrf.mxu0
      %v1468 = vadd.f32 0.0, %v1467
      %v1469 = vpop.f32.mrf.mxu0
      %1470 = vmatprep.mubr.bf16.mxu0 0
      %1471 = vmatmul.mubr.bf16.gmra.mxu0 %v1146
      %v1472 = vpop.f32.mrf.mxu0
      %v1473 = vadd.f32 0.0, %v1472
      %v1474 = vpop.f32.mrf.mxu0
      %v1475 = vpop.f32.mrf.mxu0
      %v1476 = vadd.f32 0.0, %v1475
      %v1477 = vpop.f32.mrf.mxu0
      %1478 = vmatprep.mubr.bf16.mxu0 0
      %1479 = vmatmul.mubr.bf16.gmra.mxu0 %v1148
      %v1480 = vpop.f32.mrf.mxu0
      %v1481 = vadd.f32 0.0, %v1480
      %v1482 = vpop.f32.mrf.mxu0
      %v1483 = vpop.f32.mrf.mxu0
      %v1484 = vadd.f32 0.0, %v1483
      %v1485 = vpop.f32.mrf.mxu0
      %1486 = vmatprep.mubr.bf16.mxu0 0
      %1487 = vmatmul.mubr.bf16.gmra.mxu0 %v1150
      %v1488 = vpop.f32.mrf.mxu0
      %v1489 = vadd.f32 0.0, %v1488
      %v1490 = vpop.f32.mrf.mxu0
      %v1491 = vpop.f32.mrf.mxu0
      %v1492 = vadd.f32 0.0, %v1491
      %v1493 = vpop.f32.mrf.mxu0
      %1494 = vmatprep.mubr.bf16.mxu0 0
      %1495 = vmatmul.mubr.bf16.gmra.mxu0 %v1152
      %v1496 = vpop.f32.mrf.mxu0
      %v1497 = vadd.f32 0.0, %v1496
      %v1498 = vpop.f32.mrf.mxu0
      %v1499 = vpop.f32.mrf.mxu0
      %v1500 = vadd.f32 0.0, %v1499
      %v1501 = vpop.f32.mrf.mxu0
      %1502 = vmatprep.mubr.bf16.mxu0 0
      %1503 = vmatmul.mubr.bf16.gmra.mxu0 %v1154
      %v1504 = vpop.f32.mrf.mxu0
      %v1505 = vadd.f32 0.0, %v1504
      %v1506 = vpop.f32.mrf.mxu0
      %v1507 = vpop.f32.mrf.mxu0
      %v1508 = vadd.f32 0.0, %v1507
      %v1509 = vpop.f32.mrf.mxu0
      %1510 = vmatprep.mubr.bf16.mxu0 0
      %1511 = vmatmul.mubr.bf16.gmra.mxu0 %v1156
      %v1512 = vpop.f32.mrf.mxu0
      %v1513 = vadd.f32 0.0, %v1512
      %v1514 = vpop.f32.mrf.mxu0
      %v1515 = vpop.f32.mrf.mxu0
      %v1516 = vadd.f32 0.0, %v1515
      %v1517 = vpop.f32.mrf.mxu0
      %1518 = vmatprep.mubr.bf16.mxu0 0
      %1519 = vmatmul.mubr.bf16.gmra.mxu0 %v1158
      %v1520 = vpop.f32.mrf.mxu0
      %v1521 = vadd.f32 0.0, %v1520
      %v1522 = vpop.f32.mrf.mxu0
      %v1523 = vpop.f32.mrf.mxu0
      %v1524 = vadd.f32 0.0, %v1523
      %v1525 = vpop.f32.mrf.mxu0
      %1526 = vmatprep.mubr.bf16.mxu0 0
      %1527 = vmatmul.mubr.bf16.gmra.mxu0 %v1160
      %v1528 = vpop.f32.mrf.mxu0
      %v1529 = vpop.f32.mrf.mxu0
      %v1530 = vpop.f32.mrf.mxu0
      %v1531 = vpop.f32.mrf.mxu0
      %1532 = vdwg.mxu0
      %s1533 = scalar_lea.vmem [#allocation2], 16
      %v1534 = vld [vmem:[%s1533] sm:$0xff]
      %v1535 = vld [vmem:[%s1533 + $0x8] sm:$0xff]
      %v1536 = vld [vmem:[%s1533 + $0x10] sm:$0xff]
      %v1537 = vld [vmem:[%s1533 + $0x18] sm:$0xff]
      %v1538 = vld [vmem:[%s1533 + $0x20] sm:$0xff]
      %v1539 = vld [vmem:[%s1533 + $0x28] sm:$0xff]
      %v1540 = vld [vmem:[%s1533 + $0x30] sm:$0xff]
      %v1541 = vld [vmem:[%s1533 + $0x38] sm:$0xff]
      %v1542 = vld [vmem:[%s1533 + $0x40] sm:$0xff]
      %v1543 = vld [vmem:[%s1533 + $0x48] sm:$0xff]
      %v1544 = vld [vmem:[%s1533 + $0x50] sm:$0xff]
      %v1545 = vld [vmem:[%s1533 + $0x58] sm:$0xff]
      %v1546 = vld [vmem:[%s1533 + $0x60] sm:$0xff]
      %v1547 = vld [vmem:[%s1533 + $0x68] sm:$0xff]
      %v1548 = vld [vmem:[%s1533 + $0x70] sm:$0xff]
      %v1549 = vld [vmem:[%s1533 + $0x78] sm:$0xff]
      %v1550 = vld [vmem:[%s1533 + $0x80] sm:$0xff]
      %v1551 = vld [vmem:[%s1533 + $0x88] sm:$0xff]
      %v1552 = vld [vmem:[%s1533 + $0x90] sm:$0xff]
      %v1553 = vld [vmem:[%s1533 + $0x98] sm:$0xff]
      %v1554 = vld [vmem:[%s1533 + $0xa0] sm:$0xff]
      %v1555 = vld [vmem:[%s1533 + $0xa8] sm:$0xff]
      %v1556 = vld [vmem:[%s1533 + $0xb0] sm:$0xff]
      %v1557 = vld [vmem:[%s1533 + $0xb8] sm:$0xff]
      %v1558 = vld [vmem:[%s1533 + $0xc0] sm:$0xff]
      %v1559 = vld [vmem:[%s1533 + $0xc8] sm:$0xff]
      %v1560 = vld [vmem:[%s1533 + $0xd0] sm:$0xff]
      %v1561 = vld [vmem:[%s1533 + $0xd8] sm:$0xff]
      %v1562 = vld [vmem:[%s1533 + $0xe0] sm:$0xff]
      %v1563 = vld [vmem:[%s1533 + $0xe8] sm:$0xff]
      %v1564 = vadd.f32 %v1534, %v1409
      %v1565 = vadd.f32 %v1535, %v1412
      %v1566 = vadd.f32 %v1536, %v1417
      %v1567 = vadd.f32 %v1537, %v1420
      %v1568 = vadd.f32 %v1538, %v1425
      %v1569 = vadd.f32 %v1539, %v1428
      %v1570 = vadd.f32 %v1540, %v1433
      %v1571 = vadd.f32 %v1541, %v1436
      %v1572 = vadd.f32 %v1542, %v1441
      %v1573 = vadd.f32 %v1543, %v1444
      %v1574 = vadd.f32 %v1544, %v1449
      %v1575 = vadd.f32 %v1545, %v1452
      %v1576 = vadd.f32 %v1546, %v1457
      %v1577 = vadd.f32 %v1547, %v1460
      %v1578 = vadd.f32 %v1548, %v1465
      %v1579 = vadd.f32 %v1549, %v1468
      %v1580 = vadd.f32 %v1550, %v1473
      %v1581 = vadd.f32 %v1551, %v1476
      %v1582 = vadd.f32 %v1552, %v1481
      %v1583 = vadd.f32 %v1553, %v1484
      %v1584 = vadd.f32 %v1554, %v1489
      %v1585 = vadd.f32 %v1555, %v1492
      %v1586 = vadd.f32 %v1556, %v1497
      %v1587 = vadd.f32 %v1557, %v1500
      %v1588 = vadd.f32 %v1558, %v1505
      %v1589 = vadd.f32 %v1559, %v1508
      %v1590 = vadd.f32 %v1560, %v1513
      %v1591 = vadd.f32 %v1561, %v1516
      %v1592 = vadd.f32 %v1562, %v1521
      %v1593 = vadd.f32 %v1563, %v1524
      %1594 = vst.msk [vmem:[%s1533] sm:$0xff] %vm1034, %v1564
      %1595 = vst.msk [vmem:[%s1533 + $0x8] sm:$0xff] %vm1034, %v1565
      %1596 = vst.msk [vmem:[%s1533 + $0x10] sm:$0xff] %vm1034, %v1566
      %1597 = vst.msk [vmem:[%s1533 + $0x18] sm:$0xff] %vm1034, %v1567
      %1598 = vst.msk [vmem:[%s1533 + $0x20] sm:$0xff] %vm1034, %v1568
      %1599 = vst.msk [vmem:[%s1533 + $0x28] sm:$0xff] %vm1034, %v1569
      %1600 = vst.msk [vmem:[%s1533 + $0x30] sm:$0xff] %vm1034, %v1570
      %1601 = vst.msk [vmem:[%s1533 + $0x38] sm:$0xff] %vm1034, %v1571
      %1602 = vst.msk [vmem:[%s1533 + $0x40] sm:$0xff] %vm1034, %v1572
      %1603 = vst.msk [vmem:[%s1533 + $0x48] sm:$0xff] %vm1034, %v1573
      %1604 = vst.msk [vmem:[%s1533 + $0x50] sm:$0xff] %vm1034, %v1574
      %1605 = vst.msk [vmem:[%s1533 + $0x58] sm:$0xff] %vm1034, %v1575
      %1606 = vst.msk [vmem:[%s1533 + $0x60] sm:$0xff] %vm1034, %v1576
      %1607 = vst.msk [vmem:[%s1533 + $0x68] sm:$0xff] %vm1034, %v1577
      %1608 = vst.msk [vmem:[%s1533 + $0x70] sm:$0xff] %vm1034, %v1578
      %1609 = vst.msk [vmem:[%s1533 + $0x78] sm:$0xff] %vm1034, %v1579
      %1610 = vst.msk [vmem:[%s1533 + $0x80] sm:$0xff] %vm1034, %v1580
      %1611 = vst.msk [vmem:[%s1533 + $0x88] sm:$0xff] %vm1034, %v1581
      %1612 = vst.msk [vmem:[%s1533 + $0x90] sm:$0xff] %vm1034, %v1582
      %1613 = vst.msk [vmem:[%s1533 + $0x98] sm:$0xff] %vm1034, %v1583
      %1614 = vst.msk [vmem:[%s1533 + $0xa0] sm:$0xff] %vm1034, %v1584
      %1615 = vst.msk [vmem:[%s1533 + $0xa8] sm:$0xff] %vm1034, %v1585
      %1616 = vst.msk [vmem:[%s1533 + $0xb0] sm:$0xff] %vm1034, %v1586
      %1617 = vst.msk [vmem:[%s1533 + $0xb8] sm:$0xff] %vm1034, %v1587
      %1618 = vst.msk [vmem:[%s1533 + $0xc0] sm:$0xff] %vm1034, %v1588
      %1619 = vst.msk [vmem:[%s1533 + $0xc8] sm:$0xff] %vm1034, %v1589
      %1620 = vst.msk [vmem:[%s1533 + $0xd0] sm:$0xff] %vm1034, %v1590
      %1621 = vst.msk [vmem:[%s1533 + $0xd8] sm:$0xff] %vm1034, %v1591
      %1622 = vst.msk [vmem:[%s1533 + $0xe0] sm:$0xff] %vm1034, %v1592
      %1623 = vst.msk [vmem:[%s1533 + $0xe8] sm:$0xff] %vm1034, %v1593
      %s1624 = scalar_lea.vmem %s2, 24
      %v1625 = vld [vmem:[%s1624] sm:$0xf]
      %v1626 = vld [vmem:[%s1624 + $0x4] sm:$0xf]
      %v1627 = vld [vmem:[%s1624 + $0x8] sm:$0xf]
      %v1631 = vunpack.c.l.b16 %v1625
      %v1632 = vunpack.c.l.b16 %v1626
      %v1633 = vunpack.c.l.b16 %v1627
      %v1634 = vpack.c.b16 %v1632, %v1631
      %v1635 = vpack.c.b16 %v1633, %v1633
      %v1638 = vsel %vm1162, %v1635, 0
      %1640 = vmatprep.subr.bf16.mxu0 0
      %1641 = vmatpush1.bf16.msra.mxu0 0
      %1642 = vmatprep.subr.bf16.mxu0 0
      %1643 = vmatpush1.bf16.msra.mxu0 0
      %1644 = vmatprep.subr.bf16.mxu0 0
      %1645 = vmatpush1.bf16.msra.mxu0 0
      %1646 = vmatprep.subr.bf16.mxu0 0
      %1647 = vmatpush1.bf16.msra.mxu0 0
      %1648 = vmatprep.subr.bf16.mxu0 0
      %1649 = vmatpush1.bf16.msra.mxu0 0
      %1650 = vmatprep.subr.bf16.mxu0 0
      %1651 = vmatpush1.bf16.msra.mxu0 0
      %1652 = vmatprep.subr.bf16.mxu0 0
      %1653 = vmatpush1.bf16.msra.mxu0 %v1638
      %1654 = vmatprep.subr.bf16.mxu0 0
      %1655 = vmatpush1.bf16.msra.mxu0 %v1634
      %1656 = vmatprep.subr.bf16.mxu0 0
      %1657 = vmatpush2.bf16.msra.mxu0 0
      %1658 = vmatprep.subr.bf16.mxu0 0
      %1659 = vmatpush2.bf16.msra.mxu0 0
      %1660 = vmatprep.subr.bf16.mxu0 0
      %1661 = vmatpush2.bf16.msra.mxu0 0
      %1662 = vmatprep.subr.bf16.mxu0 0
      %1663 = vmatpush2.bf16.msra.mxu0 0
      %1664 = vmatprep.subr.bf16.mxu0 0
      %1665 = vmatpush2.bf16.msra.mxu0 0
      %1666 = vmatprep.subr.bf16.mxu0 0
      %1667 = vmatpush2.bf16.msra.mxu0 0
      %1668 = vmatprep.subr.bf16.mxu0 0
      %1669 = vmatpush2.bf16.msra.mxu0 0
      %1670 = vmatprep.subr.bf16.mxu0 0
      %1671 = vmatpush2.bf16.msra.mxu0 0
      %1672 = vmatprep.mubr.bf16.mxu0 0
      %1673 = vmatmul.mubr.bf16.gmra.mxu0 %v1130
      %v1674 = vpop.f32.mrf.mxu0
      %v1675 = vpop.f32.mrf.mxu0
      %v1676 = vpop.f32.mrf.mxu0
      %v1677 = vpop.f32.mrf.mxu0
      %1678 = vmatprep.mubr.bf16.mxu0 0
      %1679 = vmatmul.mubr.bf16.gmra.mxu0 %v1132
      %v1680 = vpop.f32.mrf.mxu0
      %v1681 = vadd.f32 0.0, %v1680
      %v1682 = vpop.f32.mrf.mxu0
      %v1683 = vpop.f32.mrf.mxu0
      %v1684 = vadd.f32 0.0, %v1683
      %v1685 = vpop.f32.mrf.mxu0
      %1686 = vmatprep.mubr.bf16.mxu0 0
      %1687 = vmatmul.mubr.bf16.gmra.mxu0 %v1134
      %v1688 = vpop.f32.mrf.mxu0
      %v1689 = vadd.f32 0.0, %v1688
      %v1690 = vpop.f32.mrf.mxu0
      %v1691 = vpop.f32.mrf.mxu0
      %v1692 = vadd.f32 0.0, %v1691
      %v1693 = vpop.f32.mrf.mxu0
      %1694 = vmatprep.mubr.bf16.mxu0 0
      %1695 = vmatmul.mubr.bf16.gmra.mxu0 %v1136
      %v1696 = vpop.f32.mrf.mxu0
      %v1697 = vadd.f32 0.0, %v1696
      %v1698 = vpop.f32.mrf.mxu0
      %v1699 = vpop.f32.mrf.mxu0
      %v1700 = vadd.f32 0.0, %v1699
      %v1701 = vpop.f32.mrf.mxu0
      %1702 = vmatprep.mubr.bf16.mxu0 0
      %1703 = vmatmul.mubr.bf16.gmra.mxu0 %v1138
      %v1704 = vpop.f32.mrf.mxu0
      %v1705 = vadd.f32 0.0, %v1704
      %v1706 = vpop.f32.mrf.mxu0
      %v1707 = vpop.f32.mrf.mxu0
      %v1708 = vadd.f32 0.0, %v1707
      %v1709 = vpop.f32.mrf.mxu0
      %1710 = vmatprep.mubr.bf16.mxu0 0
      %1711 = vmatmul.mubr.bf16.gmra.mxu0 %v1140
      %v1712 = vpop.f32.mrf.mxu0
      %v1713 = vadd.f32 0.0, %v1712
      %v1714 = vpop.f32.mrf.mxu0
      %v1715 = vpop.f32.mrf.mxu0
      %v1716 = vadd.f32 0.0, %v1715
      %v1717 = vpop.f32.mrf.mxu0
      %1718 = vmatprep.mubr.bf16.mxu0 0
      %1719 = vmatmul.mubr.bf16.gmra.mxu0 %v1142
      %v1720 = vpop.f32.mrf.mxu0
      %v1721 = vadd.f32 0.0, %v1720
      %v1722 = vpop.f32.mrf.mxu0
      %v1723 = vpop.f32.mrf.mxu0
      %v1724 = vadd.f32 0.0, %v1723
      %v1725 = vpop.f32.mrf.mxu0
      %1726 = vmatprep.mubr.bf16.mxu0 0
      %1727 = vmatmul.mubr.bf16.gmra.mxu0 %v1144
      %v1728 = vpop.f32.mrf.mxu0
      %v1729 = vadd.f32 0.0, %v1728
      %v1730 = vpop.f32.mrf.mxu0
      %v1731 = vpop.f32.mrf.mxu0
      %v1732 = vadd.f32 0.0, %v1731
      %v1733 = vpop.f32.mrf.mxu0
      %1734 = vmatprep.mubr.bf16.mxu0 0
      %1735 = vmatmul.mubr.bf16.gmra.mxu0 %v1146
      %v1736 = vpop.f32.mrf.mxu0
      %v1737 = vadd.f32 0.0, %v1736
      %v1738 = vpop.f32.mrf.mxu0
      %v1739 = vpop.f32.mrf.mxu0
      %v1740 = vadd.f32 0.0, %v1739
      %v1741 = vpop.f32.mrf.mxu0
      %1742 = vmatprep.mubr.bf16.mxu0 0
      %1743 = vmatmul.mubr.bf16.gmra.mxu0 %v1148
      %v1744 = vpop.f32.mrf.mxu0
      %v1745 = vadd.f32 0.0, %v1744
      %v1746 = vpop.f32.mrf.mxu0
      %v1747 = vpop.f32.mrf.mxu0
      %v1748 = vadd.f32 0.0, %v1747
      %v1749 = vpop.f32.mrf.mxu0
      %1750 = vmatprep.mubr.bf16.mxu0 0
      %1751 = vmatmul.mubr.bf16.gmra.mxu0 %v1150
      %v1752 = vpop.f32.mrf.mxu0
      %v1753 = vadd.f32 0.0, %v1752
      %v1754 = vpop.f32.mrf.mxu0
      %v1755 = vpop.f32.mrf.mxu0
      %v1756 = vadd.f32 0.0, %v1755
      %v1757 = vpop.f32.mrf.mxu0
      %1758 = vmatprep.mubr.bf16.mxu0 0
      %1759 = vmatmul.mubr.bf16.gmra.mxu0 %v1152
      %v1760 = vpop.f32.mrf.mxu0
      %v1761 = vadd.f32 0.0, %v1760
      %v1762 = vpop.f32.mrf.mxu0
      %v1763 = vpop.f32.mrf.mxu0
      %v1764 = vadd.f32 0.0, %v1763
      %v1765 = vpop.f32.mrf.mxu0
      %1766 = vmatprep.mubr.bf16.mxu0 0
      %1767 = vmatmul.mubr.bf16.gmra.mxu0 %v1154
      %v1768 = vpop.f32.mrf.mxu0
      %v1769 = vadd.f32 0.0, %v1768
      %v1770 = vpop.f32.mrf.mxu0
      %v1771 = vpop.f32.mrf.mxu0
      %v1772 = vadd.f32 0.0, %v1771
      %v1773 = vpop.f32.mrf.mxu0
      %1774 = vmatprep.mubr.bf16.mxu0 0
      %1775 = vmatmul.mubr.bf16.gmra.mxu0 %v1156
      %v1776 = vpop.f32.mrf.mxu0
      %v1777 = vadd.f32 0.0, %v1776
      %v1778 = vpop.f32.mrf.mxu0
      %v1779 = vpop.f32.mrf.mxu0
      %v1780 = vadd.f32 0.0, %v1779
      %v1781 = vpop.f32.mrf.mxu0
      %1782 = vmatprep.mubr.bf16.mxu0 0
      %1783 = vmatmul.mubr.bf16.gmra.mxu0 %v1158
      %v1784 = vpop.f32.mrf.mxu0
      %v1785 = vadd.f32 0.0, %v1784
      %v1786 = vpop.f32.mrf.mxu0
      %v1787 = vpop.f32.mrf.mxu0
      %v1788 = vadd.f32 0.0, %v1787
      %v1789 = vpop.f32.mrf.mxu0
      %1790 = vmatprep.mubr.bf16.mxu0 0
      %1791 = vmatmul.mubr.bf16.gmra.mxu0 %v1160
      %v1792 = vpop.f32.mrf.mxu0
      %v1793 = vadd.f32 0.0, %v1792
      %v1794 = vpop.f32.mrf.mxu0
      %v1795 = vpop.f32.mrf.mxu0
      %v1796 = vadd.f32 0.0, %v1795
      %v1797 = vpop.f32.mrf.mxu0
      %1798 = vdwg.mxu0
      %v1799 = vld [vmem:[#allocation2] sm:$0xff]
      %v1800 = vld [vmem:[#allocation2 + $0x8] sm:$0xff]
      %v1801 = vld [vmem:[#allocation2 + $0x10] sm:$0xff]
      %v1802 = vld [vmem:[#allocation2 + $0x18] sm:$0xff]
      %v1803 = vld [vmem:[#allocation2 + $0x20] sm:$0xff]
      %v1804 = vld [vmem:[#allocation2 + $0x28] sm:$0xff]
      %v1805 = vld [vmem:[#allocation2 + $0x30] sm:$0xff]
      %v1806 = vld [vmem:[#allocation2 + $0x38] sm:$0xff]
      %v1807 = vld [vmem:[#allocation2 + $0x40] sm:$0xff]
      %v1808 = vld [vmem:[#allocation2 + $0x48] sm:$0xff]
      %v1809 = vld [vmem:[#allocation2 + $0x50] sm:$0xff]
      %v1810 = vld [vmem:[#allocation2 + $0x58] sm:$0xff]
      %v1811 = vld [vmem:[#allocation2 + $0x60] sm:$0xff]
      %v1812 = vld [vmem:[#allocation2 + $0x68] sm:$0xff]
      %v1813 = vld [vmem:[#allocation2 + $0x70] sm:$0xff]
      %v1814 = vld [vmem:[#allocation2 + $0x78] sm:$0xff]
      %v1815 = vld [vmem:[#allocation2 + $0x80] sm:$0xff]
      %v1816 = vld [vmem:[#allocation2 + $0x88] sm:$0xff]
      %v1817 = vld [vmem:[#allocation2 + $0x90] sm:$0xff]
      %v1818 = vld [vmem:[#allocation2 + $0x98] sm:$0xff]
      %v1819 = vld [vmem:[#allocation2 + $0xa0] sm:$0xff]
      %v1820 = vld [vmem:[#allocation2 + $0xa8] sm:$0xff]
      %v1821 = vld [vmem:[#allocation2 + $0xb0] sm:$0xff]
      %v1822 = vld [vmem:[#allocation2 + $0xb8] sm:$0xff]
      %v1823 = vld [vmem:[#allocation2 + $0xc0] sm:$0xff]
      %v1824 = vld [vmem:[#allocation2 + $0xc8] sm:$0xff]
      %v1825 = vld [vmem:[#allocation2 + $0xd0] sm:$0xff]
      %v1826 = vld [vmem:[#allocation2 + $0xd8] sm:$0xff]
      %v1827 = vld [vmem:[#allocation2 + $0xe0] sm:$0xff]
      %v1828 = vld [vmem:[#allocation2 + $0xe8] sm:$0xff]
      %v1829 = vadd.f32 %v1799, %v1681
      %v1830 = vadd.f32 %v1800, %v1684
      %v1831 = vadd.f32 %v1801, %v1689
      %v1832 = vadd.f32 %v1802, %v1692
      %v1833 = vadd.f32 %v1803, %v1697
      %v1834 = vadd.f32 %v1804, %v1700
      %v1835 = vadd.f32 %v1805, %v1705
      %v1836 = vadd.f32 %v1806, %v1708
      %v1837 = vadd.f32 %v1807, %v1713
      %v1838 = vadd.f32 %v1808, %v1716
      %v1839 = vadd.f32 %v1809, %v1721
      %v1840 = vadd.f32 %v1810, %v1724
      %v1841 = vadd.f32 %v1811, %v1729
      %v1842 = vadd.f32 %v1812, %v1732
      %v1843 = vadd.f32 %v1813, %v1737
      %v1844 = vadd.f32 %v1814, %v1740
      %v1845 = vadd.f32 %v1815, %v1745
      %v1846 = vadd.f32 %v1816, %v1748
      %v1847 = vadd.f32 %v1817, %v1753
      %v1848 = vadd.f32 %v1818, %v1756
      %v1849 = vadd.f32 %v1819, %v1761
      %v1850 = vadd.f32 %v1820, %v1764
      %v1851 = vadd.f32 %v1821, %v1769
      %v1852 = vadd.f32 %v1822, %v1772
      %v1853 = vadd.f32 %v1823, %v1777
      %v1854 = vadd.f32 %v1824, %v1780
      %v1855 = vadd.f32 %v1825, %v1785
      %v1856 = vadd.f32 %v1826, %v1788
      %v1857 = vadd.f32 %v1827, %v1793
      %v1858 = vadd.f32 %v1828, %v1796
      %1859 = vst.msk [vmem:[#allocation2] sm:$0xff] %vm1034, %v1829
      %1860 = vst.msk [vmem:[#allocation2 + $0x8] sm:$0xff] %vm1034, %v1830
      %1861 = vst.msk [vmem:[#allocation2 + $0x10] sm:$0xff] %vm1034, %v1831
      %1862 = vst.msk [vmem:[#allocation2 + $0x18] sm:$0xff] %vm1034, %v1832
      %1863 = vst.msk [vmem:[#allocation2 + $0x20] sm:$0xff] %vm1034, %v1833
      %1864 = vst.msk [vmem:[#allocation2 + $0x28] sm:$0xff] %vm1034, %v1834
      %1865 = vst.msk [vmem:[#allocation2 + $0x30] sm:$0xff] %vm1034, %v1835
      %1866 = vst.msk [vmem:[#allocation2 + $0x38] sm:$0xff] %vm1034, %v1836
      %1867 = vst.msk [vmem:[#allocation2 + $0x40] sm:$0xff] %vm1034, %v1837
      %1868 = vst.msk [vmem:[#allocation2 + $0x48] sm:$0xff] %vm1034, %v1838
      %1869 = vst.msk [vmem:[#allocation2 + $0x50] sm:$0xff] %vm1034, %v1839
      %1870 = vst.msk [vmem:[#allocation2 + $0x58] sm:$0xff] %vm1034, %v1840
      %1871 = vst.msk [vmem:[#allocation2 + $0x60] sm:$0xff] %vm1034, %v1841
      %1872 = vst.msk [vmem:[#allocation2 + $0x68] sm:$0xff] %vm1034, %v1842
      %1873 = vst.msk [vmem:[#allocation2 + $0x70] sm:$0xff] %vm1034, %v1843
      %1874 = vst.msk [vmem:[#allocation2 + $0x78] sm:$0xff] %vm1034, %v1844
      %1875 = vst.msk [vmem:[#allocation2 + $0x80] sm:$0xff] %vm1034, %v1845
      %1876 = vst.msk [vmem:[#allocation2 + $0x88] sm:$0xff] %vm1034, %v1846
      %1877 = vst.msk [vmem:[#allocation2 + $0x90] sm:$0xff] %vm1034, %v1847
      %1878 = vst.msk [vmem:[#allocation2 + $0x98] sm:$0xff] %vm1034, %v1848
      %1879 = vst.msk [vmem:[#allocation2 + $0xa0] sm:$0xff] %vm1034, %v1849
      %1880 = vst.msk [vmem:[#allocation2 + $0xa8] sm:$0xff] %vm1034, %v1850
      %1881 = vst.msk [vmem:[#allocation2 + $0xb0] sm:$0xff] %vm1034, %v1851
      %1882 = vst.msk [vmem:[#allocation2 + $0xb8] sm:$0xff] %vm1034, %v1852
      %1883 = vst.msk [vmem:[#allocation2 + $0xc0] sm:$0xff] %vm1034, %v1853
      %1884 = vst.msk [vmem:[#allocation2 + $0xc8] sm:$0xff] %vm1034, %v1854
      %1885 = vst.msk [vmem:[#allocation2 + $0xd0] sm:$0xff] %vm1034, %v1855
      %1886 = vst.msk [vmem:[#allocation2 + $0xd8] sm:$0xff] %vm1034, %v1856
      %1887 = vst.msk [vmem:[#allocation2 + $0xe0] sm:$0xff] %vm1034, %v1857
      %1888 = vst.msk [vmem:[#allocation2 + $0xe8] sm:$0xff] %vm1034, %v1858
      %v1889 = vld [vmem:[#allocation2] sm:$0xff]
      %v1890 = vld [vmem:[#allocation2 + $0x8] sm:$0xff]
      %v1891 = vld [vmem:[#allocation2 + $0x10] sm:$0xff]
      %v1892 = vld [vmem:[#allocation2 + $0x18] sm:$0xff]
      %v1893 = vld [vmem:[#allocation2 + $0x20] sm:$0xff]
      %v1894 = vld [vmem:[#allocation2 + $0x28] sm:$0xff]
      %v1895 = vld [vmem:[#allocation2 + $0x30] sm:$0xff]
      %v1896 = vld [vmem:[#allocation2 + $0x38] sm:$0xff]
      %v1897 = vld [vmem:[#allocation2 + $0x40] sm:$0xff]
      %v1898 = vld [vmem:[#allocation2 + $0x48] sm:$0xff]
      %v1899 = vld [vmem:[#allocation2 + $0x50] sm:$0xff]
      %v1900 = vld [vmem:[#allocation2 + $0x58] sm:$0xff]
      %v1901 = vld [vmem:[#allocation2 + $0x60] sm:$0xff]
      %v1902 = vld [vmem:[#allocation2 + $0x68] sm:$0xff]
      %v1903 = vld [vmem:[#allocation2 + $0x70] sm:$0xff]
      %v1904 = vld [vmem:[#allocation2 + $0x78] sm:$0xff]
      %v1905 = vld [vmem:[#allocation2 + $0x80] sm:$0xff]
      %v1906 = vld [vmem:[#allocation2 + $0x88] sm:$0xff]
      %v1907 = vld [vmem:[#allocation2 + $0x90] sm:$0xff]
      %v1908 = vld [vmem:[#allocation2 + $0x98] sm:$0xff]
      %v1909 = vld [vmem:[#allocation2 + $0xa0] sm:$0xff]
      %v1910 = vld [vmem:[#allocation2 + $0xa8] sm:$0xff]
      %v1911 = vld [vmem:[#allocation2 + $0xb0] sm:$0xff]
      %v1912 = vld [vmem:[#allocation2 + $0xb8] sm:$0xff]
      %v1913 = vld [vmem:[#allocation2 + $0xc0] sm:$0xff]
      %v1914 = vld [vmem:[#allocation2 + $0xc8] sm:$0xff]
      %v1915 = vld [vmem:[#allocation2 + $0xd0] sm:$0xff]
      %v1916 = vld [vmem:[#allocation2 + $0xd8] sm:$0xff]
      %v1917 = vld [vmem:[#allocation2 + $0xe0] sm:$0xff]
      %v1918 = vld [vmem:[#allocation2 + $0xe8] sm:$0xff]
      %v1919 = vld [vmem:[#allocation2 + $0xf0] sm:$0xff]
      %v1920 = vld [vmem:[#allocation2 + $0xf8] sm:$0xff]
      %v1921 = vld [vmem:[%s3] sm:$0x1]
      %v1923 = vlaneseq
      %v1924 = vshrl.u32 %v1923, 7
      %v1925 = vsub.s32 0, %v1924
      %v1926 = vrot.slane %v1921, %v1925
      %v1928 = vadd.f32 %v1889, %v1926
      %v1929 = vadd.f32 %v1890, %v1926
      %v1930 = vadd.f32 %v1891, %v1926
      %v1931 = vadd.f32 %v1892, %v1926
      %v1932 = vadd.f32 %v1893, %v1926
      %v1933 = vadd.f32 %v1894, %v1926
      %v1934 = vadd.f32 %v1895, %v1926
      %v1935 = vadd.f32 %v1896, %v1926
      %v1936 = vadd.f32 %v1897, %v1926
      %v1937 = vadd.f32 %v1898, %v1926
      %v1938 = vadd.f32 %v1899, %v1926
      %v1939 = vadd.f32 %v1900, %v1926
      %v1940 = vadd.f32 %v1901, %v1926
      %v1941 = vadd.f32 %v1902, %v1926
      %v1942 = vadd.f32 %v1903, %v1926
      %v1943 = vadd.f32 %v1904, %v1926
      %v1944 = vadd.f32 %v1905, %v1926
      %v1945 = vadd.f32 %v1906, %v1926
      %v1946 = vadd.f32 %v1907, %v1926
      %v1947 = vadd.f32 %v1908, %v1926
      %v1948 = vadd.f32 %v1909, %v1926
      %v1949 = vadd.f32 %v1910, %v1926
      %v1950 = vadd.f32 %v1911, %v1926
      %v1951 = vadd.f32 %v1912, %v1926
      %v1952 = vadd.f32 %v1913, %v1926
      %v1953 = vadd.f32 %v1914, %v1926
      %v1954 = vadd.f32 %v1915, %v1926
      %v1955 = vadd.f32 %v1916, %v1926
      %v1956 = vadd.f32 %v1917, %v1926
      %v1957 = vadd.f32 %v1918, %v1926
      %v1958 = vadd.f32 %v1919, %v1926
      %v1959 = vadd.f32 %v1920, %v1926
      %v1960 = vmax.f32 %v1928, 0.0
      %v1961 = vmax.f32 %v1929, 0.0
      %v1962 = vmax.f32 %v1930, 0.0
      %v1963 = vmax.f32 %v1931, 0.0
      %v1964 = vmax.f32 %v1932, 0.0
      %v1965 = vmax.f32 %v1933, 0.0
      %v1966 = vmax.f32 %v1934, 0.0
      %v1967 = vmax.f32 %v1935, 0.0
      %v1968 = vmax.f32 %v1936, 0.0
      %v1969 = vmax.f32 %v1937, 0.0
      %v1970 = vmax.f32 %v1938, 0.0
      %v1971 = vmax.f32 %v1939, 0.0
      %v1972 = vmax.f32 %v1940, 0.0
      %v1973 = vmax.f32 %v1941, 0.0
      %v1974 = vmax.f32 %v1942, 0.0
      %v1975 = vmax.f32 %v1943, 0.0
      %v1976 = vmax.f32 %v1944, 0.0
      %v1977 = vmax.f32 %v1945, 0.0
      %v1978 = vmax.f32 %v1946, 0.0
      %v1979 = vmax.f32 %v1947, 0.0
      %v1980 = vmax.f32 %v1948, 0.0
      %v1981 = vmax.f32 %v1949, 0.0
      %v1982 = vmax.f32 %v1950, 0.0
      %v1983 = vmax.f32 %v1951, 0.0
      %v1984 = vmax.f32 %v1952, 0.0
      %v1985 = vmax.f32 %v1953, 0.0
      %v1986 = vmax.f32 %v1954, 0.0
      %v1987 = vmax.f32 %v1955, 0.0
      %v1988 = vmax.f32 %v1956, 0.0
      %v1989 = vmax.f32 %v1957, 0.0
      %v1990 = vmax.f32 %v1958, 0.0
      %v1991 = vmax.f32 %v1959, 0.0
      %v1992 = vpack.c.bf16 %v1961, %v1960
      %v1993 = vpack.c.bf16 %v1963, %v1962
      %v1994 = vpack.c.bf16 %v1965, %v1964
      %v1995 = vpack.c.bf16 %v1967, %v1966
      %v1996 = vpack.c.bf16 %v1969, %v1968
      %v1997 = vpack.c.bf16 %v1971, %v1970
      %v1998 = vpack.c.bf16 %v1973, %v1972
      %v1999 = vpack.c.bf16 %v1975, %v1974
      %v2000 = vpack.c.bf16 %v1977, %v1976
      %v2001 = vpack.c.bf16 %v1979, %v1978
      %v2002 = vpack.c.bf16 %v1981, %v1980
      %v2003 = vpack.c.bf16 %v1983, %v1982
      %v2004 = vpack.c.bf16 %v1985, %v1984
      %v2005 = vpack.c.bf16 %v1987, %v1986
      %v2006 = vpack.c.bf16 %v1989, %v1988
      %v2007 = vpack.c.bf16 %v1991, %v1990
      %v2008 = vld [vmem:[%s4] sm:$0xf]
      %v2009 = vld [vmem:[%s5] sm:$0x1]
      %v2011 = vlaneseq
      %v2012 = vshrl.u32 %v2011, 7
      %v2013 = vsub.s32 0, %v2012
      %v2014 = vrot.slane %v2009, %v2013
      %v2017 = vsel %vm1034, %v1992, 0
      %v2020 = vsel %vm1034, %v1993, 0
      %v2023 = vsel %vm1034, %v1994, 0
      %v2026 = vsel %vm1034, %v1995, 0
      %v2029 = vsel %vm1034, %v1996, 0
      %v2032 = vsel %vm1034, %v1997, 0
      %v2035 = vsel %vm1034, %v1998, 0
      %v2038 = vsel %vm1034, %v1999, 0
      %v2041 = vsel %vm1034, %v2000, 0
      %v2044 = vsel %vm1034, %v2001, 0
      %v2047 = vsel %vm1034, %v2002, 0
      %v2050 = vsel %vm1034, %v2003, 0
      %v2053 = vsel %vm1034, %v2004, 0
      %v2056 = vsel %vm1034, %v2005, 0
      %v2059 = vsel %vm1034, %v2006, 0
      %v2062 = vsel %vm1034, %v2007, 0
      %v2065 = vsel %vm1162, %v2008, 0
      %2067 = vmatprep.subr.bf16.mxu0 0
      %2068 = vmatpush1.bf16.msra.mxu0 0
      %2069 = vmatprep.subr.bf16.mxu0 0
      %2070 = vmatpush1.bf16.msra.mxu0 0
      %2071 = vmatprep.subr.bf16.mxu0 0
      %2072 = vmatpush1.bf16.msra.mxu0 0
      %2073 = vmatprep.subr.bf16.mxu0 0
      %2074 = vmatpush1.bf16.msra.mxu0 0
      %2075 = vmatprep.subr.bf16.mxu0 0
      %2076 = vmatpush1.bf16.msra.mxu0 0
      %2077 = vmatprep.subr.bf16.mxu0 0
      %2078 = vmatpush1.bf16.msra.mxu0 0
      %2079 = vmatprep.subr.bf16.mxu0 0
      %2080 = vmatpush1.bf16.msra.mxu0 0
      %2081 = vmatprep.subr.bf16.mxu0 0
      %2082 = vmatpush1.bf16.msra.mxu0 %v2065
      %2083 = vmatprep.subr.bf16.mxu0 0
      %2084 = vmatpush2.bf16.msra.mxu0 0
      %2085 = vmatprep.subr.bf16.mxu0 0
      %2086 = vmatpush2.bf16.msra.mxu0 0
      %2087 = vmatprep.subr.bf16.mxu0 0
      %2088 = vmatpush2.bf16.msra.mxu0 0
      %2089 = vmatprep.subr.bf16.mxu0 0
      %2090 = vmatpush2.bf16.msra.mxu0 0
      %2091 = vmatprep.subr.bf16.mxu0 0
      %2092 = vmatpush2.bf16.msra.mxu0 0
      %2093 = vmatprep.subr.bf16.mxu0 0
      %2094 = vmatpush2.bf16.msra.mxu0 0
      %2095 = vmatprep.subr.bf16.mxu0 0
      %2096 = vmatpush2.bf16.msra.mxu0 0
      %2097 = vmatprep.subr.bf16.mxu0 0
      %2098 = vmatpush2.bf16.msra.mxu0 0
      %2099 = vmatprep.mubr.bf16.mxu0 0
      %2100 = vmatmul.mubr.bf16.gmra.mxu0 %v2017
      %v2101 = vpop.f32.mrf.mxu0
      %v2102 = vadd.f32 %v2014, %v2101
      %v2103 = vpop.f32.mrf.mxu0
      %v2104 = vpop.f32.mrf.mxu0
      %v2105 = vadd.f32 %v2014, %v2104
      %v2106 = vpop.f32.mrf.mxu0
      %2107 = vmatprep.mubr.bf16.mxu0 0
      %2108 = vmatmul.mubr.bf16.gmra.mxu0 %v2020
      %v2109 = vpop.f32.mrf.mxu0
      %v2110 = vadd.f32 %v2014, %v2109
      %v2111 = vpop.f32.mrf.mxu0
      %v2112 = vpop.f32.mrf.mxu0
      %v2113 = vadd.f32 %v2014, %v2112
      %v2114 = vpop.f32.mrf.mxu0
      %2115 = vmatprep.mubr.bf16.mxu0 0
      %2116 = vmatmul.mubr.bf16.gmra.mxu0 %v2023
      %v2117 = vpop.f32.mrf.mxu0
      %v2118 = vadd.f32 %v2014, %v2117
      %v2119 = vpop.f32.mrf.mxu0
      %v2120 = vpop.f32.mrf.mxu0
      %v2121 = vadd.f32 %v2014, %v2120
      %v2122 = vpop.f32.mrf.mxu0
      %2123 = vmatprep.mubr.bf16.mxu0 0
      %2124 = vmatmul.mubr.bf16.gmra.mxu0 %v2026
      %v2125 = vpop.f32.mrf.mxu0
      %v2126 = vadd.f32 %v2014, %v2125
      %v2127 = vpop.f32.mrf.mxu0
      %v2128 = vpop.f32.mrf.mxu0
      %v2129 = vadd.f32 %v2014, %v2128
      %v2130 = vpop.f32.mrf.mxu0
      %2131 = vmatprep.mubr.bf16.mxu0 0
      %2132 = vmatmul.mubr.bf16.gmra.mxu0 %v2029
      %v2133 = vpop.f32.mrf.mxu0
      %v2134 = vadd.f32 %v2014, %v2133
      %v2135 = vpop.f32.mrf.mxu0
      %v2136 = vpop.f32.mrf.mxu0
      %v2137 = vadd.f32 %v2014, %v2136
      %v2138 = vpop.f32.mrf.mxu0
      %2139 = vmatprep.mubr.bf16.mxu0 0
      %2140 = vmatmul.mubr.bf16.gmra.mxu0 %v2032
      %v2141 = vpop.f32.mrf.mxu0
      %v2142 = vadd.f32 %v2014, %v2141
      %v2143 = vpop.f32.mrf.mxu0
      %v2144 = vpop.f32.mrf.mxu0
      %v2145 = vadd.f32 %v2014, %v2144
      %v2146 = vpop.f32.mrf.mxu0
      %2147 = vmatprep.mubr.bf16.mxu0 0
      %2148 = vmatmul.mubr.bf16.gmra.mxu0 %v2035
      %v2149 = vpop.f32.mrf.mxu0
      %v2150 = vadd.f32 %v2014, %v2149
      %v2151 = vpop.f32.mrf.mxu0
      %v2152 = vpop.f32.mrf.mxu0
      %v2153 = vadd.f32 %v2014, %v2152
      %v2154 = vpop.f32.mrf.mxu0
      %2155 = vmatprep.mubr.bf16.mxu0 0
      %2156 = vmatmul.mubr.bf16.gmra.mxu0 %v2038
      %v2157 = vpop.f32.mrf.mxu0
      %v2158 = vadd.f32 %v2014, %v2157
      %v2159 = vpop.f32.mrf.mxu0
      %v2160 = vpop.f32.mrf.mxu0
      %v2161 = vadd.f32 %v2014, %v2160
      %v2162 = vpop.f32.mrf.mxu0
      %2163 = vmatprep.mubr.bf16.mxu0 0
      %2164 = vmatmul.mubr.bf16.gmra.mxu0 %v2041
      %v2165 = vpop.f32.mrf.mxu0
      %v2166 = vadd.f32 %v2014, %v2165
      %v2167 = vpop.f32.mrf.mxu0
      %v2168 = vpop.f32.mrf.mxu0
      %v2169 = vadd.f32 %v2014, %v2168
      %v2170 = vpop.f32.mrf.mxu0
      %2171 = vmatprep.mubr.bf16.mxu0 0
      %2172 = vmatmul.mubr.bf16.gmra.mxu0 %v2044
      %v2173 = vpop.f32.mrf.mxu0
      %v2174 = vadd.f32 %v2014, %v2173
      %v2175 = vpop.f32.mrf.mxu0
      %v2176 = vpop.f32.mrf.mxu0
      %v2177 = vadd.f32 %v2014, %v2176
      %v2178 = vpop.f32.mrf.mxu0
      %2179 = vmatprep.mubr.bf16.mxu0 0
      %2180 = vmatmul.mubr.bf16.gmra.mxu0 %v2047
      %v2181 = vpop.f32.mrf.mxu0
      %v2182 = vadd.f32 %v2014, %v2181
      %v2183 = vpop.f32.mrf.mxu0
      %v2184 = vpop.f32.mrf.mxu0
      %v2185 = vadd.f32 %v2014, %v2184
      %v2186 = vpop.f32.mrf.mxu0
      %2187 = vmatprep.mubr.bf16.mxu0 0
      %2188 = vmatmul.mubr.bf16.gmra.mxu0 %v2050
      %v2189 = vpop.f32.mrf.mxu0
      %v2190 = vadd.f32 %v2014, %v2189
      %v2191 = vpop.f32.mrf.mxu0
      %v2192 = vpop.f32.mrf.mxu0
      %v2193 = vadd.f32 %v2014, %v2192
      %v2194 = vpop.f32.mrf.mxu0
      %2195 = vmatprep.mubr.bf16.mxu0 0
      %2196 = vmatmul.mubr.bf16.gmra.mxu0 %v2053
      %v2197 = vpop.f32.mrf.mxu0
      %v2198 = vadd.f32 %v2014, %v2197
      %v2199 = vpop.f32.mrf.mxu0
      %v2200 = vpop.f32.mrf.mxu0
      %v2201 = vadd.f32 %v2014, %v2200
      %v2202 = vpop.f32.mrf.mxu0
      %2203 = vmatprep.mubr.bf16.mxu0 0
      %2204 = vmatmul.mubr.bf16.gmra.mxu0 %v2056
      %v2205 = vpop.f32.mrf.mxu0
      %v2206 = vadd.f32 %v2014, %v2205
      %v2207 = vpop.f32.mrf.mxu0
      %v2208 = vpop.f32.mrf.mxu0
      %v2209 = vadd.f32 %v2014, %v2208
      %v2210 = vpop.f32.mrf.mxu0
      %2211 = vmatprep.mubr.bf16.mxu0 0
      %2212 = vmatmul.mubr.bf16.gmra.mxu0 %v2059
      %v2213 = vpop.f32.mrf.mxu0
      %v2214 = vadd.f32 %v2014, %v2213
      %v2215 = vpop.f32.mrf.mxu0
      %v2216 = vpop.f32.mrf.mxu0
      %v2217 = vadd.f32 %v2014, %v2216
      %v2218 = vpop.f32.mrf.mxu0
      %2219 = vmatprep.mubr.bf16.mxu0 0
      %2220 = vmatmul.mubr.bf16.gmra.mxu0 %v2062
      %v2221 = vpop.f32.mrf.mxu0
      %v2222 = vadd.f32 %v2014, %v2221
      %v2223 = vpop.f32.mrf.mxu0
      %v2224 = vpop.f32.mrf.mxu0
      %v2225 = vadd.f32 %v2014, %v2224
      %v2226 = vpop.f32.mrf.mxu0
      %2227 = vdwg.mxu0
      %v2228 = vmax.f32 %v2102, 0.0
      %v2229 = vmax.f32 %v2105, 0.0
      %v2230 = vmax.f32 %v2110, 0.0
      %v2231 = vmax.f32 %v2113, 0.0
      %v2232 = vmax.f32 %v2118, 0.0
      %v2233 = vmax.f32 %v2121, 0.0
      %v2234 = vmax.f32 %v2126, 0.0
      %v2235 = vmax.f32 %v2129, 0.0
      %v2236 = vmax.f32 %v2134, 0.0
      %v2237 = vmax.f32 %v2137, 0.0
      %v2238 = vmax.f32 %v2142, 0.0
      %v2239 = vmax.f32 %v2145, 0.0
      %v2240 = vmax.f32 %v2150, 0.0
      %v2241 = vmax.f32 %v2153, 0.0
      %v2242 = vmax.f32 %v2158, 0.0
      %v2243 = vmax.f32 %v2161, 0.0
      %v2244 = vmax.f32 %v2166, 0.0
      %v2245 = vmax.f32 %v2169, 0.0
      %v2246 = vmax.f32 %v2174, 0.0
      %v2247 = vmax.f32 %v2177, 0.0
      %v2248 = vmax.f32 %v2182, 0.0
      %v2249 = vmax.f32 %v2185, 0.0
      %v2250 = vmax.f32 %v2190, 0.0
      %v2251 = vmax.f32 %v2193, 0.0
      %v2252 = vmax.f32 %v2198, 0.0
      %v2253 = vmax.f32 %v2201, 0.0
      %v2254 = vmax.f32 %v2206, 0.0
      %v2255 = vmax.f32 %v2209, 0.0
      %v2256 = vmax.f32 %v2214, 0.0
      %v2257 = vmax.f32 %v2217, 0.0
      %v2258 = vmax.f32 %v2222, 0.0
      %v2259 = vmax.f32 %v2225, 0.0
      %v2260 = vunpack.c.l.bf16 %v435
      %v2261 = vunpack.c.l.bf16 %v436
      %v2262 = vunpack.c.l.bf16 %v437
      %v2263 = vunpack.c.l.bf16 %v438
      %v2264 = vunpack.c.l.bf16 %v439
      %v2265 = vunpack.c.l.bf16 %v440
      %v2266 = vunpack.c.l.bf16 %v441
      %v2267 = vunpack.c.l.bf16 %v442
      %v2268 = vunpack.c.l.bf16 %v443
      %v2269 = vunpack.c.l.bf16 %v444
      %v2270 = vunpack.c.l.bf16 %v445
      %v2271 = vunpack.c.l.bf16 %v446
      %v2272 = vunpack.c.l.bf16 %v447
      %v2273 = vunpack.c.l.bf16 %v448
      %v2274 = vunpack.c.l.bf16 %v449
      %v2275 = vunpack.c.l.bf16 %v450
      %v2276 = vunpack.c.l.bf16 %v451
      %v2277 = vunpack.c.l.bf16 %v452
      %v2278 = vunpack.c.l.bf16 %v453
      %v2279 = vunpack.c.l.bf16 %v454
      %v2280 = vunpack.c.l.bf16 %v455
      %v2281 = vunpack.c.l.bf16 %v456
      %v2282 = vunpack.c.l.bf16 %v457
      %v2283 = vunpack.c.l.bf16 %v458
      %v2284 = vunpack.c.l.bf16 %v459
      %v2285 = vunpack.c.l.bf16 %v460
      %v2286 = vunpack.c.l.bf16 %v461
      %v2287 = vunpack.c.l.bf16 %v462
      %v2288 = vunpack.c.l.bf16 %v463
      %v2289 = vunpack.c.l.bf16 %v464
      %v2290 = vunpack.c.l.bf16 %v465
      %v2291 = vunpack.c.l.bf16 %v466
      %v2292 = vunpack.c.l.bf16 %v467
      %v2293 = vunpack.c.l.bf16 %v468
      %v2294 = vunpack.c.l.bf16 %v469
      %v2295 = vunpack.c.l.bf16 %v470
      %v2296 = vunpack.c.l.bf16 %v471
      %v2297 = vunpack.c.l.bf16 %v472
      %v2298 = vunpack.c.l.bf16 %v473
      %v2299 = vunpack.c.l.bf16 %v474
      %v2300 = vunpack.c.l.bf16 %v475
      %v2301 = vunpack.c.l.bf16 %v476
      %v2302 = vunpack.c.l.bf16 %v477
      %v2303 = vunpack.c.l.bf16 %v478
      %v2304 = vunpack.c.l.bf16 %v479
      %v2305 = vunpack.c.l.bf16 %v480
      %v2306 = vunpack.c.l.bf16 %v481
      %v2307 = vunpack.c.l.bf16 %v482
      %v2308 = vunpack.c.l.bf16 %v483
      %v2309 = vunpack.c.l.bf16 %v484
      %v2310 = vunpack.c.l.bf16 %v485
      %v2311 = vunpack.c.l.bf16 %v486
      %v2312 = vunpack.c.l.bf16 %v487
      %v2313 = vunpack.c.l.bf16 %v488
      %v2314 = vunpack.c.l.bf16 %v489
      %v2315 = vunpack.c.l.bf16 %v490
      %v2316 = vunpack.c.l.bf16 %v491
      %v2317 = vunpack.c.l.bf16 %v492
      %v2318 = vunpack.c.l.bf16 %v493
      %v2319 = vunpack.c.l.bf16 %v494
      %v2320 = vunpack.c.l.bf16 %v495
      %v2321 = vunpack.c.l.bf16 %v496
      %v2322 = vunpack.c.l.bf16 %v497
      %v2323 = vunpack.c.l.bf16 %v498
      %v2324 = vsub.f32 %v2260, %v2292
      %v2325 = vsub.f32 %v2261, %v2293
      %v2326 = vsub.f32 %v2262, %v2294
      %v2327 = vsub.f32 %v2263, %v2295
      %v2328 = vsub.f32 %v2264, %v2296
      %v2329 = vsub.f32 %v2265, %v2297
      %v2330 = vsub.f32 %v2266, %v2298
      %v2331 = vsub.f32 %v2267, %v2299
      %v2332 = vsub.f32 %v2268, %v2300
      %v2333 = vsub.f32 %v2269, %v2301
      %v2334 = vsub.f32 %v2270, %v2302
      %v2335 = vsub.f32 %v2271, %v2303
      %v2336 = vsub.f32 %v2272, %v2304
      %v2337 = vsub.f32 %v2273, %v2305
      %v2338 = vsub.f32 %v2274, %v2306
      %v2339 = vsub.f32 %v2275, %v2307
      %v2340 = vsub.f32 %v2276, %v2308
      %v2341 = vsub.f32 %v2277, %v2309
      %v2342 = vsub.f32 %v2278, %v2310
      %v2343 = vsub.f32 %v2279, %v2311
      %v2344 = vsub.f32 %v2280, %v2312
      %v2345 = vsub.f32 %v2281, %v2313
      %v2346 = vsub.f32 %v2282, %v2314
      %v2347 = vsub.f32 %v2283, %v2315
      %v2348 = vsub.f32 %v2284, %v2316
      %v2349 = vsub.f32 %v2285, %v2317
      %v2350 = vsub.f32 %v2286, %v2318
      %v2351 = vsub.f32 %v2287, %v2319
      %v2352 = vsub.f32 %v2288, %v2320
      %v2353 = vsub.f32 %v2289, %v2321
      %v2354 = vsub.f32 %v2290, %v2322
      %v2355 = vsub.f32 %v2291, %v2323
      %v2356 = vand.u32 2147483647, %v2324
      %v2357 = vand.u32 2147483647, %v2325
      %v2358 = vand.u32 2147483647, %v2326
      %v2359 = vand.u32 2147483647, %v2327
      %v2360 = vand.u32 2147483647, %v2328
      %v2361 = vand.u32 2147483647, %v2329
      %v2362 = vand.u32 2147483647, %v2330
      %v2363 = vand.u32 2147483647, %v2331
      %v2364 = vand.u32 2147483647, %v2332
      %v2365 = vand.u32 2147483647, %v2333
      %v2366 = vand.u32 2147483647, %v2334
      %v2367 = vand.u32 2147483647, %v2335
      %v2368 = vand.u32 2147483647, %v2336
      %v2369 = vand.u32 2147483647, %v2337
      %v2370 = vand.u32 2147483647, %v2338
      %v2371 = vand.u32 2147483647, %v2339
      %v2372 = vand.u32 2147483647, %v2340
      %v2373 = vand.u32 2147483647, %v2341
      %v2374 = vand.u32 2147483647, %v2342
      %v2375 = vand.u32 2147483647, %v2343
      %v2376 = vand.u32 2147483647, %v2344
      %v2377 = vand.u32 2147483647, %v2345
      %v2378 = vand.u32 2147483647, %v2346
      %v2379 = vand.u32 2147483647, %v2347
      %v2380 = vand.u32 2147483647, %v2348
      %v2381 = vand.u32 2147483647, %v2349
      %v2382 = vand.u32 2147483647, %v2350
      %v2383 = vand.u32 2147483647, %v2351
      %v2384 = vand.u32 2147483647, %v2352
      %v2385 = vand.u32 2147483647, %v2353
      %v2386 = vand.u32 2147483647, %v2354
      %v2387 = vand.u32 2147483647, %v2355
      %v2388 = vsel %vm691, %v2356, 0.0
      %v2389 = vsel %vm691, %v2357, 0.0
      %v2390 = vadd.f32 %v2388, %v2389
      %v2391 = vrot.slane %v2390, 4
      %v2392 = vadd.f32 %v2390, %v2391
      %v2393 = vrot.slane %v2392, 2
      %v2394 = vadd.f32 %v2392, %v2393
      %v2395 = vrot.slane %v2394, 1
      %v2396 = vadd.f32 %v2394, %v2395
      %v2397 = vsel %vm691, %v2358, 0.0
      %v2398 = vsel %vm691, %v2359, 0.0
      %v2399 = vadd.f32 %v2397, %v2398
      %v2400 = vrot.slane %v2399, 4
      %v2401 = vadd.f32 %v2399, %v2400
      %v2402 = vrot.slane %v2401, 2
      %v2403 = vadd.f32 %v2401, %v2402
      %v2404 = vrot.slane %v2403, 1
      %v2405 = vadd.f32 %v2403, %v2404
      %v2406 = vsel %vm691, %v2360, 0.0
      %v2407 = vsel %vm691, %v2361, 0.0
      %v2408 = vadd.f32 %v2406, %v2407
      %v2409 = vrot.slane %v2408, 4
      %v2410 = vadd.f32 %v2408, %v2409
      %v2411 = vrot.slane %v2410, 2
      %v2412 = vadd.f32 %v2410, %v2411
      %v2413 = vrot.slane %v2412, 1
      %v2414 = vadd.f32 %v2412, %v2413
      %v2415 = vsel %vm691, %v2362, 0.0
      %v2416 = vsel %vm691, %v2363, 0.0
      %v2417 = vadd.f32 %v2415, %v2416
      %v2418 = vrot.slane %v2417, 4
      %v2419 = vadd.f32 %v2417, %v2418
      %v2420 = vrot.slane %v2419, 2
      %v2421 = vadd.f32 %v2419, %v2420
      %v2422 = vrot.slane %v2421, 1
      %v2423 = vadd.f32 %v2421, %v2422
      %v2424 = vsel %vm691, %v2364, 0.0
      %v2425 = vsel %vm691, %v2365, 0.0
      %v2426 = vadd.f32 %v2424, %v2425
      %v2427 = vrot.slane %v2426, 4
      %v2428 = vadd.f32 %v2426, %v2427
      %v2429 = vrot.slane %v2428, 2
      %v2430 = vadd.f32 %v2428, %v2429
      %v2431 = vrot.slane %v2430, 1
      %v2432 = vadd.f32 %v2430, %v2431
      %v2433 = vsel %vm691, %v2366, 0.0
      %v2434 = vsel %vm691, %v2367, 0.0
      %v2435 = vadd.f32 %v2433, %v2434
      %v2436 = vrot.slane %v2435, 4
      %v2437 = vadd.f32 %v2435, %v2436
      %v2438 = vrot.slane %v2437, 2
      %v2439 = vadd.f32 %v2437, %v2438
      %v2440 = vrot.slane %v2439, 1
      %v2441 = vadd.f32 %v2439, %v2440
      %v2442 = vsel %vm691, %v2368, 0.0
      %v2443 = vsel %vm691, %v2369, 0.0
      %v2444 = vadd.f32 %v2442, %v2443
      %v2445 = vrot.slane %v2444, 4
      %v2446 = vadd.f32 %v2444, %v2445
      %v2447 = vrot.slane %v2446, 2
      %v2448 = vadd.f32 %v2446, %v2447
      %v2449 = vrot.slane %v2448, 1
      %v2450 = vadd.f32 %v2448, %v2449
      %v2451 = vsel %vm691, %v2370, 0.0
      %v2452 = vsel %vm691, %v2371, 0.0
      %v2453 = vadd.f32 %v2451, %v2452
      %v2454 = vrot.slane %v2453, 4
      %v2455 = vadd.f32 %v2453, %v2454
      %v2456 = vrot.slane %v2455, 2
      %v2457 = vadd.f32 %v2455, %v2456
      %v2458 = vrot.slane %v2457, 1
      %v2459 = vadd.f32 %v2457, %v2458
      %v2460 = vsel %vm691, %v2372, 0.0
      %v2461 = vsel %vm691, %v2373, 0.0
      %v2462 = vadd.f32 %v2460, %v2461
      %v2463 = vrot.slane %v2462, 4
      %v2464 = vadd.f32 %v2462, %v2463
      %v2465 = vrot.slane %v2464, 2
      %v2466 = vadd.f32 %v2464, %v2465
      %v2467 = vrot.slane %v2466, 1
      %v2468 = vadd.f32 %v2466, %v2467
      %v2469 = vsel %vm691, %v2374, 0.0
      %v2470 = vsel %vm691, %v2375, 0.0
      %v2471 = vadd.f32 %v2469, %v2470
      %v2472 = vrot.slane %v2471, 4
      %v2473 = vadd.f32 %v2471, %v2472
      %v2474 = vrot.slane %v2473, 2
      %v2475 = vadd.f32 %v2473, %v2474
      %v2476 = vrot.slane %v2475, 1
      %v2477 = vadd.f32 %v2475, %v2476
      %v2478 = vsel %vm691, %v2376, 0.0
      %v2479 = vsel %vm691, %v2377, 0.0
      %v2480 = vadd.f32 %v2478, %v2479
      %v2481 = vrot.slane %v2480, 4
      %v2482 = vadd.f32 %v2480, %v2481
      %v2483 = vrot.slane %v2482, 2
      %v2484 = vadd.f32 %v2482, %v2483
      %v2485 = vrot.slane %v2484, 1
      %v2486 = vadd.f32 %v2484, %v2485
      %v2487 = vsel %vm691, %v2378, 0.0
      %v2488 = vsel %vm691, %v2379, 0.0
      %v2489 = vadd.f32 %v2487, %v2488
      %v2490 = vrot.slane %v2489, 4
      %v2491 = vadd.f32 %v2489, %v2490
      %v2492 = vrot.slane %v2491, 2
      %v2493 = vadd.f32 %v2491, %v2492
      %v2494 = vrot.slane %v2493, 1
      %v2495 = vadd.f32 %v2493, %v2494
      %v2496 = vsel %vm691, %v2380, 0.0
      %v2497 = vsel %vm691, %v2381, 0.0
      %v2498 = vadd.f32 %v2496, %v2497
      %v2499 = vrot.slane %v2498, 4
      %v2500 = vadd.f32 %v2498, %v2499
      %v2501 = vrot.slane %v2500, 2
      %v2502 = vadd.f32 %v2500, %v2501
      %v2503 = vrot.slane %v2502, 1
      %v2504 = vadd.f32 %v2502, %v2503
      %v2505 = vsel %vm691, %v2382, 0.0
      %v2506 = vsel %vm691, %v2383, 0.0
      %v2507 = vadd.f32 %v2505, %v2506
      %v2508 = vrot.slane %v2507, 4
      %v2509 = vadd.f32 %v2507, %v2508
      %v2510 = vrot.slane %v2509, 2
      %v2511 = vadd.f32 %v2509, %v2510
      %v2512 = vrot.slane %v2511, 1
      %v2513 = vadd.f32 %v2511, %v2512
      %v2514 = vsel %vm691, %v2384, 0.0
      %v2515 = vsel %vm691, %v2385, 0.0
      %v2516 = vadd.f32 %v2514, %v2515
      %v2517 = vrot.slane %v2516, 4
      %v2518 = vadd.f32 %v2516, %v2517
      %v2519 = vrot.slane %v2518, 2
      %v2520 = vadd.f32 %v2518, %v2519
      %v2521 = vrot.slane %v2520, 1
      %v2522 = vadd.f32 %v2520, %v2521
      %v2523 = vsel %vm691, %v2386, 0.0
      %v2524 = vsel %vm691, %v2387, 0.0
      %v2525 = vadd.f32 %v2523, %v2524
      %v2526 = vrot.slane %v2525, 4
      %v2527 = vadd.f32 %v2525, %v2526
      %v2528 = vrot.slane %v2527, 2
      %v2529 = vadd.f32 %v2527, %v2528
      %v2530 = vrot.slane %v2529, 1
      %v2531 = vadd.f32 %v2529, %v2530
      %v2532 = vrcp.pop 16.0
      %v2533 = vmul.f32 %v2396, %v2532
      %v2534 = vmul.f32 %v2405, %v2532
      %v2535 = vmul.f32 %v2414, %v2532
      %v2536 = vmul.f32 %v2423, %v2532
      %v2537 = vmul.f32 %v2432, %v2532
      %v2538 = vmul.f32 %v2441, %v2532
      %v2539 = vmul.f32 %v2450, %v2532
      %v2540 = vmul.f32 %v2459, %v2532
      %v2541 = vmul.f32 %v2468, %v2532
      %v2542 = vmul.f32 %v2477, %v2532
      %v2543 = vmul.f32 %v2486, %v2532
      %v2544 = vmul.f32 %v2495, %v2532
      %v2545 = vmul.f32 %v2504, %v2532
      %v2546 = vmul.f32 %v2513, %v2532
      %v2547 = vmul.f32 %v2522, %v2532
      %v2548 = vmul.f32 %v2531, %v2532
      %v2549 = vadd.f32 %v2388, %v2397
      %v2550 = vadd.f32 %v2549, %v2406
      %v2551 = vadd.f32 %v2550, %v2415
      %v2552 = vadd.f32 %v2551, %v2424
      %v2553 = vadd.f32 %v2552, %v2433
      %v2554 = vadd.f32 %v2553, %v2442
      %v2555 = vadd.f32 %v2554, %v2451
      %v2556 = vadd.f32 %v2555, %v2460
      %v2557 = vadd.f32 %v2556, %v2469
      %v2558 = vadd.f32 %v2557, %v2478
      %v2559 = vadd.f32 %v2558, %v2487
      %v2560 = vadd.f32 %v2559, %v2496
      %v2561 = vadd.f32 %v2560, %v2505
      %v2562 = vadd.f32 %v2561, %v2514
      %v2563 = vadd.f32 %v2562, %v2523
      %v2564 = vadd.f32 %v2389, %v2398
      %v2565 = vadd.f32 %v2564, %v2407
      %v2566 = vadd.f32 %v2565, %v2416
      %v2567 = vadd.f32 %v2566, %v2425
      %v2568 = vadd.f32 %v2567, %v2434
      %v2569 = vadd.f32 %v2568, %v2443
      %v2570 = vadd.f32 %v2569, %v2452
      %v2571 = vadd.f32 %v2570, %v2461
      %v2572 = vadd.f32 %v2571, %v2470
      %v2573 = vadd.f32 %v2572, %v2479
      %v2574 = vadd.f32 %v2573, %v2488
      %v2575 = vadd.f32 %v2574, %v2497
      %v2576 = vadd.f32 %v2575, %v2506
      %v2577 = vadd.f32 %v2576, %v2515
      %v2578 = vadd.f32 %v2577, %v2524
      %v2579 = vmul.f32 %v2563, %v2532
      %v2580 = vmul.f32 %v2578, %v2532
      %vm2597 = vcmask 1041409
      %v2598 = vsel %vm2597, %v2534, %v2533
      %vm2599 = vcmask 1042434
      %v2600 = vsel %vm2599, %v2535, %v2598
      %vm2601 = vcmask 1043459
      %v2602 = vsel %vm2601, %v2536, %v2600
      %vm2603 = vcmask 1044484
      %v2604 = vsel %vm2603, %v2537, %v2602
      %vm2605 = vcmask 1045509
      %v2606 = vsel %vm2605, %v2538, %v2604
      %vm2607 = vcmask 1046534
      %v2608 = vsel %vm2607, %v2539, %v2606
      %vm2609 = vcmask 1047559
      %v2610 = vsel %vm2609, %v2540, %v2608
      %v2611 = vsel %vm2597, %v2542, %v2541
      %v2612 = vsel %vm2599, %v2543, %v2611
      %v2613 = vsel %vm2601, %v2544, %v2612
      %v2614 = vsel %vm2603, %v2545, %v2613
      %v2615 = vsel %vm2605, %v2546, %v2614
      %v2616 = vsel %vm2607, %v2547, %v2615
      %v2617 = vsel %vm2609, %v2548, %v2616
      %v2618 = vld [vmem:[%s6] sm:$0xf]
      %v2619 = vld [vmem:[%s7] sm:$0x1]
      %v2621 = vlaneseq
      %v2622 = vshrl.u32 %v2621, 7
      %v2623 = vsub.s32 0, %v2622
      %v2624 = vrot.slane %v2619, %v2623
      %v2626 = vsel %vm691, %v2610, 0
      %v2628 = vsel %vm691, %v2617, 0
      %v2631 = vsel %vm691, %v2579, 0
      %v2634 = vsel %vm691, %v2580, 0
      %v2637 = vsel %vm1162, %v2618, 0
      %2639 = vmatprep.subr.mxu0 0.0
      %2640 = vmatpush1.msra.mxu0 0.0
      %2641 = vmatprep.subr.mxu0 0.0
      %2642 = vmatpush1.msra.mxu0 0.0
      %2643 = vmatprep.subr.mxu0 0.0
      %2644 = vmatpush1.msra.mxu0 0.0
      %2645 = vmatprep.subr.mxu0 0.0
      %2646 = vmatpush1.msra.mxu0 0.0
      %2647 = vmatprep.subr.mxu0 0.0
      %2648 = vmatpush1.msra.mxu0 0.0
      %2649 = vmatprep.subr.mxu0 0.0
      %2650 = vmatpush1.msra.mxu0 0.0
      %2651 = vmatprep.subr.mxu0 0.0
      %2652 = vmatpush1.msra.mxu0 0.0
      %2653 = vmatprep.subr.mxu0 0.0
      %2654 = vmatpush1.msra.mxu0 0.0
      %2655 = vmatprep.subr.mxu0 0.0
      %2656 = vmatpush1.msra.mxu0 0.0
      %2657 = vmatprep.subr.mxu0 0.0
      %2658 = vmatpush1.msra.mxu0 0.0
      %2659 = vmatprep.subr.mxu0 0.0
      %2660 = vmatpush1.msra.mxu0 0.0
      %2661 = vmatprep.subr.mxu0 0.0
      %2662 = vmatpush1.msra.mxu0 0.0
      %2663 = vmatprep.subr.mxu0 0.0
      %2664 = vmatpush1.msra.mxu0 0.0
      %2665 = vmatprep.subr.mxu0 0.0
      %2666 = vmatpush1.msra.mxu0 0.0
      %2667 = vmatprep.subr.mxu0 0.0
      %2668 = vmatpush1.msra.mxu0 0.0
      %2669 = vmatprep.subr.mxu0 0.0
      %2670 = vmatpush1.msra.mxu0 %v2637
      %2671 = vmatprep.subr.mxu0 0.0
      %2672 = vmatpush2.msra.mxu0 0.0
      %2673 = vmatprep.subr.mxu0 0.0
      %2674 = vmatpush2.msra.mxu0 0.0
      %2675 = vmatprep.subr.mxu0 0.0
      %2676 = vmatpush2.msra.mxu0 0.0
      %2677 = vmatprep.subr.mxu0 0.0
      %2678 = vmatpush2.msra.mxu0 0.0
      %2679 = vmatprep.subr.mxu0 0.0
      %2680 = vmatpush2.msra.mxu0 0.0
      %2681 = vmatprep.subr.mxu0 0.0
      %2682 = vmatpush2.msra.mxu0 0.0
      %2683 = vmatprep.subr.mxu0 0.0
      %2684 = vmatpush2.msra.mxu0 0.0
      %2685 = vmatprep.subr.mxu0 0.0
      %2686 = vmatpush2.msra.mxu0 0.0
      %2687 = vmatprep.subr.mxu0 0.0
      %2688 = vmatpush2.msra.mxu0 0.0
      %2689 = vmatprep.subr.mxu0 0.0
      %2690 = vmatpush2.msra.mxu0 0.0
      %2691 = vmatprep.subr.mxu0 0.0
      %2692 = vmatpush2.msra.mxu0 0.0
      %2693 = vmatprep.subr.mxu0 0.0
      %2694 = vmatpush2.msra.mxu0 0.0
      %2695 = vmatprep.subr.mxu0 0.0
      %2696 = vmatpush2.msra.mxu0 0.0
      %2697 = vmatprep.subr.mxu0 0.0
      %2698 = vmatpush2.msra.mxu0 0.0
      %2699 = vmatprep.subr.mxu0 0.0
      %2700 = vmatpush2.msra.mxu0 0.0
      %2701 = vmatprep.subr.mxu0 0.0
      %2702 = vmatpush2.msra.mxu0 0.0
      %2703 = vmatprep.mubr.f32.mxu0 0.0
      %2704 = vmatmul.mubr.f32.gmra.mxu0 %v2626
      %v2705 = vpop.f32.mrf.mxu0
      %v2706 = vadd.f32 %v2624, %v2705
      %v2707 = vpop.f32.mrf.mxu0
      %2708 = vmatprep.mubr.f32.mxu0 0.0
      %2709 = vmatmul.mubr.f32.gmra.mxu0 %v2628
      %v2710 = vpop.f32.mrf.mxu0
      %v2711 = vadd.f32 %v2624, %v2710
      %v2712 = vpop.f32.mrf.mxu0
      %2713 = vmatprep.mubr.f32.mxu0 0.0
      %2714 = vmatmul.mubr.f32.gmra.mxu0 %v2631
      %v2715 = vpop.f32.mrf.mxu0
      %v2716 = vadd.f32 %v2624, %v2715
      %v2717 = vpop.f32.mrf.mxu0
      %2718 = vmatprep.mubr.f32.mxu0 0.0
      %2719 = vmatmul.mubr.f32.gmra.mxu0 %v2634
      %v2720 = vpop.f32.mrf.mxu0
      %v2721 = vadd.f32 %v2624, %v2720
      %v2722 = vpop.f32.mrf.mxu0
      %2723 = vdwg.mxu0
      %v2724 = vadd.f32 %v2706, 3.0
      %v2725 = vadd.f32 %v2711, 3.0
      %v2726 = vadd.f32 %v2716, 3.0
      %v2727 = vadd.f32 %v2721, 3.0
      %v2728 = vmax.f32 %v2724, 0.0
      %v2729 = vmax.f32 %v2725, 0.0
      %v2730 = vmax.f32 %v2726, 0.0
      %v2731 = vmax.f32 %v2727, 0.0
      %v2732 = vmin.f32 %v2728, 6.0
      %v2733 = vmin.f32 %v2729, 6.0
      %v2734 = vmin.f32 %v2730, 6.0
      %v2735 = vmin.f32 %v2731, 6.0
      %v2736 = vmul.f32 %v2732, 0.16666667
      %v2737 = vmul.f32 %v2733, 0.16666667
      %v2738 = vmul.f32 %v2734, 0.16666667
      %v2739 = vmul.f32 %v2735, 0.16666667
      %v2740 = vmul.f32 %v2706, %v2736
      %v2741 = vmul.f32 %v2711, %v2737
      %v2742 = vmul.f32 %v2716, %v2738
      %v2743 = vmul.f32 %v2721, %v2739
      %v2744 = vld [vmem:[%s8] sm:$0xff]
      %v2745 = vld [vmem:[%s9] sm:$0x1]
      %v2747 = vlaneseq
      %v2748 = vshrl.u32 %v2747, 7
      %v2749 = vsub.s32 0, %v2748
      %v2750 = vrot.slane %v2745, %v2749
      %v2753 = vsel %vm1034, %v2740, 0
      %v2756 = vsel %vm1034, %v2741, 0
      %2758 = vmatprep.subr.mxu0 0.0
      %2759 = vmatpush1.msra.mxu0 0.0
      %2760 = vmatprep.subr.mxu0 0.0
      %2761 = vmatpush1.msra.mxu0 0.0
      %2762 = vmatprep.subr.mxu0 0.0
      %2763 = vmatpush1.msra.mxu0 0.0
      %2764 = vmatprep.subr.mxu0 0.0
      %2765 = vmatpush1.msra.mxu0 0.0
      %2766 = vmatprep.subr.mxu0 0.0
      %2767 = vmatpush1.msra.mxu0 0.0
      %2768 = vmatprep.subr.mxu0 0.0
      %2769 = vmatpush1.msra.mxu0 0.0
      %2770 = vmatprep.subr.mxu0 0.0
      %2771 = vmatpush1.msra.mxu0 0.0
      %2772 = vmatprep.subr.mxu0 0.0
      %2773 = vmatpush1.msra.mxu0 0.0
      %2774 = vmatprep.subr.mxu0 0.0
      %2775 = vmatpush1.msra.mxu0 0.0
      %2776 = vmatprep.subr.mxu0 0.0
      %2777 = vmatpush1.msra.mxu0 0.0
      %2778 = vmatprep.subr.mxu0 0.0
      %2779 = vmatpush1.msra.mxu0 0.0
      %2780 = vmatprep.subr.mxu0 0.0
      %2781 = vmatpush1.msra.mxu0 0.0
      %2782 = vmatprep.subr.mxu0 0.0
      %2783 = vmatpush1.msra.mxu0 0.0
      %2784 = vmatprep.subr.mxu0 0.0
      %2785 = vmatpush1.msra.mxu0 0.0
      %2786 = vmatprep.subr.mxu0 0.0
      %2787 = vmatpush1.msra.mxu0 0.0
      %2788 = vmatprep.subr.mxu0 0.0
      %2789 = vmatpush1.msra.mxu0 %v2744
      %2790 = vmatprep.subr.mxu0 0.0
      %2791 = vmatpush2.msra.mxu0 0.0
      %2792 = vmatprep.subr.mxu0 0.0
      %2793 = vmatpush2.msra.mxu0 0.0
      %2794 = vmatprep.subr.mxu0 0.0
      %2795 = vmatpush2.msra.mxu0 0.0
      %2796 = vmatprep.subr.mxu0 0.0
      %2797 = vmatpush2.msra.mxu0 0.0
      %2798 = vmatprep.subr.mxu0 0.0
      %2799 = vmatpush2.msra.mxu0 0.0
      %2800 = vmatprep.subr.mxu0 0.0
      %2801 = vmatpush2.msra.mxu0 0.0
      %2802 = vmatprep.subr.mxu0 0.0
      %2803 = vmatpush2.msra.mxu0 0.0
      %2804 = vmatprep.subr.mxu0 0.0
      %2805 = vmatpush2.msra.mxu0 0.0
      %2806 = vmatprep.subr.mxu0 0.0
      %2807 = vmatpush2.msra.mxu0 0.0
      %2808 = vmatprep.subr.mxu0 0.0
      %2809 = vmatpush2.msra.mxu0 0.0
      %2810 = vmatprep.subr.mxu0 0.0
      %2811 = vmatpush2.msra.mxu0 0.0
      %2812 = vmatprep.subr.mxu0 0.0
      %2813 = vmatpush2.msra.mxu0 0.0
      %2814 = vmatprep.subr.mxu0 0.0
      %2815 = vmatpush2.msra.mxu0 0.0
      %2816 = vmatprep.subr.mxu0 0.0
      %2817 = vmatpush2.msra.mxu0 0.0
      %2818 = vmatprep.subr.mxu0 0.0
      %2819 = vmatpush2.msra.mxu0 0.0
      %2820 = vmatprep.subr.mxu0 0.0
      %2821 = vmatpush2.msra.mxu0 0.0
      %2822 = vmatprep.mubr.f32.mxu0 0.0
      %2823 = vmatmul.mubr.f32.gmra.mxu0 %v2753
      %v2824 = vpop.f32.mrf.mxu0
      %v2825 = vadd.f32 %v2750, %v2824
      %v2826 = vpop.f32.mrf.mxu0
      %2827 = vmatprep.mubr.f32.mxu0 0.0
      %2828 = vmatmul.mubr.f32.gmra.mxu0 %v2756
      %v2829 = vpop.f32.mrf.mxu0
      %v2830 = vadd.f32 %v2750, %v2829
      %v2831 = vpop.f32.mrf.mxu0
      %2832 = vdwg.mxu0
      %v2833 = vxor.u32 %v2825, 2147483648
      %v2834 = vxor.u32 %v2830, 2147483648
      %v2835 = vmul.f32 %v2833, 1.442695
      %v2836 = vpow.pop %v2835
      %v2837 = vmul.f32 %v2834, 1.442695
      %v2838 = vpow.pop %v2837
      %v2839 = vadd.f32 %v2836, 1.0
      %v2840 = vadd.f32 %v2838, 1.0
      %v2841 = vrcp.pop %v2839
      %v2842 = vmul.f32 1.0, %v2841
      %v2843 = vrcp.pop %v2840
      %v2844 = vmul.f32 1.0, %v2843
      %v2845 = vld [vmem:[%s10] sm:$0xff]
      %v2846 = vld [vmem:[%s11] sm:$0x1]
      %v2848 = vlaneseq
      %v2849 = vshrl.u32 %v2848, 7
      %v2850 = vsub.s32 0, %v2849
      %v2851 = vrot.slane %v2846, %v2850
      %v2854 = vsel %vm1034, %v2742, 0
      %v2857 = vsel %vm1034, %v2743, 0
      %2859 = vmatprep.subr.mxu0 0.0
      %2860 = vmatpush1.msra.mxu0 0.0
      %2861 = vmatprep.subr.mxu0 0.0
      %2862 = vmatpush1.msra.mxu0 0.0
      %2863 = vmatprep.subr.mxu0 0.0
      %2864 = vmatpush1.msra.mxu0 0.0
      %2865 = vmatprep.subr.mxu0 0.0
      %2866 = vmatpush1.msra.mxu0 0.0
      %2867 = vmatprep.subr.mxu0 0.0
      %2868 = vmatpush1.msra.mxu0 0.0
      %2869 = vmatprep.subr.mxu0 0.0
      %2870 = vmatpush1.msra.mxu0 0.0
      %2871 = vmatprep.subr.mxu0 0.0
      %2872 = vmatpush1.msra.mxu0 0.0
      %2873 = vmatprep.subr.mxu0 0.0
      %2874 = vmatpush1.msra.mxu0 0.0
      %2875 = vmatprep.subr.mxu0 0.0
      %2876 = vmatpush1.msra.mxu0 0.0
      %2877 = vmatprep.subr.mxu0 0.0
      %2878 = vmatpush1.msra.mxu0 0.0
      %2879 = vmatprep.subr.mxu0 0.0
      %2880 = vmatpush1.msra.mxu0 0.0
      %2881 = vmatprep.subr.mxu0 0.0
      %2882 = vmatpush1.msra.mxu0 0.0
      %2883 = vmatprep.subr.mxu0 0.0
      %2884 = vmatpush1.msra.mxu0 0.0
      %2885 = vmatprep.subr.mxu0 0.0
      %2886 = vmatpush1.msra.mxu0 0.0
      %2887 = vmatprep.subr.mxu0 0.0
      %2888 = vmatpush1.msra.mxu0 0.0
      %2889 = vmatprep.subr.mxu0 0.0
      %2890 = vmatpush1.msra.mxu0 %v2845
      %2891 = vmatprep.subr.mxu0 0.0
      %2892 = vmatpush2.msra.mxu0 0.0
      %2893 = vmatprep.subr.mxu0 0.0
      %2894 = vmatpush2.msra.mxu0 0.0
      %2895 = vmatprep.subr.mxu0 0.0
      %2896 = vmatpush2.msra.mxu0 0.0
      %2897 = vmatprep.subr.mxu0 0.0
      %2898 = vmatpush2.msra.mxu0 0.0
      %2899 = vmatprep.subr.mxu0 0.0
      %2900 = vmatpush2.msra.mxu0 0.0
      %2901 = vmatprep.subr.mxu0 0.0
      %2902 = vmatpush2.msra.mxu0 0.0
      %2903 = vmatprep.subr.mxu0 0.0
      %2904 = vmatpush2.msra.mxu0 0.0
      %2905 = vmatprep.subr.mxu0 0.0
      %2906 = vmatpush2.msra.mxu0 0.0
      %2907 = vmatprep.subr.mxu0 0.0
      %2908 = vmatpush2.msra.mxu0 0.0
      %2909 = vmatprep.subr.mxu0 0.0
      %2910 = vmatpush2.msra.mxu0 0.0
      %2911 = vmatprep.subr.mxu0 0.0
      %2912 = vmatpush2.msra.mxu0 0.0
      %2913 = vmatprep.subr.mxu0 0.0
      %2914 = vmatpush2.msra.mxu0 0.0
      %2915 = vmatprep.subr.mxu0 0.0
      %2916 = vmatpush2.msra.mxu0 0.0
      %2917 = vmatprep.subr.mxu0 0.0
      %2918 = vmatpush2.msra.mxu0 0.0
      %2919 = vmatprep.subr.mxu0 0.0
      %2920 = vmatpush2.msra.mxu0 0.0
      %2921 = vmatprep.subr.mxu0 0.0
      %2922 = vmatpush2.msra.mxu0 0.0
      %2923 = vmatprep.mubr.f32.mxu0 0.0
      %2924 = vmatmul.mubr.f32.gmra.mxu0 %v2854
      %v2925 = vpop.f32.mrf.mxu0
      %v2926 = vadd.f32 %v2851, %v2925
      %v2927 = vpop.f32.mrf.mxu0
      %2928 = vmatprep.mubr.f32.mxu0 0.0
      %2929 = vmatmul.mubr.f32.gmra.mxu0 %v2857
      %v2930 = vpop.f32.mrf.mxu0
      %v2931 = vadd.f32 %v2851, %v2930
      %v2932 = vpop.f32.mrf.mxu0
      %2933 = vdwg.mxu0
      %v2934 = vxor.u32 %v2926, 2147483648
      %v2935 = vxor.u32 %v2931, 2147483648
      %v2936 = vmul.f32 %v2934, 1.442695
      %v2937 = vpow.pop %v2936
      %v2938 = vmul.f32 %v2935, 1.442695
      %v2939 = vpow.pop %v2938
      %v2940 = vadd.f32 %v2937, 1.0
      %v2941 = vadd.f32 %v2939, 1.0
      %v2942 = vrcp.pop %v2940
      %v2943 = vmul.f32 1.0, %v2942
      %v2944 = vrcp.pop %v2941
      %v2945 = vmul.f32 1.0, %v2944
      %v2946 = vmul.f32 %v2356, %v2943
      %v2947 = vmul.f32 %v2357, %v2945
      %v2948 = vmul.f32 %v2358, %v2943
      %v2949 = vmul.f32 %v2359, %v2945
      %v2950 = vmul.f32 %v2360, %v2943
      %v2951 = vmul.f32 %v2361, %v2945
      %v2952 = vmul.f32 %v2362, %v2943
      %v2953 = vmul.f32 %v2363, %v2945
      %v2954 = vmul.f32 %v2364, %v2943
      %v2955 = vmul.f32 %v2365, %v2945
      %v2956 = vmul.f32 %v2366, %v2943
      %v2957 = vmul.f32 %v2367, %v2945
      %v2958 = vmul.f32 %v2368, %v2943
      %v2959 = vmul.f32 %v2369, %v2945
      %v2960 = vmul.f32 %v2370, %v2943
      %v2961 = vmul.f32 %v2371, %v2945
      %v2962 = vmul.f32 %v2372, %v2943
      %v2963 = vmul.f32 %v2373, %v2945
      %v2964 = vmul.f32 %v2374, %v2943
      %v2965 = vmul.f32 %v2375, %v2945
      %v2966 = vmul.f32 %v2376, %v2943
      %v2967 = vmul.f32 %v2377, %v2945
      %v2968 = vmul.f32 %v2378, %v2943
      %v2969 = vmul.f32 %v2379, %v2945
      %v2970 = vmul.f32 %v2380, %v2943
      %v2971 = vmul.f32 %v2381, %v2945
      %v2972 = vmul.f32 %v2382, %v2943
      %v2973 = vmul.f32 %v2383, %v2945
      %v2974 = vmul.f32 %v2384, %v2943
      %v2975 = vmul.f32 %v2385, %v2945
      %v2976 = vmul.f32 %v2386, %v2943
      %v2977 = vmul.f32 %v2387, %v2945
      %v2980 = vcombine.high %v2842, %v2842
      %v2982 = vunpack.c.l.s4 1966171168
      %v2983 = vunpack.c.0.s8 %v2982
      %v2984 = vlaneseq
      %v2985 = vshrl.u32 %v2984, 7
      %v2986 = vsub.s32 %v2983, %v2985
      %v2987 = vrot.slane %v2842, %v2986
      %v2989 = vunpack.c.l.s4 1966171168
      %v2990 = vunpack.c.0.s8 %v2989
      %v2991 = vlaneseq
      %v2992 = vshrl.u32 %v2991, 7
      %v2993 = vsub.s32 %v2990, %v2992
      %v2994 = vrot.slane %v2980, %v2993
      %v2995 = vcombine.high %v2987, %v2987
      %v2996 = vcombine.high %v2994, %v2994
      %v2998 = vunpack.c.l.s4 1966171168
      %v2999 = vunpack.c.0.s8 %v2998
      %v3000 = vlaneseq
      %v3001 = vshrl.u32 %v3000, 7
      %v3002 = vsub.s32 %v2999, %v3001
      %v3003 = vrot.slane %v2987, %v3002
      %v3005 = vunpack.c.l.s4 1966171168
      %v3006 = vunpack.c.0.s8 %v3005
      %v3007 = vlaneseq
      %v3008 = vshrl.u32 %v3007, 7
      %v3009 = vsub.s32 %v3006, %v3008
      %v3010 = vrot.slane %v2994, %v3009
      %v3012 = vunpack.c.l.s4 1966171168
      %v3013 = vunpack.c.0.s8 %v3012
      %v3014 = vlaneseq
      %v3015 = vshrl.u32 %v3014, 7
      %v3016 = vsub.s32 %v3013, %v3015
      %v3017 = vrot.slane %v2995, %v3016
      %v3019 = vunpack.c.l.s4 1966171168
      %v3020 = vunpack.c.0.s8 %v3019
      %v3021 = vlaneseq
      %v3022 = vshrl.u32 %v3021, 7
      %v3023 = vsub.s32 %v3020, %v3022
      %v3024 = vrot.slane %v2996, %v3023
      %v3025 = vcombine.high %v3003, %v3003
      %v3026 = vcombine.high %v3010, %v3010
      %v3027 = vcombine.high %v3017, %v3017
      %v3028 = vcombine.high %v3024, %v3024
      %v3029 = vcombine.high %v2844, %v2844
      %v3031 = vunpack.c.l.s4 1966171168
      %v3032 = vunpack.c.0.s8 %v3031
      %v3033 = vlaneseq
      %v3034 = vshrl.u32 %v3033, 7
      %v3035 = vsub.s32 %v3032, %v3034
      %v3036 = vrot.slane %v2844, %v3035
      %v3038 = vunpack.c.l.s4 1966171168
      %v3039 = vunpack.c.0.s8 %v3038
      %v3040 = vlaneseq
      %v3041 = vshrl.u32 %v3040, 7
      %v3042 = vsub.s32 %v3039, %v3041
      %v3043 = vrot.slane %v3029, %v3042
      %v3044 = vcombine.high %v3036, %v3036
      %v3045 = vcombine.high %v3043, %v3043
      %v3047 = vunpack.c.l.s4 1966171168
      %v3048 = vunpack.c.0.s8 %v3047
      %v3049 = vlaneseq
      %v3050 = vshrl.u32 %v3049, 7
      %v3051 = vsub.s32 %v3048, %v3050
      %v3052 = vrot.slane %v3036, %v3051
      %v3054 = vunpack.c.l.s4 1966171168
      %v3055 = vunpack.c.0.s8 %v3054
      %v3056 = vlaneseq
      %v3057 = vshrl.u32 %v3056, 7
      %v3058 = vsub.s32 %v3055, %v3057
      %v3059 = vrot.slane %v3043, %v3058
      %v3061 = vunpack.c.l.s4 1966171168
      %v3062 = vunpack.c.0.s8 %v3061
      %v3063 = vlaneseq
      %v3064 = vshrl.u32 %v3063, 7
      %v3065 = vsub.s32 %v3062, %v3064
      %v3066 = vrot.slane %v3044, %v3065
      %v3068 = vunpack.c.l.s4 1966171168
      %v3069 = vunpack.c.0.s8 %v3068
      %v3070 = vlaneseq
      %v3071 = vshrl.u32 %v3070, 7
      %v3072 = vsub.s32 %v3069, %v3071
      %v3073 = vrot.slane %v3045, %v3072
      %v3074 = vcombine.high %v3052, %v3052
      %v3075 = vcombine.high %v3059, %v3059
      %v3076 = vcombine.high %v3066, %v3066
      %v3077 = vcombine.high %v3073, %v3073
      %v3078 = vlaneseq
      %v3079 = vshrl.u32 %v3078, 7
      %v3080 = vsub.s32 0, %v3079
      %v3081 = vrot.slane %v3003, %v3080
      %v3082 = vlaneseq
      %v3083 = vshrl.u32 %v3082, 7
      %v3084 = vsub.s32 0, %v3083
      %v3085 = vrot.slane %v3017, %v3084
      %v3086 = vlaneseq
      %v3087 = vshrl.u32 %v3086, 7
      %v3088 = vsub.s32 0, %v3087
      %v3089 = vrot.slane %v3025, %v3088
      %v3090 = vlaneseq
      %v3091 = vshrl.u32 %v3090, 7
      %v3092 = vsub.s32 0, %v3091
      %v3093 = vrot.slane %v3027, %v3092
      %v3094 = vlaneseq
      %v3095 = vshrl.u32 %v3094, 7
      %v3096 = vsub.s32 0, %v3095
      %v3097 = vrot.slane %v3010, %v3096
      %v3098 = vlaneseq
      %v3099 = vshrl.u32 %v3098, 7
      %v3100 = vsub.s32 0, %v3099
      %v3101 = vrot.slane %v3024, %v3100
      %v3102 = vlaneseq
      %v3103 = vshrl.u32 %v3102, 7
      %v3104 = vsub.s32 0, %v3103
      %v3105 = vrot.slane %v3026, %v3104
      %v3106 = vlaneseq
      %v3107 = vshrl.u32 %v3106, 7
      %v3108 = vsub.s32 0, %v3107
      %v3109 = vrot.slane %v3028, %v3108
      %v3110 = vlaneseq
      %v3111 = vshrl.u32 %v3110, 7
      %v3112 = vsub.s32 0, %v3111
      %v3113 = vrot.slane %v3052, %v3112
      %v3114 = vlaneseq
      %v3115 = vshrl.u32 %v3114, 7
      %v3116 = vsub.s32 0, %v3115
      %v3117 = vrot.slane %v3066, %v3116
      %v3118 = vlaneseq
      %v3119 = vshrl.u32 %v3118, 7
      %v3120 = vsub.s32 0, %v3119
      %v3121 = vrot.slane %v3074, %v3120
      %v3122 = vlaneseq
      %v3123 = vshrl.u32 %v3122, 7
      %v3124 = vsub.s32 0, %v3123
      %v3125 = vrot.slane %v3076, %v3124
      %v3126 = vlaneseq
      %v3127 = vshrl.u32 %v3126, 7
      %v3128 = vsub.s32 0, %v3127
      %v3129 = vrot.slane %v3059, %v3128
      %v3130 = vlaneseq
      %v3131 = vshrl.u32 %v3130, 7
      %v3132 = vsub.s32 0, %v3131
      %v3133 = vrot.slane %v3073, %v3132
      %v3134 = vlaneseq
      %v3135 = vshrl.u32 %v3134, 7
      %v3136 = vsub.s32 0, %v3135
      %v3137 = vrot.slane %v3075, %v3136
      %v3138 = vlaneseq
      %v3139 = vshrl.u32 %v3138, 7
      %v3140 = vsub.s32 0, %v3139
      %v3141 = vrot.slane %v3077, %v3140
      %v3158 = vmul.f32 %v2946, %v3081
      %v3159 = vmul.f32 %v2947, %v3081
      %v3160 = vmul.f32 %v2948, %v3085
      %v3161 = vmul.f32 %v2949, %v3085
      %v3162 = vmul.f32 %v2950, %v3089
      %v3163 = vmul.f32 %v2951, %v3089
      %v3164 = vmul.f32 %v2952, %v3093
      %v3165 = vmul.f32 %v2953, %v3093
      %v3166 = vmul.f32 %v2954, %v3097
      %v3167 = vmul.f32 %v2955, %v3097
      %v3168 = vmul.f32 %v2956, %v3101
      %v3169 = vmul.f32 %v2957, %v3101
      %v3170 = vmul.f32 %v2958, %v3105
      %v3171 = vmul.f32 %v2959, %v3105
      %v3172 = vmul.f32 %v2960, %v3109
      %v3173 = vmul.f32 %v2961, %v3109
      %v3174 = vmul.f32 %v2962, %v3113
      %v3175 = vmul.f32 %v2963, %v3113
      %v3176 = vmul.f32 %v2964, %v3117
      %v3177 = vmul.f32 %v2965, %v3117
      %v3178 = vmul.f32 %v2966, %v3121
      %v3179 = vmul.f32 %v2967, %v3121
      %v3180 = vmul.f32 %v2968, %v3125
      %v3181 = vmul.f32 %v2969, %v3125
      %v3182 = vmul.f32 %v2970, %v3129
      %v3183 = vmul.f32 %v2971, %v3129
      %v3184 = vmul.f32 %v2972, %v3133
      %v3185 = vmul.f32 %v2973, %v3133
      %v3186 = vmul.f32 %v2974, %v3137
      %v3187 = vmul.f32 %v2975, %v3137
      %v3188 = vmul.f32 %v2976, %v3141
      %v3189 = vmul.f32 %v2977, %v3141
      %v3190 = vadd.f32 %v3158, %v2228
      %v3191 = vadd.f32 %v3159, %v2229
      %v3192 = vadd.f32 %v3160, %v2230
      %v3193 = vadd.f32 %v3161, %v2231
      %v3194 = vadd.f32 %v3162, %v2232
      %v3195 = vadd.f32 %v3163, %v2233
      %v3196 = vadd.f32 %v3164, %v2234
      %v3197 = vadd.f32 %v3165, %v2235
      %v3198 = vadd.f32 %v3166, %v2236
      %v3199 = vadd.f32 %v3167, %v2237
      %v3200 = vadd.f32 %v3168, %v2238
      %v3201 = vadd.f32 %v3169, %v2239
      %v3202 = vadd.f32 %v3170, %v2240
      %v3203 = vadd.f32 %v3171, %v2241
      %v3204 = vadd.f32 %v3172, %v2242
      %v3205 = vadd.f32 %v3173, %v2243
      %v3206 = vadd.f32 %v3174, %v2244
      %v3207 = vadd.f32 %v3175, %v2245
      %v3208 = vadd.f32 %v3176, %v2246
      %v3209 = vadd.f32 %v3177, %v2247
      %v3210 = vadd.f32 %v3178, %v2248
      %v3211 = vadd.f32 %v3179, %v2249
      %v3212 = vadd.f32 %v3180, %v2250
      %v3213 = vadd.f32 %v3181, %v2251
      %v3214 = vadd.f32 %v3182, %v2252
      %v3215 = vadd.f32 %v3183, %v2253
      %v3216 = vadd.f32 %v3184, %v2254
      %v3217 = vadd.f32 %v3185, %v2255
      %v3218 = vadd.f32 %v3186, %v2256
      %v3219 = vadd.f32 %v3187, %v2257
      %v3220 = vadd.f32 %v3188, %v2258
      %v3221 = vadd.f32 %v3189, %v2259
      %v3222 = vcombine.low %v3190, %v3194
      %v3223 = vcombine.high %v3190, %v3194
      %v3225 = vunpack.c.l.s4 1983009808
      %v3226 = vunpack.c.0.s8 %v3225
      %v3227 = vlaneseq
      %v3228 = vshrl.u32 %v3227, 7
      %v3229 = vsub.s32 %v3226, %v3228
      %v3230 = vrot.slane %v3222, %v3229
      %v3232 = vunpack.c.l.s4 1983009808
      %v3233 = vunpack.c.0.s8 %v3232
      %v3234 = vlaneseq
      %v3235 = vshrl.u32 %v3234, 7
      %v3236 = vsub.s32 %v3233, %v3235
      %v3237 = vrot.slane %v3223, %v3236
      %v3238 = vcombine.low %v3192, %v3196
      %v3239 = vcombine.high %v3192, %v3196
      %v3241 = vunpack.c.l.s4 1983009808
      %v3242 = vunpack.c.0.s8 %v3241
      %v3243 = vlaneseq
      %v3244 = vshrl.u32 %v3243, 7
      %v3245 = vsub.s32 %v3242, %v3244
      %v3246 = vrot.slane %v3238, %v3245
      %v3248 = vunpack.c.l.s4 1983009808
      %v3249 = vunpack.c.0.s8 %v3248
      %v3250 = vlaneseq
      %v3251 = vshrl.u32 %v3250, 7
      %v3252 = vsub.s32 %v3249, %v3251
      %v3253 = vrot.slane %v3239, %v3252
      %v3254 = vcombine.low %v3198, %v3202
      %v3255 = vcombine.high %v3198, %v3202
      %v3257 = vunpack.c.l.s4 1983009808
      %v3258 = vunpack.c.0.s8 %v3257
      %v3259 = vlaneseq
      %v3260 = vshrl.u32 %v3259, 7
      %v3261 = vsub.s32 %v3258, %v3260
      %v3262 = vrot.slane %v3254, %v3261
      %v3264 = vunpack.c.l.s4 1983009808
      %v3265 = vunpack.c.0.s8 %v3264
      %v3266 = vlaneseq
      %v3267 = vshrl.u32 %v3266, 7
      %v3268 = vsub.s32 %v3265, %v3267
      %v3269 = vrot.slane %v3255, %v3268
      %v3270 = vcombine.low %v3200, %v3204
      %v3271 = vcombine.high %v3200, %v3204
      %v3273 = vunpack.c.l.s4 1983009808
      %v3274 = vunpack.c.0.s8 %v3273
      %v3275 = vlaneseq
      %v3276 = vshrl.u32 %v3275, 7
      %v3277 = vsub.s32 %v3274, %v3276
      %v3278 = vrot.slane %v3270, %v3277
      %v3280 = vunpack.c.l.s4 1983009808
      %v3281 = vunpack.c.0.s8 %v3280
      %v3282 = vlaneseq
      %v3283 = vshrl.u32 %v3282, 7
      %v3284 = vsub.s32 %v3281, %v3283
      %v3285 = vrot.slane %v3271, %v3284
      %v3286 = vcombine.low %v3230, %v3246
      %v3287 = vcombine.high %v3230, %v3246
      %v3289 = vunpack.c.l.s4 1934713408
      %v3290 = vunpack.c.0.s8 %v3289
      %v3291 = vlaneseq
      %v3292 = vshrl.u32 %v3291, 7
      %v3293 = vsub.s32 %v3290, %v3292
      %v3294 = vrot.slane %v3286, %v3293
      %v3296 = vunpack.c.l.s4 1934713408
      %v3297 = vunpack.c.0.s8 %v3296
      %v3298 = vlaneseq
      %v3299 = vshrl.u32 %v3298, 7
      %v3300 = vsub.s32 %v3297, %v3299
      %v3301 = vrot.slane %v3287, %v3300
      %v3302 = vcombine.low %v3237, %v3253
      %v3303 = vcombine.high %v3237, %v3253
      %v3305 = vunpack.c.l.s4 1934713408
      %v3306 = vunpack.c.0.s8 %v3305
      %v3307 = vlaneseq
      %v3308 = vshrl.u32 %v3307, 7
      %v3309 = vsub.s32 %v3306, %v3308
      %v3310 = vrot.slane %v3302, %v3309
      %v3312 = vunpack.c.l.s4 1934713408
      %v3313 = vunpack.c.0.s8 %v3312
      %v3314 = vlaneseq
      %v3315 = vshrl.u32 %v3314, 7
      %v3316 = vsub.s32 %v3313, %v3315
      %v3317 = vrot.slane %v3303, %v3316
      %v3318 = vcombine.low %v3262, %v3278
      %v3319 = vcombine.high %v3262, %v3278
      %v3321 = vunpack.c.l.s4 1934713408
      %v3322 = vunpack.c.0.s8 %v3321
      %v3323 = vlaneseq
      %v3324 = vshrl.u32 %v3323, 7
      %v3325 = vsub.s32 %v3322, %v3324
      %v3326 = vrot.slane %v3318, %v3325
      %v3328 = vunpack.c.l.s4 1934713408
      %v3329 = vunpack.c.0.s8 %v3328
      %v3330 = vlaneseq
      %v3331 = vshrl.u32 %v3330, 7
      %v3332 = vsub.s32 %v3329, %v3331
      %v3333 = vrot.slane %v3319, %v3332
      %v3334 = vcombine.low %v3269, %v3285
      %v3335 = vcombine.high %v3269, %v3285
      %v3337 = vunpack.c.l.s4 1934713408
      %v3338 = vunpack.c.0.s8 %v3337
      %v3339 = vlaneseq
      %v3340 = vshrl.u32 %v3339, 7
      %v3341 = vsub.s32 %v3338, %v3340
      %v3342 = vrot.slane %v3334, %v3341
      %v3344 = vunpack.c.l.s4 1934713408
      %v3345 = vunpack.c.0.s8 %v3344
      %v3346 = vlaneseq
      %v3347 = vshrl.u32 %v3346, 7
      %v3348 = vsub.s32 %v3345, %v3347
      %v3349 = vrot.slane %v3335, %v3348
      %v3350 = vcombine.low %v3294, %v3326
      %v3351 = vcombine.high %v3294, %v3326
      %v3352 = vcombine.low %v3301, %v3333
      %v3353 = vcombine.high %v3301, %v3333
      %v3354 = vcombine.low %v3310, %v3342
      %v3355 = vcombine.high %v3310, %v3342
      %v3356 = vcombine.low %v3317, %v3349
      %v3357 = vcombine.high %v3317, %v3349
      %v3358 = vcombine.low %v3206, %v3210
      %v3359 = vcombine.high %v3206, %v3210
      %v3361 = vunpack.c.l.s4 1983009808
      %v3362 = vunpack.c.0.s8 %v3361
      %v3363 = vlaneseq
      %v3364 = vshrl.u32 %v3363, 7
      %v3365 = vsub.s32 %v3362, %v3364
      %v3366 = vrot.slane %v3358, %v3365
      %v3368 = vunpack.c.l.s4 1983009808
      %v3369 = vunpack.c.0.s8 %v3368
      %v3370 = vlaneseq
      %v3371 = vshrl.u32 %v3370, 7
      %v3372 = vsub.s32 %v3369, %v3371
      %v3373 = vrot.slane %v3359, %v3372
      %v3374 = vcombine.low %v3208, %v3212
      %v3375 = vcombine.high %v3208, %v3212
      %v3377 = vunpack.c.l.s4 1983009808
      %v3378 = vunpack.c.0.s8 %v3377
      %v3379 = vlaneseq
      %v3380 = vshrl.u32 %v3379, 7
      %v3381 = vsub.s32 %v3378, %v3380
      %v3382 = vrot.slane %v3374, %v3381
      %v3384 = vunpack.c.l.s4 1983009808
      %v3385 = vunpack.c.0.s8 %v3384
      %v3386 = vlaneseq
      %v3387 = vshrl.u32 %v3386, 7
      %v3388 = vsub.s32 %v3385, %v3387
      %v3389 = vrot.slane %v3375, %v3388
      %v3390 = vcombine.low %v3214, %v3218
      %v3391 = vcombine.high %v3214, %v3218
      %v3393 = vunpack.c.l.s4 1983009808
      %v3394 = vunpack.c.0.s8 %v3393
      %v3395 = vlaneseq
      %v3396 = vshrl.u32 %v3395, 7
      %v3397 = vsub.s32 %v3394, %v3396
      %v3398 = vrot.slane %v3390, %v3397
      %v3400 = vunpack.c.l.s4 1983009808
      %v3401 = vunpack.c.0.s8 %v3400
      %v3402 = vlaneseq
      %v3403 = vshrl.u32 %v3402, 7
      %v3404 = vsub.s32 %v3401, %v3403
      %v3405 = vrot.slane %v3391, %v3404
      %v3406 = vcombine.low %v3216, %v3220
      %v3407 = vcombine.high %v3216, %v3220
      %v3409 = vunpack.c.l.s4 1983009808
      %v3410 = vunpack.c.0.s8 %v3409
      %v3411 = vlaneseq
      %v3412 = vshrl.u32 %v3411, 7
      %v3413 = vsub.s32 %v3410, %v3412
      %v3414 = vrot.slane %v3406, %v3413
      %v3416 = vunpack.c.l.s4 1983009808
      %v3417 = vunpack.c.0.s8 %v3416
      %v3418 = vlaneseq
      %v3419 = vshrl.u32 %v3418, 7
      %v3420 = vsub.s32 %v3417, %v3419
      %v3421 = vrot.slane %v3407, %v3420
      %v3422 = vcombine.low %v3366, %v3382
      %v3423 = vcombine.high %v3366, %v3382
      %v3425 = vunpack.c.l.s4 1934713408
      %v3426 = vunpack.c.0.s8 %v3425
      %v3427 = vlaneseq
      %v3428 = vshrl.u32 %v3427, 7
      %v3429 = vsub.s32 %v3426, %v3428
      %v3430 = vrot.slane %v3422, %v3429
      %v3432 = vunpack.c.l.s4 1934713408
      %v3433 = vunpack.c.0.s8 %v3432
      %v3434 = vlaneseq
      %v3435 = vshrl.u32 %v3434, 7
      %v3436 = vsub.s32 %v3433, %v3435
      %v3437 = vrot.slane %v3423, %v3436
      %v3438 = vcombine.low %v3373, %v3389
      %v3439 = vcombine.high %v3373, %v3389
      %v3441 = vunpack.c.l.s4 1934713408
      %v3442 = vunpack.c.0.s8 %v3441
      %v3443 = vlaneseq
      %v3444 = vshrl.u32 %v3443, 7
      %v3445 = vsub.s32 %v3442, %v3444
      %v3446 = vrot.slane %v3438, %v3445
      %v3448 = vunpack.c.l.s4 1934713408
      %v3449 = vunpack.c.0.s8 %v3448
      %v3450 = vlaneseq
      %v3451 = vshrl.u32 %v3450, 7
      %v3452 = vsub.s32 %v3449, %v3451
      %v3453 = vrot.slane %v3439, %v3452
      %v3454 = vcombine.low %v3398, %v3414
      %v3455 = vcombine.high %v3398, %v3414
      %v3457 = vunpack.c.l.s4 1934713408
      %v3458 = vunpack.c.0.s8 %v3457
      %v3459 = vlaneseq
      %v3460 = vshrl.u32 %v3459, 7
      %v3461 = vsub.s32 %v3458, %v3460
      %v3462 = vrot.slane %v3454, %v3461
      %v3464 = vunpack.c.l.s4 1934713408
      %v3465 = vunpack.c.0.s8 %v3464
      %v3466 = vlaneseq
      %v3467 = vshrl.u32 %v3466, 7
      %v3468 = vsub.s32 %v3465, %v3467
      %v3469 = vrot.slane %v3455, %v3468
      %v3470 = vcombine.low %v3405, %v3421
      %v3471 = vcombine.high %v3405, %v3421
      %v3473 = vunpack.c.l.s4 1934713408
      %v3474 = vunpack.c.0.s8 %v3473
      %v3475 = vlaneseq
      %v3476 = vshrl.u32 %v3475, 7
      %v3477 = vsub.s32 %v3474, %v3476
      %v3478 = vrot.slane %v3470, %v3477
      %v3480 = vunpack.c.l.s4 1934713408
      %v3481 = vunpack.c.0.s8 %v3480
      %v3482 = vlaneseq
      %v3483 = vshrl.u32 %v3482, 7
      %v3484 = vsub.s32 %v3481, %v3483
      %v3485 = vrot.slane %v3471, %v3484
      %v3486 = vcombine.low %v3430, %v3462
      %v3487 = vcombine.high %v3430, %v3462
      %v3488 = vcombine.low %v3437, %v3469
      %v3489 = vcombine.high %v3437, %v3469
      %v3490 = vcombine.low %v3446, %v3478
      %v3491 = vcombine.high %v3446, %v3478
      %v3492 = vcombine.low %v3453, %v3485
      %v3493 = vcombine.high %v3453, %v3485
      %v3494 = vcombine.low %v3191, %v3195
      %v3495 = vcombine.high %v3191, %v3195
      %v3497 = vunpack.c.l.s4 1983009808
      %v3498 = vunpack.c.0.s8 %v3497
      %v3499 = vlaneseq
      %v3500 = vshrl.u32 %v3499, 7
      %v3501 = vsub.s32 %v3498, %v3500
      %v3502 = vrot.slane %v3494, %v3501
      %v3504 = vunpack.c.l.s4 1983009808
      %v3505 = vunpack.c.0.s8 %v3504
      %v3506 = vlaneseq
      %v3507 = vshrl.u32 %v3506, 7
      %v3508 = vsub.s32 %v3505, %v3507
      %v3509 = vrot.slane %v3495, %v3508
      %v3510 = vcombine.low %v3193, %v3197
      %v3511 = vcombine.high %v3193, %v3197
      %v3513 = vunpack.c.l.s4 1983009808
      %v3514 = vunpack.c.0.s8 %v3513
      %v3515 = vlaneseq
      %v3516 = vshrl.u32 %v3515, 7
      %v3517 = vsub.s32 %v3514, %v3516
      %v3518 = vrot.slane %v3510, %v3517
      %v3520 = vunpack.c.l.s4 1983009808
      %v3521 = vunpack.c.0.s8 %v3520
      %v3522 = vlaneseq
      %v3523 = vshrl.u32 %v3522, 7
      %v3524 = vsub.s32 %v3521, %v3523
      %v3525 = vrot.slane %v3511, %v3524
      %v3526 = vcombine.low %v3199, %v3203
      %v3527 = vcombine.high %v3199, %v3203
      %v3529 = vunpack.c.l.s4 1983009808
      %v3530 = vunpack.c.0.s8 %v3529
      %v3531 = vlaneseq
      %v3532 = vshrl.u32 %v3531, 7
      %v3533 = vsub.s32 %v3530, %v3532
      %v3534 = vrot.slane %v3526, %v3533
      %v3536 = vunpack.c.l.s4 1983009808
      %v3537 = vunpack.c.0.s8 %v3536
      %v3538 = vlaneseq
      %v3539 = vshrl.u32 %v3538, 7
      %v3540 = vsub.s32 %v3537, %v3539
      %v3541 = vrot.slane %v3527, %v3540
      %v3542 = vcombine.low %v3201, %v3205
      %v3543 = vcombine.high %v3201, %v3205
      %v3545 = vunpack.c.l.s4 1983009808
      %v3546 = vunpack.c.0.s8 %v3545
      %v3547 = vlaneseq
      %v3548 = vshrl.u32 %v3547, 7
      %v3549 = vsub.s32 %v3546, %v3548
      %v3550 = vrot.slane %v3542, %v3549
      %v3552 = vunpack.c.l.s4 1983009808
      %v3553 = vunpack.c.0.s8 %v3552
      %v3554 = vlaneseq
      %v3555 = vshrl.u32 %v3554, 7
      %v3556 = vsub.s32 %v3553, %v3555
      %v3557 = vrot.slane %v3543, %v3556
      %v3558 = vcombine.low %v3502, %v3518
      %v3559 = vcombine.high %v3502, %v3518
      %v3561 = vunpack.c.l.s4 1934713408
      %v3562 = vunpack.c.0.s8 %v3561
      %v3563 = vlaneseq
      %v3564 = vshrl.u32 %v3563, 7
      %v3565 = vsub.s32 %v3562, %v3564
      %v3566 = vrot.slane %v3558, %v3565
      %v3568 = vunpack.c.l.s4 1934713408
      %v3569 = vunpack.c.0.s8 %v3568
      %v3570 = vlaneseq
      %v3571 = vshrl.u32 %v3570, 7
      %v3572 = vsub.s32 %v3569, %v3571
      %v3573 = vrot.slane %v3559, %v3572
      %v3574 = vcombine.low %v3509, %v3525
      %v3575 = vcombine.high %v3509, %v3525
      %v3577 = vunpack.c.l.s4 1934713408
      %v3578 = vunpack.c.0.s8 %v3577
      %v3579 = vlaneseq
      %v3580 = vshrl.u32 %v3579, 7
      %v3581 = vsub.s32 %v3578, %v3580
      %v3582 = vrot.slane %v3574, %v3581
      %v3584 = vunpack.c.l.s4 1934713408
      %v3585 = vunpack.c.0.s8 %v3584
      %v3586 = vlaneseq
      %v3587 = vshrl.u32 %v3586, 7
      %v3588 = vsub.s32 %v3585, %v3587
      %v3589 = vrot.slane %v3575, %v3588
      %v3590 = vcombine.low %v3534, %v3550
      %v3591 = vcombine.high %v3534, %v3550
      %v3593 = vunpack.c.l.s4 1934713408
      %v3594 = vunpack.c.0.s8 %v3593
      %v3595 = vlaneseq
      %v3596 = vshrl.u32 %v3595, 7
      %v3597 = vsub.s32 %v3594, %v3596
      %v3598 = vrot.slane %v3590, %v3597
      %v3600 = vunpack.c.l.s4 1934713408
      %v3601 = vunpack.c.0.s8 %v3600
      %v3602 = vlaneseq
      %v3603 = vshrl.u32 %v3602, 7
      %v3604 = vsub.s32 %v3601, %v3603
      %v3605 = vrot.slane %v3591, %v3604
      %v3606 = vcombine.low %v3541, %v3557
      %v3607 = vcombine.high %v3541, %v3557
      %v3609 = vunpack.c.l.s4 1934713408
      %v3610 = vunpack.c.0.s8 %v3609
      %v3611 = vlaneseq
      %v3612 = vshrl.u32 %v3611, 7
      %v3613 = vsub.s32 %v3610, %v3612
      %v3614 = vrot.slane %v3606, %v3613
      %v3616 = vunpack.c.l.s4 1934713408
      %v3617 = vunpack.c.0.s8 %v3616
      %v3618 = vlaneseq
      %v3619 = vshrl.u32 %v3618, 7
      %v3620 = vsub.s32 %v3617, %v3619
      %v3621 = vrot.slane %v3607, %v3620
      %v3622 = vcombine.low %v3566, %v3598
      %v3623 = vcombine.high %v3566, %v3598
      %v3624 = vcombine.low %v3573, %v3605
      %v3625 = vcombine.high %v3573, %v3605
      %v3626 = vcombine.low %v3582, %v3614
      %v3627 = vcombine.high %v3582, %v3614
      %v3628 = vcombine.low %v3589, %v3621
      %v3629 = vcombine.high %v3589, %v3621
      %v3630 = vcombine.low %v3207, %v3211
      %v3631 = vcombine.high %v3207, %v3211
      %v3633 = vunpack.c.l.s4 1983009808
      %v3634 = vunpack.c.0.s8 %v3633
      %v3635 = vlaneseq
      %v3636 = vshrl.u32 %v3635, 7
      %v3637 = vsub.s32 %v3634, %v3636
      %v3638 = vrot.slane %v3630, %v3637
      %v3640 = vunpack.c.l.s4 1983009808
      %v3641 = vunpack.c.0.s8 %v3640
      %v3642 = vlaneseq
      %v3643 = vshrl.u32 %v3642, 7
      %v3644 = vsub.s32 %v3641, %v3643
      %v3645 = vrot.slane %v3631, %v3644
      %v3646 = vcombine.low %v3209, %v3213
      %v3647 = vcombine.high %v3209, %v3213
      %v3649 = vunpack.c.l.s4 1983009808
      %v3650 = vunpack.c.0.s8 %v3649
      %v3651 = vlaneseq
      %v3652 = vshrl.u32 %v3651, 7
      %v3653 = vsub.s32 %v3650, %v3652
      %v3654 = vrot.slane %v3646, %v3653
      %v3656 = vunpack.c.l.s4 1983009808
      %v3657 = vunpack.c.0.s8 %v3656
      %v3658 = vlaneseq
      %v3659 = vshrl.u32 %v3658, 7
      %v3660 = vsub.s32 %v3657, %v3659
      %v3661 = vrot.slane %v3647, %v3660
      %v3662 = vcombine.low %v3215, %v3219
      %v3663 = vcombine.high %v3215, %v3219
      %v3665 = vunpack.c.l.s4 1983009808
      %v3666 = vunpack.c.0.s8 %v3665
      %v3667 = vlaneseq
      %v3668 = vshrl.u32 %v3667, 7
      %v3669 = vsub.s32 %v3666, %v3668
      %v3670 = vrot.slane %v3662, %v3669
      %v3672 = vunpack.c.l.s4 1983009808
      %v3673 = vunpack.c.0.s8 %v3672
      %v3674 = vlaneseq
      %v3675 = vshrl.u32 %v3674, 7
      %v3676 = vsub.s32 %v3673, %v3675
      %v3677 = vrot.slane %v3663, %v3676
      %v3678 = vcombine.low %v3217, %v3221
      %v3679 = vcombine.high %v3217, %v3221
      %v3681 = vunpack.c.l.s4 1983009808
      %v3682 = vunpack.c.0.s8 %v3681
      %v3683 = vlaneseq
      %v3684 = vshrl.u32 %v3683, 7
      %v3685 = vsub.s32 %v3682, %v3684
      %v3686 = vrot.slane %v3678, %v3685
      %v3688 = vunpack.c.l.s4 1983009808
      %v3689 = vunpack.c.0.s8 %v3688
      %v3690 = vlaneseq
      %v3691 = vshrl.u32 %v3690, 7
      %v3692 = vsub.s32 %v3689, %v3691
      %v3693 = vrot.slane %v3679, %v3692
      %v3694 = vcombine.low %v3638, %v3654
      %v3695 = vcombine.high %v3638, %v3654
      %v3697 = vunpack.c.l.s4 1934713408
      %v3698 = vunpack.c.0.s8 %v3697
      %v3699 = vlaneseq
      %v3700 = vshrl.u32 %v3699, 7
      %v3701 = vsub.s32 %v3698, %v3700
      %v3702 = vrot.slane %v3694, %v3701
      %v3704 = vunpack.c.l.s4 1934713408
      %v3705 = vunpack.c.0.s8 %v3704
      %v3706 = vlaneseq
      %v3707 = vshrl.u32 %v3706, 7
      %v3708 = vsub.s32 %v3705, %v3707
      %v3709 = vrot.slane %v3695, %v3708
      %v3710 = vcombine.low %v3645, %v3661
      %v3711 = vcombine.high %v3645, %v3661
      %v3713 = vunpack.c.l.s4 1934713408
      %v3714 = vunpack.c.0.s8 %v3713
      %v3715 = vlaneseq
      %v3716 = vshrl.u32 %v3715, 7
      %v3717 = vsub.s32 %v3714, %v3716
      %v3718 = vrot.slane %v3710, %v3717
      %v3720 = vunpack.c.l.s4 1934713408
      %v3721 = vunpack.c.0.s8 %v3720
      %v3722 = vlaneseq
      %v3723 = vshrl.u32 %v3722, 7
      %v3724 = vsub.s32 %v3721, %v3723
      %v3725 = vrot.slane %v3711, %v3724
      %v3726 = vcombine.low %v3670, %v3686
      %v3727 = vcombine.high %v3670, %v3686
      %v3729 = vunpack.c.l.s4 1934713408
      %v3730 = vunpack.c.0.s8 %v3729
      %v3731 = vlaneseq
      %v3732 = vshrl.u32 %v3731, 7
      %v3733 = vsub.s32 %v3730, %v3732
      %v3734 = vrot.slane %v3726, %v3733
      %v3736 = vunpack.c.l.s4 1934713408
      %v3737 = vunpack.c.0.s8 %v3736
      %v3738 = vlaneseq
      %v3739 = vshrl.u32 %v3738, 7
      %v3740 = vsub.s32 %v3737, %v3739
      %v3741 = vrot.slane %v3727, %v3740
      %v3742 = vcombine.low %v3677, %v3693
      %v3743 = vcombine.high %v3677, %v3693
      %v3745 = vunpack.c.l.s4 1934713408
      %v3746 = vunpack.c.0.s8 %v3745
      %v3747 = vlaneseq
      %v3748 = vshrl.u32 %v3747, 7
      %v3749 = vsub.s32 %v3746, %v3748
      %v3750 = vrot.slane %v3742, %v3749
      %v3752 = vunpack.c.l.s4 1934713408
      %v3753 = vunpack.c.0.s8 %v3752
      %v3754 = vlaneseq
      %v3755 = vshrl.u32 %v3754, 7
      %v3756 = vsub.s32 %v3753, %v3755
      %v3757 = vrot.slane %v3743, %v3756
      %v3758 = vcombine.low %v3702, %v3734
      %v3759 = vcombine.high %v3702, %v3734
      %v3760 = vcombine.low %v3709, %v3741
      %v3761 = vcombine.high %v3709, %v3741
      %v3762 = vcombine.low %v3718, %v3750
      %v3763 = vcombine.high %v3718, %v3750
      %v3764 = vcombine.low %v3725, %v3757
      %v3765 = vcombine.high %v3725, %v3757
      %3768 = vrot.lane.b32.xlu0 %v3351, 4
      %v3769 = vpop.permute.xlu0 %3768
      %3770 = vrot.lane.b32.xlu0 %v3487, 4
      %v3771 = vpop.permute.xlu0 %3770
      %3776 = vrot.lane.b32.xlu0 %v3352, 8
      %v3777 = vpop.permute.xlu0 %3776
      %3778 = vrot.lane.b32.xlu0 %v3488, 8
      %v3779 = vpop.permute.xlu0 %3778
      %3784 = vrot.lane.b32.xlu0 %v3353, 12
      %v3785 = vpop.permute.xlu0 %3784
      %3786 = vrot.lane.b32.xlu0 %v3489, 12
      %v3787 = vpop.permute.xlu0 %3786
      %3792 = vrot.lane.b32.xlu0 %v3354, 16
      %v3793 = vpop.permute.xlu0 %3792
      %3794 = vrot.lane.b32.xlu0 %v3490, 16
      %v3795 = vpop.permute.xlu0 %3794
      %3800 = vrot.lane.b32.xlu0 %v3355, 20
      %v3801 = vpop.permute.xlu0 %3800
      %3802 = vrot.lane.b32.xlu0 %v3491, 20
      %v3803 = vpop.permute.xlu0 %3802
      %3808 = vrot.lane.b32.xlu0 %v3356, 24
      %v3809 = vpop.permute.xlu0 %3808
      %3810 = vrot.lane.b32.xlu0 %v3492, 24
      %v3811 = vpop.permute.xlu0 %3810
      %3816 = vrot.lane.b32.xlu0 %v3357, 28
      %v3817 = vpop.permute.xlu0 %3816
      %3818 = vrot.lane.b32.xlu0 %v3493, 28
      %v3819 = vpop.permute.xlu0 %3818
      %3824 = vrot.lane.b32.xlu0 %v3622, 32
      %v3825 = vpop.permute.xlu0 %3824
      %3826 = vrot.lane.b32.xlu0 %v3758, 32
      %v3827 = vpop.permute.xlu0 %3826
      %3832 = vrot.lane.b32.xlu0 %v3623, 36
      %v3833 = vpop.permute.xlu0 %3832
      %3834 = vrot.lane.b32.xlu0 %v3759, 36
      %v3835 = vpop.permute.xlu0 %3834
      %3840 = vrot.lane.b32.xlu0 %v3624, 40
      %v3841 = vpop.permute.xlu0 %3840
      %3842 = vrot.lane.b32.xlu0 %v3760, 40
      %v3843 = vpop.permute.xlu0 %3842
      %3848 = vrot.lane.b32.xlu0 %v3625, 44
      %v3849 = vpop.permute.xlu0 %3848
      %3850 = vrot.lane.b32.xlu0 %v3761, 44
      %v3851 = vpop.permute.xlu0 %3850
      %3856 = vrot.lane.b32.xlu0 %v3626, 48
      %v3857 = vpop.permute.xlu0 %3856
      %3858 = vrot.lane.b32.xlu0 %v3762, 48
      %v3859 = vpop.permute.xlu0 %3858
      %3864 = vrot.lane.b32.xlu0 %v3627, 52
      %v3865 = vpop.permute.xlu0 %3864
      %3866 = vrot.lane.b32.xlu0 %v3763, 52
      %v3867 = vpop.permute.xlu0 %3866
      %3872 = vrot.lane.b32.xlu0 %v3628, 56
      %v3873 = vpop.permute.xlu0 %3872
      %3874 = vrot.lane.b32.xlu0 %v3764, 56
      %v3875 = vpop.permute.xlu0 %3874
      %3880 = vrot.lane.b32.xlu0 %v3629, 60
      %v3881 = vpop.permute.xlu0 %3880
      %3882 = vrot.lane.b32.xlu0 %v3765, 60
      %v3883 = vpop.permute.xlu0 %3882
      %v3886 = vsel %vm691, %v3350, %v3769
      %v3887 = vsel %vm691, %v3486, %v3771
      %v3888 = vsel %vm1034, %v3886, %v3777
      %v3889 = vsel %vm1034, %v3887, %v3779
      %vm3890 = vcmask 97280
      %v3891 = vsel %vm3890, %v3888, %v3785
      %v3892 = vsel %vm3890, %v3889, %v3787
      %v3893 = vsel %vm1083, %v3891, %v3793
      %v3894 = vsel %vm1083, %v3892, %v3795
      %vm3895 = vcmask 162816
      %v3896 = vsel %vm3895, %v3893, %v3801
      %v3897 = vsel %vm3895, %v3894, %v3803
      %v3898 = vsel %vm1129, %v3896, %v3809
      %v3899 = vsel %vm1129, %v3897, %v3811
      %vm3900 = vcmask 228352
      %v3901 = vsel %vm3900, %v3898, %v3817
      %v3902 = vsel %vm3900, %v3899, %v3819
      %vm3903 = vcmask 261120
      %v3904 = vsel %vm3903, %v3901, %v3825
      %v3905 = vsel %vm3903, %v3902, %v3827
      %vm3906 = vcmask 293888
      %v3907 = vsel %vm3906, %v3904, %v3833
      %v3908 = vsel %vm3906, %v3905, %v3835
      %vm3909 = vcmask 326656
      %v3910 = vsel %vm3909, %v3907, %v3841
      %v3911 = vsel %vm3909, %v3908, %v3843
      %vm3912 = vcmask 359424
      %v3913 = vsel %vm3912, %v3910, %v3849
      %v3914 = vsel %vm3912, %v3911, %v3851
      %vm3915 = vcmask 392192
      %v3916 = vsel %vm3915, %v3913, %v3857
      %v3917 = vsel %vm3915, %v3914, %v3859
      %vm3918 = vcmask 424960
      %v3919 = vsel %vm3918, %v3916, %v3865
      %v3920 = vsel %vm3918, %v3917, %v3867
      %vm3921 = vcmask 457728
      %v3922 = vsel %vm3921, %v3919, %v3873
      %v3923 = vsel %vm3921, %v3920, %v3875
      %vm3924 = vcmask 490496
      %v3925 = vsel %vm3924, %v3922, %v3881
      %v3926 = vsel %vm3924, %v3923, %v3883
      %vm3927 = vcmask 523264
      %3928 = vst.msk [vmem:[%s433] sm:$0xff] %vm3927, %v3925
      %3929 = vst.msk [vmem:[%s433 + $0x8] sm:$0xff] %vm3927, %v3926
      %p3930 = scmp.lt.s32.totalorder %s23, 1
      %s3931 = scalar_select %p3930, %s23, 1
      %s3932 = smul.addr %s3931, 2
      %s3933 = smul.addr %s3932, 8
      %s3934 = scalar_lea.vmem %s12, %s3933
      // Predicated region
      $region69: #{codem2_forward_nhwc.1} parent=67 // pred_check
        %p3935 = pneg %p303
      $region70: #{codem2_forward_nhwc.1} parent=67 // pred_check_branch
        %3937 = sbr.rel (%p3935) target = $region72
      $region71: #{codem2_forward_nhwc.1} parent=67 // pred_region
        _
      $region72: #{codem2_forward_nhwc.1} parent=67 // pred_fallthru
        _
    $region68: #{codem2_forward_nhwc.1} parent=5 // pred_fallthru
      _
    %p3938 = scmp.le.s32.totalorder 2, %s18
    // Predicated region
    $region73: #{codem2_forward_nhwc.1} parent=5 // pred_check
      %p3939 = pneg %p3938
    $region74: #{codem2_forward_nhwc.1} parent=5 // pred_check_branch
      %3941 = sbr.rel (%p3939) target = $region76
    $region75: #{codem2_forward_nhwc.1} parent=5 // pred_region
      %s3942 = ssub.s32 %s18, 2
      // Predicated region
      $region77: #{codem2_forward_nhwc.1} parent=75 // pred_check
        %p3943 = pneg %p309
      $region78: #{codem2_forward_nhwc.1} parent=75 // pred_check_branch
        %3945 = sbr.rel (%p3943) target = $region80
      $region79: #{codem2_forward_nhwc.1} parent=75 // pred_region
        %p3946 = scmp.lt.s32.totalorder %s24, 1
        %s3947 = scalar_select %p3946, %s24, 1
        %s3948 = smul.addr %s3947, 2
        %s3949 = smul.addr %s3948, 8
        %s3950 = scalar_lea.vmem %s12, %s3949
      $region80: #{codem2_forward_nhwc.1} parent=75 // pred_fallthru
        _
    $region76: #{codem2_forward_nhwc.1} parent=5 // pred_fallthru
      _
  $region6: #{codem2_forward_nhwc.1} parent=0 // loop_footer
    %s22 = sadd.s32 1, %s18
  $region7: #{codem2_forward_nhwc.1} parent=0 // loop_footer_branch
    %17 = sbr.rel target = $region3
  $region8: #{codem2_forward_nhwc.1} parent=0 // loop_exit
    _

</llo_original>
